<compile_context>
chip_gen: v6e
topology: v6e:2x2x1
jax: 0.10.0
libtpu: 0.0.40
codegen_flags: <defaults>
</compile_context>

<pallas_src>
import jax
import jax.numpy as jnp
from jax.experimental import pallas as pl
from jax.experimental.pallas import tpu as pltpu

# ----------------------------- model sizes (small but shape-consistent) ----
N = 2            # batch
C = 128          # feature channels (1024 in the real module)
H, W = 8, 12     # spatial size of pooled_output
NUM_CLASSES = 10
FC_IN = C * (H // 2) * (W // 2)   # 49152 in the real module


def select_tile_c(c):
    """Cout tile: 128 on v5e (128-wide MXU, less vreg pressure), 256 elsewhere."""
    try:
        kind = jax.devices()[0].device_kind.lower()
    except Exception:
        kind = ""
    cap = 128 if ("v5 lite" in kind or "v5e" in kind or "v5lite" in kind) else 256
    tile_c = min(c, cap)
    assert c % tile_c == 0
    return tile_c


# ----------------------------- Pallas kernels ------------------------------
def conv_relu_pool_kernel(xp_ref, w9_ref, b_ref, o_ref, patch_scr, yh_scr):
    """3x3 conv (pre-padded, im2col) + bias + ReLU + 2x2/2 maxpool.

    One grid step = one Cout tile for the whole batch.

    xp_ref   : (N, H+2, W+2, Cin)    padded input, bf16; block index constant
                                     across the grid -> stays resident in VMEM.
    w9_ref   : (9*Cin, TC)           im2col conv weights for this Cout tile (bf16).
    b_ref    : (1, TC)               conv bias slice (f32).
    o_ref    : (N, 1, H/2, W/2, TC)  pooled feature tile (bf16).
    patch_scr: (N*H, W, 9*Cin) bf16  im2col patch matrix (VMEM scratch).
    yh_scr   : (N*H/2, W, TC) f32    row-pair maxima for the W-pool (VMEM scratch).
    """
    nb, hpad, wpad, cin = xp_ref.shape
    _, _, hp, wp, tc = o_ref.shape
    hh, ww = hpad - 2, wpad - 2

    # --- im2col: hoist the three dw-shifted (unaligned sublane) windows once;
    #     the dh shifts are then free leading-axis slices.
    x = xp_ref[...]                                            # (N, H+2, W+2, Cin)
    cols = [x[:, :, dw:dw + ww, :] for dw in range(3)]         # (N, H+2, W, Cin)
    for dh in range(3):
        for dw in range(3):
            k0 = (3 * dh + dw) * cin
            patch_scr[:, :, k0:k0 + cin] = (
                cols[dw][:, dh:dh + hh].reshape(nb * hh, ww, cin))

    # --- single MXU call: M = N*H*W (batch folded into rows), K = 9*Cin.
    acc = jax.lax.dot_general(
        patch_scr[...], w9_ref[...],
        dimension_numbers=(((2,), (0,)), ((), ())),
        preferred_element_type=jnp.float32)                    # (N*H, W, TC) f32
    y = jnp.maximum(acc + b_ref[...], 0.0)                     # bias + ReLU

    # --- 2x2/2 maxpool.  H direction: leading-dims reshape + max (VPU only).
    y5 = y.reshape(nb, hp, 2, ww, tc)
    yh_scr[...] = jnp.maximum(y5[:, :, 0], y5[:, :, 1]).reshape(nb * hp, ww, tc)
    # W direction: two sublane-strided reads, one dense store.
    pooled = jnp.maximum(yh_scr[:, pl.ds(0, wp, stride=2), :],
                         yh_scr[:, pl.ds(1, wp, stride=2), :])  # (N*hp, wp, TC)
    o_ref[:, 0] = pooled.reshape(nb, hp, wp, tc).astype(o_ref.dtype)


def fc_kernel(x_ref, w_ref, b_ref, o_ref):
    """Dense layer: x (N, K) bf16 contracted with torch-layout W (M, K) bf16."""
    o_ref[...] = (jax.lax.dot_general(
        x_ref[...], w_ref[...],
        dimension_numbers=(((1,), (1,)), ((), ())),   # keep K lane-dense
        preferred_element_type=jnp.float32) + b_ref[...]).astype(o_ref.dtype)


# ----------------------------- Pallas wrappers -----------------------------
def extra_head(pooled_nhwc, prep):
    """extra_conv + ReLU + maxpool + extra_fc, all in Pallas."""
    n, h, w, c = pooled_nhwc.shape
    tile_c = select_tile_c(c)
    n_ct = c // tile_c
    hp, wp = h // 2, w // 2

    xp = jnp.pad(pooled_nhwc.astype(jnp.bfloat16),
                 ((0, 0), (1, 1), (1, 1), (0, 0)))

    # Conv + ReLU + pool; feat is written directly in (n, cout_tile, h, w, c)
    # order, which is exactly the flatten order the permuted FC weight expects.
    feat = pl.pallas_call(
        conv_relu_pool_kernel,
        out_shape=jax.ShapeDtypeStruct((n, n_ct, hp, wp, tile_c), jnp.bfloat16),
        grid=(n_ct,),
        in_specs=[
            pl.BlockSpec((n, h + 2, w + 2, c), lambda t: (0, 0, 0, 0)),  # resident
            pl.BlockSpec((9 * c, tile_c), lambda t: (0, t)),             # streamed
            pl.BlockSpec((1, tile_c), lambda t: (0, t)),
        ],
        out_specs=pl.BlockSpec((n, 1, hp, wp, tile_c),
                               lambda t: (0, t, 0, 0, 0)),
        scratch_shapes=[
            pltpu.VMEM((n * h, w, 9 * c), jnp.bfloat16),   # im2col patches
            pltpu.VMEM((n * hp, w, tile_c), jnp.float32),  # H-pooled rows
        ],
        compiler_params=pltpu.CompilerParams(
            dimension_semantics=("parallel",)),
    )(xp, prep["conv_w9"], prep["conv_b"])

    flat = feat.reshape(n, n_ct * hp * wp * tile_c)   # contiguous -> free reshape
    k = flat.shape[1]
    m = prep["fc_w_perm"].shape[0]

    return pl.pallas_call(
        fc_kernel,
        out_shape=jax.ShapeDtypeStruct((n, m), jnp.float32),
        grid=(1,),
        in_specs=[
            pl.BlockSpec((n, k), lambda i: (0, 0)),
            pl.BlockSpec((m, k), lambda i: (0, 0)),   # torch (out, in): K on lanes
            pl.BlockSpec((1, m), lambda i: (0, 0)),
        ],
        out_specs=pl.BlockSpec((n, m), lambda i: (0, 0)),
    )(flat, prep["fc_w_perm"], prep["fc_b"])


# ----------------------------- frozen model stub ---------------------------
def frozen_model_stub(x_nchw, params):
    # TODO(synk): `model_cls` (a DenseNet with latent=True) is injected from outside
    # the module and its internals are unknown here; this deterministic stand-in only
    # reproduces the output *interface* (pooled_output, before_last_fc, final_output).
    w1 = params["stub_w1"]                                        # (Cin=1, C)
    pooled_nhwc = jax.nn.relu(jnp.einsum("nihw,ic->nhwc", x_nchw, w1))
    before_last = jnp.mean(pooled_nhwc, axis=(1, 2))              # (N, C)
    final = before_last @ params["stub_wc"] + params["stub_bc"]   # (N, classes)
    return pooled_nhwc, before_last, final


# ----------------------------- full forward --------------------------------
def frozen_densenet_esc50_forward(x_nchw, prep):
    pooled_nhwc, _before_last, final = frozen_model_stub(x_nchw, prep)
    extra_fc_out = extra_head(pooled_nhwc, prep)
    return extra_fc_out, final


# ----------------------------- one-time parameter prep ---------------------
def prepare_params(params):
    """Hoist all frozen-weight layout work out of the per-call forward."""
    c = params["conv_b"].shape[0]
    tile_c = select_tile_c(c)
    n_ct = c // tile_c
    o, k = params["fc_w"].shape
    hp, wp = H // 2, W // 2

    # Conv2d weights: torch OIHW -> (dh, dw, cin)-major im2col matrix (9*Cin, Cout).
    conv_w9 = (jnp.transpose(params["conv_w"], (2, 3, 1, 0))
               .reshape(9 * c, c).astype(jnp.bfloat16))
    conv_b = params["conv_b"].reshape(1, c).astype(jnp.float32)

    # Linear weights: permute input columns from torch NCHW-flatten order
    # (c, h, w) to the kernel's (cout_tile, h, w, c_within_tile) order; keep
    # the torch (out, in) orientation so K stays on the 128-lane axis.
    fc_w = params["fc_w"].reshape(o, n_ct, tile_c, hp, wp)
    fc_w = jnp.transpose(fc_w, (0, 1, 3, 4, 2)).reshape(o, k)
    fc_w_perm = fc_w.astype(jnp.bfloat16)
    fc_b = params["fc_b"].reshape(1, o).astype(jnp.float32)

    return {
        "stub_w1": params["stub_w1"],
        "stub_wc": params["stub_wc"],
        "stub_bc": params["stub_bc"],
        "conv_w9": conv_w9,
        "conv_b": conv_b,
        "fc_w_perm": fc_w_perm,
        "fc_b": fc_b,
    }


# ----------------------------- pure-JAX reference --------------------------
def reference_forward(x_nchw, params):
    """Torch-convention reference (NCHW conv, NCHW flatten, original fc_w)."""
    pooled_nhwc, _before_last, final = frozen_model_stub(x_nchw, params)
    x_c = jnp.transpose(pooled_nhwc, (0, 3, 1, 2)).astype(jnp.bfloat16)
    y = jax.lax.conv_general_dilated(
        x_c, params["conv_w"].astype(jnp.bfloat16),
        window_strides=(1, 1), padding=((1, 1), (1, 1)),
        dimension_numbers=("NCHW", "OIHW", "NCHW"),
        preferred_element_type=jnp.float32)
    y = jax.nn.relu(y + params["conv_b"][None, :, None, None])
    n, c, h, w = y.shape
    y = y.reshape(n, c, h // 2, 2, w // 2, 2).max(axis=(3, 5)).astype(jnp.bfloat16)
    flat = y.reshape(n, -1)                                    # torch.flatten(x, 1)
    fc = jnp.dot(flat, params["fc_w"].T.astype(jnp.bfloat16),
                 preferred_element_type=jnp.float32) + params["fc_b"]
    return fc, final


# ----------------------------- parameter init ------------------------------
def init_params(key):
    ks = jax.random.split(key, 6)
    return {
        # frozen-model stub params
        "stub_w1": 0.1 * jax.random.normal(ks[0], (1, C), jnp.float32),
        "stub_wc": 0.05 * jax.random.normal(ks[1], (C, NUM_CLASSES), jnp.float32),
        "stub_bc": jnp.zeros((NUM_CLASSES,), jnp.float32),
        # extra_conv: Conv2d(C, C, 3, padding=1)  (torch OIHW layout)
        "conv_w": 0.02 * jax.random.normal(ks[2], (C, C, 3, 3), jnp.float32),
        "conv_b": 0.01 * jax.random.normal(ks[3], (C,), jnp.float32),
        # extra_fc: Linear(FC_IN, NUM_CLASSES)  (torch (out, in) layout)
        "fc_w": 0.02 * jax.random.normal(ks[4], (NUM_CLASSES, FC_IN), jnp.float32),
        "fc_b": 0.01 * jax.random.normal(ks[5], (NUM_CLASSES,), jnp.float32),
    }


if __name__ == "__main__":
    key = jax.random.PRNGKey(0)
    pkey, xkey = jax.random.split(key)
    params = init_params(pkey)
    prep = prepare_params(params)          # one-time weight layout work

    # ESC-50-style single-channel input (NCHW), small spatial size.
    x = jax.random.normal(xkey, (N, 1, H, W), jnp.float32)

    fwd = jax.jit(frozen_densenet_esc50_forward)
    extra_out, final_out = fwd(x, prep)
    jax.block_until_ready((extra_out, final_out))

    ref_extra, ref_final = reference_forward(x, params)
    assert extra_out.shape == (N, NUM_CLASSES)
    assert final_out.shape == (N, NUM_CLASSES)
    # bf16 inputs with f32 accumulation on both paths -> loosened tolerance.
    assert jnp.allclose(extra_out, ref_extra, rtol=1e-2, atol=1e-2), (
        float(jnp.max(jnp.abs(extra_out - ref_extra))))
    assert jnp.allclose(final_out, ref_final, rtol=1e-3, atol=1e-3)

    print("KERNEL_OK")
</pallas_src>

<mosaic_0001>
module attributes {stable_mosaic.version = 11 : i64} {
  func.func @conv_relu_pool_kernel(%arg0: i32, %arg1: memref<2x10x14x128xbf16, #tpu.memory_space<vmem>>, %arg2: memref<1152x128xbf16, #tpu.memory_space<vmem>>, %arg3: memref<1x128xf32, #tpu.memory_space<vmem>>, %arg4: memref<2x1x4x6x128xbf16, #tpu.memory_space<vmem>>, %arg5: memref<16x12x1152xbf16, #tpu.memory_space<vmem>>, %arg6: memref<8x12x128xf32, #tpu.memory_space<vmem>>) attributes {dimension_semantics = [#tpu.dimension_semantics<parallel>], iteration_bounds = array<i64: 1>, scalar_prefetch = 0 : i64, scratch_operands = 2 : i64, tpu.core_type = #tpu.core_type<tc>, window_params = [{pipeline_mode = #tpu.pipeline_mode<synchronous>, transform_indices = @transform_0, window_bounds = array<i64: 2, 10, 14, 128>}, {transform_indices = @transform_1, window_bounds = array<i64: 1152, 128>}, {transform_indices = @transform_2, window_bounds = array<i64: 1, 128>}, {transform_indices = @transform_3, window_bounds = array<i64: 2, 1, 4, 6, 128>}]} {
    %c0 = arith.constant 0 : index
    %c0_0 = arith.constant 0 : index
    %c0_1 = arith.constant 0 : index
    %c0_2 = arith.constant 0 : index
    %0 = vector.load %arg1[%c0, %c0_0, %c0_1, %c0_2] : memref<2x10x14x128xbf16, #tpu.memory_space<vmem>>, vector<2x10x14x128xbf16>
    %1 = vector.extract_strided_slice %0 {offsets = [0, 0, 0, 0], sizes = [2, 10, 12, 128], strides = [1, 1, 1, 1]} : vector<2x10x14x128xbf16> to vector<2x10x12x128xbf16>
    %2 = vector.extract_strided_slice %0 {offsets = [0, 0, 1, 0], sizes = [2, 10, 12, 128], strides = [1, 1, 1, 1]} : vector<2x10x14x128xbf16> to vector<2x10x12x128xbf16>
    %3 = vector.extract_strided_slice %0 {offsets = [0, 0, 2, 0], sizes = [2, 10, 12, 128], strides = [1, 1, 1, 1]} : vector<2x10x14x128xbf16> to vector<2x10x12x128xbf16>
    %4 = vector.extract_strided_slice %1 {offsets = [0, 0, 0, 0], sizes = [2, 8, 12, 128], strides = [1, 1, 1, 1]} : vector<2x10x12x128xbf16> to vector<2x8x12x128xbf16>
    %5 = vector.shape_cast %4 : vector<2x8x12x128xbf16> to vector<16x12x128xbf16>
    %c0_3 = arith.constant 0 : index
    %c0_4 = arith.constant 0 : index
    %c0_5 = arith.constant 0 : index
    %6 = vector.load %arg5[%c0_3, %c0_4, %c0_5] : memref<16x12x1152xbf16, #tpu.memory_space<vmem>>, vector<16x12x128xbf16>
    tpu.vector_store %arg5[%c0_3, %c0_4, %c0_5], %5 {strides = array<i32>} : memref<16x12x1152xbf16, #tpu.memory_space<vmem>>, vector<16x12x128xbf16>,
    %7 = vector.extract_strided_slice %2 {offsets = [0, 0, 0, 0], sizes = [2, 8, 12, 128], strides = [1, 1, 1, 1]} : vector<2x10x12x128xbf16> to vector<2x8x12x128xbf16>
    %8 = vector.shape_cast %7 : vector<2x8x12x128xbf16> to vector<16x12x128xbf16>
    %c0_6 = arith.constant 0 : index
    %c0_7 = arith.constant 0 : index
    %c128 = arith.constant 128 : index
    %9 = vector.load %arg5[%c0_6, %c0_7, %c128] : memref<16x12x1152xbf16, #tpu.memory_space<vmem>>, vector<16x12x128xbf16>
    tpu.vector_store %arg5[%c0_6, %c0_7, %c128], %8 {strides = array<i32>} : memref<16x12x1152xbf16, #tpu.memory_space<vmem>>, vector<16x12x128xbf16>,
    %10 = vector.extract_strided_slice %3 {offsets = [0, 0, 0, 0], sizes = [2, 8, 12, 128], strides = [1, 1, 1, 1]} : vector<2x10x12x128xbf16> to vector<2x8x12x128xbf16>
    %11 = vector.shape_cast %10 : vector<2x8x12x128xbf16> to vector<16x12x128xbf16>
    %c0_8 = arith.constant 0 : index
    %c0_9 = arith.constant 0 : index
    %c256 = arith.constant 256 : index
    %12 = vector.load %arg5[%c0_8, %c0_9, %c256] : memref<16x12x1152xbf16, #tpu.memory_space<vmem>>, vector<16x12x128xbf16>
    tpu.vector_store %arg5[%c0_8, %c0_9, %c256], %11 {strides = array<i32>} : memref<16x12x1152xbf16, #tpu.memory_space<vmem>>, vector<16x12x128xbf16>,
    %13 = vector.extract_strided_slice %1 {offsets = [0, 1, 0, 0], sizes = [2, 8, 12, 128], strides = [1, 1, 1, 1]} : vector<2x10x12x128xbf16> to vector<2x8x12x128xbf16>
    %14 = vector.shape_cast %13 : vector<2x8x12x128xbf16> to vector<16x12x128xbf16>
    %c0_10 = arith.constant 0 : index
    %c0_11 = arith.constant 0 : index
    %c384 = arith.constant 384 : index
    %15 = vector.load %arg5[%c0_10, %c0_11, %c384] : memref<16x12x1152xbf16, #tpu.memory_space<vmem>>, vector<16x12x128xbf16>
    tpu.vector_store %arg5[%c0_10, %c0_11, %c384], %14 {strides = array<i32>} : memref<16x12x1152xbf16, #tpu.memory_space<vmem>>, vector<16x12x128xbf16>,
    %16 = vector.extract_strided_slice %2 {offsets = [0, 1, 0, 0], sizes = [2, 8, 12, 128], strides = [1, 1, 1, 1]} : vector<2x10x12x128xbf16> to vector<2x8x12x128xbf16>
    %17 = vector.shape_cast %16 : vector<2x8x12x128xbf16> to vector<16x12x128xbf16>
    %c0_12 = arith.constant 0 : index
    %c0_13 = arith.constant 0 : index
    %c512 = arith.constant 512 : index
    %18 = vector.load %arg5[%c0_12, %c0_13, %c512] : memref<16x12x1152xbf16, #tpu.memory_space<vmem>>, vector<16x12x128xbf16>
    tpu.vector_store %arg5[%c0_12, %c0_13, %c512], %17 {strides = array<i32>} : memref<16x12x1152xbf16, #tpu.memory_space<vmem>>, vector<16x12x128xbf16>,
    %19 = vector.extract_strided_slice %3 {offsets = [0, 1, 0, 0], sizes = [2, 8, 12, 128], strides = [1, 1, 1, 1]} : vector<2x10x12x128xbf16> to vector<2x8x12x128xbf16>
    %20 = vector.shape_cast %19 : vector<2x8x12x128xbf16> to vector<16x12x128xbf16>
    %c0_14 = arith.constant 0 : index
    %c0_15 = arith.constant 0 : index
    %c640 = arith.constant 640 : index
    %21 = vector.load %arg5[%c0_14, %c0_15, %c640] : memref<16x12x1152xbf16, #tpu.memory_space<vmem>>, vector<16x12x128xbf16>
    tpu.vector_store %arg5[%c0_14, %c0_15, %c640], %20 {strides = array<i32>} : memref<16x12x1152xbf16, #tpu.memory_space<vmem>>, vector<16x12x128xbf16>,
    %22 = vector.extract_strided_slice %1 {offsets = [0, 2, 0, 0], sizes = [2, 8, 12, 128], strides = [1, 1, 1, 1]} : vector<2x10x12x128xbf16> to vector<2x8x12x128xbf16>
    %23 = vector.shape_cast %22 : vector<2x8x12x128xbf16> to vector<16x12x128xbf16>
    %c0_16 = arith.constant 0 : index
    %c0_17 = arith.constant 0 : index
    %c768 = arith.constant 768 : index
    %24 = vector.load %arg5[%c0_16, %c0_17, %c768] : memref<16x12x1152xbf16, #tpu.memory_space<vmem>>, vector<16x12x128xbf16>
    tpu.vector_store %arg5[%c0_16, %c0_17, %c768], %23 {strides = array<i32>} : memref<16x12x1152xbf16, #tpu.memory_space<vmem>>, vector<16x12x128xbf16>,
    %25 = vector.extract_strided_slice %2 {offsets = [0, 2, 0, 0], sizes = [2, 8, 12, 128], strides = [1, 1, 1, 1]} : vector<2x10x12x128xbf16> to vector<2x8x12x128xbf16>
    %26 = vector.shape_cast %25 : vector<2x8x12x128xbf16> to vector<16x12x128xbf16>
    %c0_18 = arith.constant 0 : index
    %c0_19 = arith.constant 0 : index
    %c896 = arith.constant 896 : index
    %27 = vector.load %arg5[%c0_18, %c0_19, %c896] : memref<16x12x1152xbf16, #tpu.memory_space<vmem>>, vector<16x12x128xbf16>
    tpu.vector_store %arg5[%c0_18, %c0_19, %c896], %26 {strides = array<i32>} : memref<16x12x1152xbf16, #tpu.memory_space<vmem>>, vector<16x12x128xbf16>,
    %28 = vector.extract_strided_slice %3 {offsets = [0, 2, 0, 0], sizes = [2, 8, 12, 128], strides = [1, 1, 1, 1]} : vector<2x10x12x128xbf16> to vector<2x8x12x128xbf16>
    %29 = vector.shape_cast %28 : vector<2x8x12x128xbf16> to vector<16x12x128xbf16>
    %c0_20 = arith.constant 0 : index
    %c0_21 = arith.constant 0 : index
    %c1024 = arith.constant 1024 : index
    %30 = vector.load %arg5[%c0_20, %c0_21, %c1024] : memref<16x12x1152xbf16, #tpu.memory_space<vmem>>, vector<16x12x128xbf16>
    tpu.vector_store %arg5[%c0_20, %c0_21, %c1024], %29 {strides = array<i32>} : memref<16x12x1152xbf16, #tpu.memory_space<vmem>>, vector<16x12x128xbf16>,
    %c0_22 = arith.constant 0 : index
    %c0_23 = arith.constant 0 : index
    %c0_24 = arith.constant 0 : index
    %31 = vector.load %arg5[%c0_22, %c0_23, %c0_24] : memref<16x12x1152xbf16, #tpu.memory_space<vmem>>, vector<16x12x1152xbf16>
    %c0_25 = arith.constant 0 : index
    %c0_26 = arith.constant 0 : index
    %32 = vector.load %arg2[%c0_25, %c0_26] : memref<1152x128xbf16, #tpu.memory_space<vmem>>, vector<1152x128xbf16>
    %cst = arith.constant dense<0.000000e+00> : vector<16x12x128xf32>
    %33 = tpu.matmul %31, %32, %cst {dimension_numbers = #tpu.dot_dimension_numbers<[2], [0], [0, 1], [1], [0, 0, 0, 1, 1, 1], [], []>} : vector<16x12x1152xbf16>, vector<1152x128xbf16>, vector<16x12x128xf32> -> vector<16x12x128xf32>
    %c0_27 = arith.constant 0 : index
    %c0_28 = arith.constant 0 : index
    %34 = vector.load %arg3[%c0_27, %c0_28] : memref<1x128xf32, #tpu.memory_space<vmem>>, vector<1x128xf32>
    %35 = vector.shape_cast %34 : vector<1x128xf32> to vector<1x1x128xf32>
    %36 = vector.broadcast %35 : vector<1x1x128xf32> to vector<16x12x128xf32>
    %37 = arith.addf %33, %36 : vector<16x12x128xf32>
    %cst_29 = arith.constant 0.000000e+00 : f32
    %38 = vector.broadcast %cst_29 : f32 to vector<16x12x128xf32>
    %39 = arith.maximumf %37, %38 : vector<16x12x128xf32>
    %40 = vector.shape_cast %39 : vector<16x12x128xf32> to vector<2x4x2x12x128xf32>
    %41 = vector.extract_strided_slice %40 {offsets = [0, 0, 0, 0, 0], sizes = [2, 4, 1, 12, 128], strides = [1, 1, 1, 1, 1]} : vector<2x4x2x12x128xf32> to vector<2x4x1x12x128xf32>
    %42 = vector.shape_cast %41 : vector<2x4x1x12x128xf32> to vector<2x4x12x128xf32>
    %43 = vector.extract_strided_slice %40 {offsets = [0, 0, 1, 0, 0], sizes = [2, 4, 1, 12, 128], strides = [1, 1, 1, 1, 1]} : vector<2x4x2x12x128xf32> to vector<2x4x1x12x128xf32>
    %44 = vector.shape_cast %43 : vector<2x4x1x12x128xf32> to vector<2x4x12x128xf32>
    %45 = arith.maximumf %42, %44 : vector<2x4x12x128xf32>
    %46 = vector.shape_cast %45 : vector<2x4x12x128xf32> to vector<8x12x128xf32>
    %c0_30 = arith.constant 0 : index
    %c0_31 = arith.constant 0 : index
    %c0_32 = arith.constant 0 : index
    %47 = vector.load %arg6[%c0_30, %c0_31, %c0_32] : memref<8x12x128xf32, #tpu.memory_space<vmem>>, vector<8x12x128xf32>
    tpu.vector_store %arg6[%c0_30, %c0_31, %c0_32], %46 {strides = array<i32>} : memref<8x12x128xf32, #tpu.memory_space<vmem>>, vector<8x12x128xf32>,
    %c0_33 = arith.constant 0 : index
    %c0_34 = arith.constant 0 : index
    %c0_35 = arith.constant 0 : index
    %48 = tpu.strided_load %arg6[%c0_33, %c0_34, %c0_35] {strides = array<i32: 1, 2, 1>} : memref<8x12x128xf32, #tpu.memory_space<vmem>>, vector<8x6x128xf32>
    %c0_36 = arith.constant 0 : index
    %c1 = arith.constant 1 : index
    %c0_37 = arith.constant 0 : index
    %49 = tpu.strided_load %arg6[%c0_36, %c1, %c0_37] {strides = array<i32: 1, 2, 1>} : memref<8x12x128xf32, #tpu.memory_space<vmem>>, vector<8x6x128xf32>
    %50 = arith.maximumf %48, %49 : vector<8x6x128xf32>
    %51 = vector.shape_cast %50 : vector<8x6x128xf32> to vector<2x4x6x128xf32>
    %52 = arith.truncf %51 : vector<2x4x6x128xf32> to vector<2x4x6x128xbf16>
    %c0_38 = arith.constant 0 : index
    %c0_39 = arith.constant 0 : index
    %c0_40 = arith.constant 0 : index
    %c0_41 = arith.constant 0 : index
    %c0_42 = arith.constant 0 : index
    %53 = vector.load %arg4[%c0_38, %c0_39, %c0_40, %c0_41, %c0_42] : memref<2x1x4x6x128xbf16, #tpu.memory_space<vmem>>, vector<2x1x4x6x128xbf16>
    %54 = vector.shape_cast %53 : vector<2x1x4x6x128xbf16> to vector<2x4x6x128xbf16>
    %55 = vector.shape_cast %52 : vector<2x4x6x128xbf16> to vector<2x1x4x6x128xbf16>
    tpu.vector_store %arg4[%c0_38, %c0_39, %c0_40, %c0_41, %c0_42], %55 {strides = array<i32>} : memref<2x1x4x6x128xbf16, #tpu.memory_space<vmem>>, vector<2x1x4x6x128xbf16>,
    return
  }
  func.func @transform_0(%arg0: i32) -> (i32, i32, i32, i32) {
    %c0_i32 = arith.constant 0 : i32
    %c0_i32_0 = arith.constant 0 : i32
    %c0_i32_1 = arith.constant 0 : i32
    %c0_i32_2 = arith.constant 0 : i32
    %c0_i32_3 = arith.constant 0 : i32
    return %c0_i32, %c0_i32_0, %c0_i32_1, %c0_i32_2 : i32, i32, i32, i32
  }
  func.func @transform_1(%arg0: i32) -> (i32, i32) {
    %c0_i32 = arith.constant 0 : i32
    %c0_i32_0 = arith.constant 0 : i32
    return %c0_i32, %arg0 : i32, i32
  }
  func.func @transform_2(%arg0: i32) -> (i32, i32) {
    %c0_i32 = arith.constant 0 : i32
    %c0_i32_0 = arith.constant 0 : i32
    return %c0_i32, %arg0 : i32, i32
  }
  func.func @transform_3(%arg0: i32) -> (i32, i32, i32, i32, i32) {
    %c0_i32 = arith.constant 0 : i32
    %c0_i32_0 = arith.constant 0 : i32
    %c0_i32_1 = arith.constant 0 : i32
    %c0_i32_2 = arith.constant 0 : i32
    %c0_i32_3 = arith.constant 0 : i32
    return %c0_i32, %arg0, %c0_i32_0, %c0_i32_1, %c0_i32_2 : i32, i32, i32, i32, i32
  }
}

module attributes {stable_mosaic.version = 11 : i64} {
  func.func @fc_kernel(%arg0: i32, %arg1: memref<2x3072xbf16, #tpu.memory_space<vmem>>, %arg2: memref<10x3072xbf16, #tpu.memory_space<vmem>>, %arg3: memref<1x10xf32, #tpu.memory_space<vmem>>, %arg4: memref<2x10xf32, #tpu.memory_space<vmem>>) attributes {dimension_semantics = [#tpu.dimension_semantics<arbitrary>], iteration_bounds = array<i64: 1>, scalar_prefetch = 0 : i64, scratch_operands = 0 : i64, tpu.core_type = #tpu.core_type<tc>, window_params = [{pipeline_mode = #tpu.pipeline_mode<synchronous>, transform_indices = @transform_0, window_bounds = array<i64: 2, 3072>}, {pipeline_mode = #tpu.pipeline_mode<synchronous>, transform_indices = @transform_1, window_bounds = array<i64: 10, 3072>}, {pipeline_mode = #tpu.pipeline_mode<synchronous>, transform_indices = @transform_2, window_bounds = array<i64: 1, 10>}, {pipeline_mode = #tpu.pipeline_mode<synchronous>, transform_indices = @transform_3, window_bounds = array<i64: 2, 10>}]} {
    %c0 = arith.constant 0 : index
    %c0_0 = arith.constant 0 : index
    %0 = vector.load %arg1[%c0, %c0_0] : memref<2x3072xbf16, #tpu.memory_space<vmem>>, vector<2x3072xbf16>
    %c0_1 = arith.constant 0 : index
    %c0_2 = arith.constant 0 : index
    %1 = vector.load %arg2[%c0_1, %c0_2] : memref<10x3072xbf16, #tpu.memory_space<vmem>>, vector<10x3072xbf16>
    %cst = arith.constant dense<0.000000e+00> : vector<2x10xf32>
    %2 = tpu.matmul %0, %1, %cst {dimension_numbers = #tpu.dot_dimension_numbers<[1], [1], [0], [0], [0, 0, 1, 0], [], []>} : vector<2x3072xbf16>, vector<10x3072xbf16>, vector<2x10xf32> -> vector<2x10xf32>
    %c0_3 = arith.constant 0 : index
    %c0_4 = arith.constant 0 : index
    %3 = vector.load %arg3[%c0_3, %c0_4] : memref<1x10xf32, #tpu.memory_space<vmem>>, vector<1x10xf32>
    %4 = vector.broadcast %3 : vector<1x10xf32> to vector<2x10xf32>
    %5 = arith.addf %2, %4 : vector<2x10xf32>
    %c0_5 = arith.constant 0 : index
    %c0_6 = arith.constant 0 : index
    %6 = vector.load %arg4[%c0_5, %c0_6] : memref<2x10xf32, #tpu.memory_space<vmem>>, vector<2x10xf32>
    tpu.vector_store %arg4[%c0_5, %c0_6], %5 {strides = array<i32>} : memref<2x10xf32, #tpu.memory_space<vmem>>, vector<2x10xf32>,
    return
  }
  func.func @transform_0(%arg0: i32) -> (i32, i32) {
    %c0_i32 = arith.constant 0 : i32
    %c0_i32_0 = arith.constant 0 : i32
    %c0_i32_1 = arith.constant 0 : i32
    return %c0_i32, %c0_i32_0 : i32, i32
  }
  func.func @transform_1(%arg0: i32) -> (i32, i32) {
    %c0_i32 = arith.constant 0 : i32
    %c0_i32_0 = arith.constant 0 : i32
    %c0_i32_1 = arith.constant 0 : i32
    return %c0_i32, %c0_i32_0 : i32, i32
  }
  func.func @transform_2(%arg0: i32) -> (i32, i32) {
    %c0_i32 = arith.constant 0 : i32
    %c0_i32_0 = arith.constant 0 : i32
    %c0_i32_1 = arith.constant 0 : i32
    return %c0_i32, %c0_i32_0 : i32, i32
  }
  func.func @transform_3(%arg0: i32) -> (i32, i32) {
    %c0_i32 = arith.constant 0 : i32
    %c0_i32_0 = arith.constant 0 : i32
    %c0_i32_1 = arith.constant 0 : i32
    return %c0_i32, %c0_i32_0 : i32, i32
  }
}

</mosaic_0001>

<llo_original>
// kernel: frozen_densenet_esc50_forward.3
$region0: #{frozen_densenet_esc50_forward.3}
  #allocation0 [shape = 'u32[]', space=smem, size = 0x4, offset = 0x4, fixed_abs, tag = 'smem constant byte address 0x4 - core index']
  #allocation1 [shape = 'u32[144,128]{1,0:T(1,128)}', space=vmem, size = 0x12000, scoped, tag = 'internal scratch']
  %s0 = inlined_call_operand.vmem [shape: bf16[2,3072], index: 0, kind: input, shape index: {}]
  %s1 = inlined_call_operand.vmem [shape: bf16[10,3072], index: 1, kind: input, shape index: {}]
  %s2 = inlined_call_operand.vmem [shape: f32[1,10], index: 2, kind: input, shape index: {}]
  %s3 = inlined_call_operand.hbm [shape: f32[2,10], index: 3, kind: output, shape index: {}]
  %s4 = sld [smem:[#allocation0]]
  $region22: #{frozen_densenet_esc50_forward.3} parent=0
    _
  %s6 = ssub.s32 1, %s4
  %s7 = scalar_select 0, %s6, %s4
  $region1: #{frozen_densenet_esc50_forward.3} parent=0
    #allocation2 [shape = 'u8[1024]{0}', space=vmem, size = 0x400, scoped, tag = 'output window, operand 0, single buffered']
    #allocation3 [shape = 's32[1]{0}', space=sflag, size = 0x4, scoped, tag = 'scoped memory for frozen_densenet_esc50_forward.3']
    %8 = vsyncpa [#allocation3], 0
    // Predicated region
    $region2: #{frozen_densenet_esc50_forward.3} parent=1 // pred_check
      _
    $region3: #{frozen_densenet_esc50_forward.3} parent=1 // pred_check_branch
      %10 = sbr.rel (0) target = $region5
    $region4: #{frozen_densenet_esc50_forward.3} parent=1 // pred_region
      _
    $region5: #{frozen_densenet_esc50_forward.3} parent=1 // pred_fallthru
      _
    // Predicated region
    $region6: #{frozen_densenet_esc50_forward.3} parent=1 // pred_check
      _
    $region7: #{frozen_densenet_esc50_forward.3} parent=1 // pred_check_branch
      %12 = sbr.rel (0) target = $region9
    $region8: #{frozen_densenet_esc50_forward.3} parent=1 // pred_region
      _
    $region9: #{frozen_densenet_esc50_forward.3} parent=1 // pred_fallthru
      _
    // Predicated region
    $region10: #{frozen_densenet_esc50_forward.3} parent=1 // pred_check
      _
    $region11: #{frozen_densenet_esc50_forward.3} parent=1 // pred_check_branch
      %14 = sbr.rel (0) target = $region13
    $region12: #{frozen_densenet_esc50_forward.3} parent=1 // pred_region
      _
    $region13: #{frozen_densenet_esc50_forward.3} parent=1 // pred_fallthru
      _
    %v16 = vld [vmem:[%s0] sm:$0xff]
    %v17 = vld [vmem:[%s0 + $0x8] sm:$0xff]
    %v18 = vld [vmem:[%s0 + $0x10] sm:$0xff]
    %v19 = vld [vmem:[%s1] sm:$0xff]
    %v20 = vld [vmem:[%s1 + $0x8] sm:$0xff]
    %v21 = vld [vmem:[%s1 + $0x10] sm:$0xff]
    %v22 = vld [vmem:[%s1 + $0x18] sm:$0xff]
    %v23 = vld [vmem:[%s1 + $0x20] sm:$0xff]
    %v24 = vld [vmem:[%s1 + $0x28] sm:$0xff]
    %v25 = vld [vmem:[%s1 + $0x30] sm:$0xff]
    %v26 = vld [vmem:[%s1 + $0x38] sm:$0xff]
    %v27 = vld [vmem:[%s1 + $0x40] sm:$0xff]
    %v28 = vld [vmem:[%s1 + $0x48] sm:$0xff]
    %v29 = vld [vmem:[%s1 + $0x50] sm:$0xff]
    %v30 = vld [vmem:[%s1 + $0x58] sm:$0xff]
    %v31 = vld [vmem:[%s1 + $0x60] sm:$0x11]
    %v32 = vld [vmem:[%s1 + $0x68] sm:$0x11]
    %v33 = vld [vmem:[%s1 + $0x70] sm:$0x11]
    %v34 = vld [vmem:[%s1 + $0x78] sm:$0x11]
    %v35 = vld [vmem:[%s1 + $0x80] sm:$0x11]
    %v36 = vld [vmem:[%s1 + $0x88] sm:$0x11]
    %v37 = vld [vmem:[%s1 + $0x90] sm:$0x11]
    %v38 = vld [vmem:[%s1 + $0x98] sm:$0x11]
    %v39 = vld [vmem:[%s1 + $0xa0] sm:$0x11]
    %v40 = vld [vmem:[%s1 + $0xa8] sm:$0x11]
    %v41 = vld [vmem:[%s1 + $0xb0] sm:$0x11]
    %v42 = vld [vmem:[%s1 + $0xb8] sm:$0x11]
    %v43 = vld [vmem:[%s2] sm:$0x1]
    %v45 = vlaneseq
    %v46 = vshrl.u32 %v45, 7
    %v47 = vsub.s32 0, %v46
    %v48 = vrot.slane %v43, %v47
    %v53 = vcombine.high %v16, %v16
    %v55 = vunpack.c.l.s4 1966171168
    %v56 = vunpack.c.0.s8 %v55
    %v57 = vlaneseq
    %v58 = vshrl.u32 %v57, 7
    %v59 = vsub.s32 %v56, %v58
    %v60 = vrot.slane %v16, %v59
    %v62 = vunpack.c.l.s4 1966171168
    %v63 = vunpack.c.0.s8 %v62
    %v64 = vlaneseq
    %v65 = vshrl.u32 %v64, 7
    %v66 = vsub.s32 %v63, %v65
    %v67 = vrot.slane %v53, %v66
    %v68 = vcombine.high %v60, %v60
    %v69 = vcombine.high %v67, %v67
    %v71 = vunpack.c.l.s4 1966171168
    %v72 = vunpack.c.0.s8 %v71
    %v73 = vlaneseq
    %v74 = vshrl.u32 %v73, 7
    %v75 = vsub.s32 %v72, %v74
    %v76 = vrot.slane %v60, %v75
    %v78 = vunpack.c.l.s4 1966171168
    %v79 = vunpack.c.0.s8 %v78
    %v80 = vlaneseq
    %v81 = vshrl.u32 %v80, 7
    %v82 = vsub.s32 %v79, %v81
    %v83 = vrot.slane %v67, %v82
    %v85 = vunpack.c.l.s4 1966171168
    %v86 = vunpack.c.0.s8 %v85
    %v87 = vlaneseq
    %v88 = vshrl.u32 %v87, 7
    %v89 = vsub.s32 %v86, %v88
    %v90 = vrot.slane %v68, %v89
    %v92 = vunpack.c.l.s4 1966171168
    %v93 = vunpack.c.0.s8 %v92
    %v94 = vlaneseq
    %v95 = vshrl.u32 %v94, 7
    %v96 = vsub.s32 %v93, %v95
    %v97 = vrot.slane %v69, %v96
    %v98 = vcombine.high %v76, %v76
    %v99 = vcombine.high %v83, %v83
    %v100 = vcombine.high %v90, %v90
    %v101 = vcombine.high %v97, %v97
    %v102 = vcombine.high %v17, %v17
    %v104 = vunpack.c.l.s4 1966171168
    %v105 = vunpack.c.0.s8 %v104
    %v106 = vlaneseq
    %v107 = vshrl.u32 %v106, 7
    %v108 = vsub.s32 %v105, %v107
    %v109 = vrot.slane %v17, %v108
    %v111 = vunpack.c.l.s4 1966171168
    %v112 = vunpack.c.0.s8 %v111
    %v113 = vlaneseq
    %v114 = vshrl.u32 %v113, 7
    %v115 = vsub.s32 %v112, %v114
    %v116 = vrot.slane %v102, %v115
    %v117 = vcombine.high %v109, %v109
    %v118 = vcombine.high %v116, %v116
    %v120 = vunpack.c.l.s4 1966171168
    %v121 = vunpack.c.0.s8 %v120
    %v122 = vlaneseq
    %v123 = vshrl.u32 %v122, 7
    %v124 = vsub.s32 %v121, %v123
    %v125 = vrot.slane %v109, %v124
    %v127 = vunpack.c.l.s4 1966171168
    %v128 = vunpack.c.0.s8 %v127
    %v129 = vlaneseq
    %v130 = vshrl.u32 %v129, 7
    %v131 = vsub.s32 %v128, %v130
    %v132 = vrot.slane %v116, %v131
    %v134 = vunpack.c.l.s4 1966171168
    %v135 = vunpack.c.0.s8 %v134
    %v136 = vlaneseq
    %v137 = vshrl.u32 %v136, 7
    %v138 = vsub.s32 %v135, %v137
    %v139 = vrot.slane %v117, %v138
    %v141 = vunpack.c.l.s4 1966171168
    %v142 = vunpack.c.0.s8 %v141
    %v143 = vlaneseq
    %v144 = vshrl.u32 %v143, 7
    %v145 = vsub.s32 %v142, %v144
    %v146 = vrot.slane %v118, %v145
    %v147 = vcombine.high %v125, %v125
    %v148 = vcombine.high %v132, %v132
    %v149 = vcombine.high %v139, %v139
    %v150 = vcombine.high %v146, %v146
    %v151 = vcombine.high %v18, %v18
    %v153 = vunpack.c.l.s4 1966171168
    %v154 = vunpack.c.0.s8 %v153
    %v155 = vlaneseq
    %v156 = vshrl.u32 %v155, 7
    %v157 = vsub.s32 %v154, %v156
    %v158 = vrot.slane %v18, %v157
    %v160 = vunpack.c.l.s4 1966171168
    %v161 = vunpack.c.0.s8 %v160
    %v162 = vlaneseq
    %v163 = vshrl.u32 %v162, 7
    %v164 = vsub.s32 %v161, %v163
    %v165 = vrot.slane %v151, %v164
    %v166 = vcombine.high %v158, %v158
    %v167 = vcombine.high %v165, %v165
    %v169 = vunpack.c.l.s4 1966171168
    %v170 = vunpack.c.0.s8 %v169
    %v171 = vlaneseq
    %v172 = vshrl.u32 %v171, 7
    %v173 = vsub.s32 %v170, %v172
    %v174 = vrot.slane %v158, %v173
    %v176 = vunpack.c.l.s4 1966171168
    %v177 = vunpack.c.0.s8 %v176
    %v178 = vlaneseq
    %v179 = vshrl.u32 %v178, 7
    %v180 = vsub.s32 %v177, %v179
    %v181 = vrot.slane %v165, %v180
    %v183 = vunpack.c.l.s4 1966171168
    %v184 = vunpack.c.0.s8 %v183
    %v185 = vlaneseq
    %v186 = vshrl.u32 %v185, 7
    %v187 = vsub.s32 %v184, %v186
    %v188 = vrot.slane %v166, %v187
    %v190 = vunpack.c.l.s4 1966171168
    %v191 = vunpack.c.0.s8 %v190
    %v192 = vlaneseq
    %v193 = vshrl.u32 %v192, 7
    %v194 = vsub.s32 %v191, %v193
    %v195 = vrot.slane %v167, %v194
    %v196 = vcombine.high %v174, %v174
    %v197 = vcombine.high %v181, %v181
    %v198 = vcombine.high %v188, %v188
    %v199 = vcombine.high %v195, %v195
    %v248 = vunpack.c.l.b16 %v19
    %v249 = vunpack.c.h.b16 %v19
    %v250 = vunpack.c.l.b16 %v20
    %v251 = vunpack.c.h.b16 %v20
    %v252 = vunpack.c.l.b16 %v21
    %v253 = vunpack.c.h.b16 %v21
    %v254 = vunpack.c.l.b16 %v22
    %v255 = vunpack.c.h.b16 %v22
    %v256 = vunpack.c.l.b16 %v23
    %v257 = vunpack.c.h.b16 %v23
    %v258 = vunpack.c.l.b16 %v24
    %v259 = vunpack.c.h.b16 %v24
    %v260 = vunpack.c.l.b16 %v25
    %v261 = vunpack.c.h.b16 %v25
    %v262 = vunpack.c.l.b16 %v26
    %v263 = vunpack.c.h.b16 %v26
    %v264 = vunpack.c.l.b16 %v27
    %v265 = vunpack.c.h.b16 %v27
    %v266 = vunpack.c.l.b16 %v28
    %v267 = vunpack.c.h.b16 %v28
    %v268 = vunpack.c.l.b16 %v29
    %v269 = vunpack.c.h.b16 %v29
    %v270 = vunpack.c.l.b16 %v30
    %v271 = vunpack.c.h.b16 %v30
    %v272 = vunpack.c.l.b16 %v31
    %v273 = vunpack.c.h.b16 %v31
    %v274 = vunpack.c.l.b16 %v32
    %v275 = vunpack.c.h.b16 %v32
    %v276 = vunpack.c.l.b16 %v33
    %v277 = vunpack.c.h.b16 %v33
    %v278 = vunpack.c.l.b16 %v34
    %v279 = vunpack.c.h.b16 %v34
    %v280 = vunpack.c.l.b16 %v35
    %v281 = vunpack.c.h.b16 %v35
    %v282 = vunpack.c.l.b16 %v36
    %v283 = vunpack.c.h.b16 %v36
    %v284 = vunpack.c.l.b16 %v37
    %v285 = vunpack.c.h.b16 %v37
    %v286 = vunpack.c.l.b16 %v38
    %v287 = vunpack.c.h.b16 %v38
    %v288 = vunpack.c.l.b16 %v39
    %v289 = vunpack.c.h.b16 %v39
    %v290 = vunpack.c.l.b16 %v40
    %v291 = vunpack.c.h.b16 %v40
    %v292 = vunpack.c.l.b16 %v41
    %v293 = vunpack.c.h.b16 %v41
    %v294 = vunpack.c.l.b16 %v42
    %v295 = vunpack.c.h.b16 %v42
    %v296 = vpack.c.b16 %v272, %v248
    %v297 = vpack.c.b16 %v273, %v249
    %v298 = vpack.c.b16 %v274, %v250
    %v299 = vpack.c.b16 %v275, %v251
    %v300 = vpack.c.b16 %v276, %v252
    %v301 = vpack.c.b16 %v277, %v253
    %v302 = vpack.c.b16 %v278, %v254
    %v303 = vpack.c.b16 %v279, %v255
    %v304 = vpack.c.b16 %v280, %v256
    %v305 = vpack.c.b16 %v281, %v257
    %v306 = vpack.c.b16 %v282, %v258
    %v307 = vpack.c.b16 %v283, %v259
    %v308 = vpack.c.b16 %v284, %v260
    %v309 = vpack.c.b16 %v285, %v261
    %v310 = vpack.c.b16 %v286, %v262
    %v311 = vpack.c.b16 %v287, %v263
    %v312 = vpack.c.b16 %v288, %v264
    %v313 = vpack.c.b16 %v289, %v265
    %v314 = vpack.c.b16 %v290, %v266
    %v315 = vpack.c.b16 %v291, %v267
    %v316 = vpack.c.b16 %v292, %v268
    %v317 = vpack.c.b16 %v293, %v269
    %v318 = vpack.c.b16 %v294, %v270
    %v319 = vpack.c.b16 %v295, %v271
    %344 = vmatprep.subr.bf16.mxu0 0
    %345 = vmatpush1.bf16.xpose.msra.mxu0 0
    %346 = vmatprep.subr.bf16.mxu0 0
    %347 = vmatpush1.bf16.xpose.msra.mxu0 0
    %348 = vmatprep.subr.bf16.mxu0 0
    %349 = vmatpush1.bf16.xpose.msra.mxu0 0
    %350 = vmatprep.subr.bf16.mxu0 0
    %351 = vmatpush1.bf16.xpose.msra.mxu0 0
    %352 = vmatprep.subr.bf16.mxu0 0
    %353 = vmatpush1.bf16.xpose.msra.mxu0 0
    %354 = vmatprep.subr.bf16.mxu0 0
    %355 = vmatpush1.bf16.xpose.msra.mxu0 0
    %356 = vmatprep.subr.bf16.mxu0 0
    %357 = vmatpush1.bf16.xpose.msra.mxu0 0
    %358 = vmatprep.subr.bf16.mxu0 %v297
    %359 = vmatpush1.bf16.xpose.msra.mxu0 %v296
    %360 = vmatprep.subr.bf16.mxu0 0
    %361 = vmatpush2.bf16.xpose.msra.mxu0 0
    %362 = vmatprep.subr.bf16.mxu0 0
    %363 = vmatpush2.bf16.xpose.msra.mxu0 0
    %364 = vmatprep.subr.bf16.mxu0 0
    %365 = vmatpush2.bf16.xpose.msra.mxu0 0
    %366 = vmatprep.subr.bf16.mxu0 0
    %367 = vmatpush2.bf16.xpose.msra.mxu0 0
    %368 = vmatprep.subr.bf16.mxu0 0
    %369 = vmatpush2.bf16.xpose.msra.mxu0 0
    %370 = vmatprep.subr.bf16.mxu0 0
    %371 = vmatpush2.bf16.xpose.msra.mxu0 0
    %372 = vmatprep.subr.bf16.mxu0 0
    %373 = vmatpush2.bf16.xpose.msra.mxu0 0
    %374 = vmatprep.subr.bf16.mxu0 0
    %375 = vmatpush2.bf16.xpose.msra.mxu0 0
    %376 = vmatprep.mubr.bf16.mxu0 %v90
    %377 = vmatmul.mubr.bf16.gmra.mxu0 %v76
    %v378 = vpop.f32.mrf.mxu0
    %v379 = vadd.f32 %v48, %v378
    %v380 = vpop.f32.mrf.mxu0
    %v381 = vpop.f32.mrf.mxu0
    %v382 = vpop.f32.mrf.mxu0
    %383 = vdwg.mxu0
    %384 = vmatprep.subr.bf16.mxu0 0
    %385 = vmatpush1.bf16.xpose.msra.mxu0 0
    %386 = vmatprep.subr.bf16.mxu0 0
    %387 = vmatpush1.bf16.xpose.msra.mxu0 0
    %388 = vmatprep.subr.bf16.mxu0 0
    %389 = vmatpush1.bf16.xpose.msra.mxu0 0
    %390 = vmatprep.subr.bf16.mxu0 0
    %391 = vmatpush1.bf16.xpose.msra.mxu0 0
    %392 = vmatprep.subr.bf16.mxu0 0
    %393 = vmatpush1.bf16.xpose.msra.mxu0 0
    %394 = vmatprep.subr.bf16.mxu0 0
    %395 = vmatpush1.bf16.xpose.msra.mxu0 0
    %396 = vmatprep.subr.bf16.mxu0 0
    %397 = vmatpush1.bf16.xpose.msra.mxu0 0
    %398 = vmatprep.subr.bf16.mxu0 %v299
    %399 = vmatpush1.bf16.xpose.msra.mxu0 %v298
    %400 = vmatprep.subr.bf16.mxu0 0
    %401 = vmatpush2.bf16.xpose.msra.mxu0 0
    %402 = vmatprep.subr.bf16.mxu0 0
    %403 = vmatpush2.bf16.xpose.msra.mxu0 0
    %404 = vmatprep.subr.bf16.mxu0 0
    %405 = vmatpush2.bf16.xpose.msra.mxu0 0
    %406 = vmatprep.subr.bf16.mxu0 0
    %407 = vmatpush2.bf16.xpose.msra.mxu0 0
    %408 = vmatprep.subr.bf16.mxu0 0
    %409 = vmatpush2.bf16.xpose.msra.mxu0 0
    %410 = vmatprep.subr.bf16.mxu0 0
    %411 = vmatpush2.bf16.xpose.msra.mxu0 0
    %412 = vmatprep.subr.bf16.mxu0 0
    %413 = vmatpush2.bf16.xpose.msra.mxu0 0
    %414 = vmatprep.subr.bf16.mxu0 0
    %415 = vmatpush2.bf16.xpose.msra.mxu0 0
    %416 = vmatprep.mubr.bf16.mxu0 %v100
    %417 = vmatmul.mubr.bf16.gmra.mxu0 %v98
    %v418 = vpop.f32.mrf.mxu0
    %v419 = vadd.f32 %v379, %v418
    %v420 = vpop.f32.mrf.mxu0
    %v421 = vpop.f32.mrf.mxu0
    %v422 = vpop.f32.mrf.mxu0
    %423 = vdwg.mxu0
    %424 = vmatprep.subr.bf16.mxu0 0
    %425 = vmatpush1.bf16.xpose.msra.mxu0 0
    %426 = vmatprep.subr.bf16.mxu0 0
    %427 = vmatpush1.bf16.xpose.msra.mxu0 0
    %428 = vmatprep.subr.bf16.mxu0 0
    %429 = vmatpush1.bf16.xpose.msra.mxu0 0
    %430 = vmatprep.subr.bf16.mxu0 0
    %431 = vmatpush1.bf16.xpose.msra.mxu0 0
    %432 = vmatprep.subr.bf16.mxu0 0
    %433 = vmatpush1.bf16.xpose.msra.mxu0 0
    %434 = vmatprep.subr.bf16.mxu0 0
    %435 = vmatpush1.bf16.xpose.msra.mxu0 0
    %436 = vmatprep.subr.bf16.mxu0 0
    %437 = vmatpush1.bf16.xpose.msra.mxu0 0
    %438 = vmatprep.subr.bf16.mxu0 %v301
    %439 = vmatpush1.bf16.xpose.msra.mxu0 %v300
    %440 = vmatprep.subr.bf16.mxu0 0
    %441 = vmatpush2.bf16.xpose.msra.mxu0 0
    %442 = vmatprep.subr.bf16.mxu0 0
    %443 = vmatpush2.bf16.xpose.msra.mxu0 0
    %444 = vmatprep.subr.bf16.mxu0 0
    %445 = vmatpush2.bf16.xpose.msra.mxu0 0
    %446 = vmatprep.subr.bf16.mxu0 0
    %447 = vmatpush2.bf16.xpose.msra.mxu0 0
    %448 = vmatprep.subr.bf16.mxu0 0
    %449 = vmatpush2.bf16.xpose.msra.mxu0 0
    %450 = vmatprep.subr.bf16.mxu0 0
    %451 = vmatpush2.bf16.xpose.msra.mxu0 0
    %452 = vmatprep.subr.bf16.mxu0 0
    %453 = vmatpush2.bf16.xpose.msra.mxu0 0
    %454 = vmatprep.subr.bf16.mxu0 0
    %455 = vmatpush2.bf16.xpose.msra.mxu0 0
    %456 = vmatprep.mubr.bf16.mxu0 %v97
    %457 = vmatmul.mubr.bf16.gmra.mxu0 %v83
    %v458 = vpop.f32.mrf.mxu0
    %v459 = vadd.f32 %v419, %v458
    %v460 = vpop.f32.mrf.mxu0
    %v461 = vpop.f32.mrf.mxu0
    %v462 = vpop.f32.mrf.mxu0
    %463 = vdwg.mxu0
    %464 = vmatprep.subr.bf16.mxu0 0
    %465 = vmatpush1.bf16.xpose.msra.mxu0 0
    %466 = vmatprep.subr.bf16.mxu0 0
    %467 = vmatpush1.bf16.xpose.msra.mxu0 0
    %468 = vmatprep.subr.bf16.mxu0 0
    %469 = vmatpush1.bf16.xpose.msra.mxu0 0
    %470 = vmatprep.subr.bf16.mxu0 0
    %471 = vmatpush1.bf16.xpose.msra.mxu0 0
    %472 = vmatprep.subr.bf16.mxu0 0
    %473 = vmatpush1.bf16.xpose.msra.mxu0 0
    %474 = vmatprep.subr.bf16.mxu0 0
    %475 = vmatpush1.bf16.xpose.msra.mxu0 0
    %476 = vmatprep.subr.bf16.mxu0 0
    %477 = vmatpush1.bf16.xpose.msra.mxu0 0
    %478 = vmatprep.subr.bf16.mxu0 %v303
    %479 = vmatpush1.bf16.xpose.msra.mxu0 %v302
    %480 = vmatprep.subr.bf16.mxu0 0
    %481 = vmatpush2.bf16.xpose.msra.mxu0 0
    %482 = vmatprep.subr.bf16.mxu0 0
    %483 = vmatpush2.bf16.xpose.msra.mxu0 0
    %484 = vmatprep.subr.bf16.mxu0 0
    %485 = vmatpush2.bf16.xpose.msra.mxu0 0
    %486 = vmatprep.subr.bf16.mxu0 0
    %487 = vmatpush2.bf16.xpose.msra.mxu0 0
    %488 = vmatprep.subr.bf16.mxu0 0
    %489 = vmatpush2.bf16.xpose.msra.mxu0 0
    %490 = vmatprep.subr.bf16.mxu0 0
    %491 = vmatpush2.bf16.xpose.msra.mxu0 0
    %492 = vmatprep.subr.bf16.mxu0 0
    %493 = vmatpush2.bf16.xpose.msra.mxu0 0
    %494 = vmatprep.subr.bf16.mxu0 0
    %495 = vmatpush2.bf16.xpose.msra.mxu0 0
    %496 = vmatprep.mubr.bf16.mxu0 %v101
    %497 = vmatmul.mubr.bf16.gmra.mxu0 %v99
    %v498 = vpop.f32.mrf.mxu0
    %v499 = vadd.f32 %v459, %v498
    %v500 = vpop.f32.mrf.mxu0
    %v501 = vpop.f32.mrf.mxu0
    %v502 = vpop.f32.mrf.mxu0
    %503 = vdwg.mxu0
    %504 = vmatprep.subr.bf16.mxu0 0
    %505 = vmatpush1.bf16.xpose.msra.mxu0 0
    %506 = vmatprep.subr.bf16.mxu0 0
    %507 = vmatpush1.bf16.xpose.msra.mxu0 0
    %508 = vmatprep.subr.bf16.mxu0 0
    %509 = vmatpush1.bf16.xpose.msra.mxu0 0
    %510 = vmatprep.subr.bf16.mxu0 0
    %511 = vmatpush1.bf16.xpose.msra.mxu0 0
    %512 = vmatprep.subr.bf16.mxu0 0
    %513 = vmatpush1.bf16.xpose.msra.mxu0 0
    %514 = vmatprep.subr.bf16.mxu0 0
    %515 = vmatpush1.bf16.xpose.msra.mxu0 0
    %516 = vmatprep.subr.bf16.mxu0 0
    %517 = vmatpush1.bf16.xpose.msra.mxu0 0
    %518 = vmatprep.subr.bf16.mxu0 %v305
    %519 = vmatpush1.bf16.xpose.msra.mxu0 %v304
    %520 = vmatprep.subr.bf16.mxu0 0
    %521 = vmatpush2.bf16.xpose.msra.mxu0 0
    %522 = vmatprep.subr.bf16.mxu0 0
    %523 = vmatpush2.bf16.xpose.msra.mxu0 0
    %524 = vmatprep.subr.bf16.mxu0 0
    %525 = vmatpush2.bf16.xpose.msra.mxu0 0
    %526 = vmatprep.subr.bf16.mxu0 0
    %527 = vmatpush2.bf16.xpose.msra.mxu0 0
    %528 = vmatprep.subr.bf16.mxu0 0
    %529 = vmatpush2.bf16.xpose.msra.mxu0 0
    %530 = vmatprep.subr.bf16.mxu0 0
    %531 = vmatpush2.bf16.xpose.msra.mxu0 0
    %532 = vmatprep.subr.bf16.mxu0 0
    %533 = vmatpush2.bf16.xpose.msra.mxu0 0
    %534 = vmatprep.subr.bf16.mxu0 0
    %535 = vmatpush2.bf16.xpose.msra.mxu0 0
    %536 = vmatprep.mubr.bf16.mxu0 %v139
    %537 = vmatmul.mubr.bf16.gmra.mxu0 %v125
    %v538 = vpop.f32.mrf.mxu0
    %v539 = vadd.f32 %v499, %v538
    %v540 = vpop.f32.mrf.mxu0
    %v541 = vpop.f32.mrf.mxu0
    %v542 = vpop.f32.mrf.mxu0
    %543 = vdwg.mxu0
    %544 = vmatprep.subr.bf16.mxu0 0
    %545 = vmatpush1.bf16.xpose.msra.mxu0 0
    %546 = vmatprep.subr.bf16.mxu0 0
    %547 = vmatpush1.bf16.xpose.msra.mxu0 0
    %548 = vmatprep.subr.bf16.mxu0 0
    %549 = vmatpush1.bf16.xpose.msra.mxu0 0
    %550 = vmatprep.subr.bf16.mxu0 0
    %551 = vmatpush1.bf16.xpose.msra.mxu0 0
    %552 = vmatprep.subr.bf16.mxu0 0
    %553 = vmatpush1.bf16.xpose.msra.mxu0 0
    %554 = vmatprep.subr.bf16.mxu0 0
    %555 = vmatpush1.bf16.xpose.msra.mxu0 0
    %556 = vmatprep.subr.bf16.mxu0 0
    %557 = vmatpush1.bf16.xpose.msra.mxu0 0
    %558 = vmatprep.subr.bf16.mxu0 %v307
    %559 = vmatpush1.bf16.xpose.msra.mxu0 %v306
    %560 = vmatprep.subr.bf16.mxu0 0
    %561 = vmatpush2.bf16.xpose.msra.mxu0 0
    %562 = vmatprep.subr.bf16.mxu0 0
    %563 = vmatpush2.bf16.xpose.msra.mxu0 0
    %564 = vmatprep.subr.bf16.mxu0 0
    %565 = vmatpush2.bf16.xpose.msra.mxu0 0
    %566 = vmatprep.subr.bf16.mxu0 0
    %567 = vmatpush2.bf16.xpose.msra.mxu0 0
    %568 = vmatprep.subr.bf16.mxu0 0
    %569 = vmatpush2.bf16.xpose.msra.mxu0 0
    %570 = vmatprep.subr.bf16.mxu0 0
    %571 = vmatpush2.bf16.xpose.msra.mxu0 0
    %572 = vmatprep.subr.bf16.mxu0 0
    %573 = vmatpush2.bf16.xpose.msra.mxu0 0
    %574 = vmatprep.subr.bf16.mxu0 0
    %575 = vmatpush2.bf16.xpose.msra.mxu0 0
    %576 = vmatprep.mubr.bf16.mxu0 %v149
    %577 = vmatmul.mubr.bf16.gmra.mxu0 %v147
    %v578 = vpop.f32.mrf.mxu0
    %v579 = vadd.f32 %v539, %v578
    %v580 = vpop.f32.mrf.mxu0
    %v581 = vpop.f32.mrf.mxu0
    %v582 = vpop.f32.mrf.mxu0
    %583 = vdwg.mxu0
    %584 = vmatprep.subr.bf16.mxu0 0
    %585 = vmatpush1.bf16.xpose.msra.mxu0 0
    %586 = vmatprep.subr.bf16.mxu0 0
    %587 = vmatpush1.bf16.xpose.msra.mxu0 0
    %588 = vmatprep.subr.bf16.mxu0 0
    %589 = vmatpush1.bf16.xpose.msra.mxu0 0
    %590 = vmatprep.subr.bf16.mxu0 0
    %591 = vmatpush1.bf16.xpose.msra.mxu0 0
    %592 = vmatprep.subr.bf16.mxu0 0
    %593 = vmatpush1.bf16.xpose.msra.mxu0 0
    %594 = vmatprep.subr.bf16.mxu0 0
    %595 = vmatpush1.bf16.xpose.msra.mxu0 0
    %596 = vmatprep.subr.bf16.mxu0 0
    %597 = vmatpush1.bf16.xpose.msra.mxu0 0
    %598 = vmatprep.subr.bf16.mxu0 %v309
    %599 = vmatpush1.bf16.xpose.msra.mxu0 %v308
    %600 = vmatprep.subr.bf16.mxu0 0
    %601 = vmatpush2.bf16.xpose.msra.mxu0 0
    %602 = vmatprep.subr.bf16.mxu0 0
    %603 = vmatpush2.bf16.xpose.msra.mxu0 0
    %604 = vmatprep.subr.bf16.mxu0 0
    %605 = vmatpush2.bf16.xpose.msra.mxu0 0
    %606 = vmatprep.subr.bf16.mxu0 0
    %607 = vmatpush2.bf16.xpose.msra.mxu0 0
    %608 = vmatprep.subr.bf16.mxu0 0
    %609 = vmatpush2.bf16.xpose.msra.mxu0 0
    %610 = vmatprep.subr.bf16.mxu0 0
    %611 = vmatpush2.bf16.xpose.msra.mxu0 0
    %612 = vmatprep.subr.bf16.mxu0 0
    %613 = vmatpush2.bf16.xpose.msra.mxu0 0
    %614 = vmatprep.subr.bf16.mxu0 0
    %615 = vmatpush2.bf16.xpose.msra.mxu0 0
    %616 = vmatprep.mubr.bf16.mxu0 %v146
    %617 = vmatmul.mubr.bf16.gmra.mxu0 %v132
    %v618 = vpop.f32.mrf.mxu0
    %v619 = vadd.f32 %v579, %v618
    %v620 = vpop.f32.mrf.mxu0
    %v621 = vpop.f32.mrf.mxu0
    %v622 = vpop.f32.mrf.mxu0
    %623 = vdwg.mxu0
    %624 = vmatprep.subr.bf16.mxu0 0
    %625 = vmatpush1.bf16.xpose.msra.mxu0 0
    %626 = vmatprep.subr.bf16.mxu0 0
    %627 = vmatpush1.bf16.xpose.msra.mxu0 0
    %628 = vmatprep.subr.bf16.mxu0 0
    %629 = vmatpush1.bf16.xpose.msra.mxu0 0
    %630 = vmatprep.subr.bf16.mxu0 0
    %631 = vmatpush1.bf16.xpose.msra.mxu0 0
    %632 = vmatprep.subr.bf16.mxu0 0
    %633 = vmatpush1.bf16.xpose.msra.mxu0 0
    %634 = vmatprep.subr.bf16.mxu0 0
    %635 = vmatpush1.bf16.xpose.msra.mxu0 0
    %636 = vmatprep.subr.bf16.mxu0 0
    %637 = vmatpush1.bf16.xpose.msra.mxu0 0
    %638 = vmatprep.subr.bf16.mxu0 %v311
    %639 = vmatpush1.bf16.xpose.msra.mxu0 %v310
    %640 = vmatprep.subr.bf16.mxu0 0
    %641 = vmatpush2.bf16.xpose.msra.mxu0 0
    %642 = vmatprep.subr.bf16.mxu0 0
    %643 = vmatpush2.bf16.xpose.msra.mxu0 0
    %644 = vmatprep.subr.bf16.mxu0 0
    %645 = vmatpush2.bf16.xpose.msra.mxu0 0
    %646 = vmatprep.subr.bf16.mxu0 0
    %647 = vmatpush2.bf16.xpose.msra.mxu0 0
    %648 = vmatprep.subr.bf16.mxu0 0
    %649 = vmatpush2.bf16.xpose.msra.mxu0 0
    %650 = vmatprep.subr.bf16.mxu0 0
    %651 = vmatpush2.bf16.xpose.msra.mxu0 0
    %652 = vmatprep.subr.bf16.mxu0 0
    %653 = vmatpush2.bf16.xpose.msra.mxu0 0
    %654 = vmatprep.subr.bf16.mxu0 0
    %655 = vmatpush2.bf16.xpose.msra.mxu0 0
    %656 = vmatprep.mubr.bf16.mxu0 %v150
    %657 = vmatmul.mubr.bf16.gmra.mxu0 %v148
    %v658 = vpop.f32.mrf.mxu0
    %v659 = vadd.f32 %v619, %v658
    %v660 = vpop.f32.mrf.mxu0
    %v661 = vpop.f32.mrf.mxu0
    %v662 = vpop.f32.mrf.mxu0
    %663 = vdwg.mxu0
    %664 = vmatprep.subr.bf16.mxu0 0
    %665 = vmatpush1.bf16.xpose.msra.mxu0 0
    %666 = vmatprep.subr.bf16.mxu0 0
    %667 = vmatpush1.bf16.xpose.msra.mxu0 0
    %668 = vmatprep.subr.bf16.mxu0 0
    %669 = vmatpush1.bf16.xpose.msra.mxu0 0
    %670 = vmatprep.subr.bf16.mxu0 0
    %671 = vmatpush1.bf16.xpose.msra.mxu0 0
    %672 = vmatprep.subr.bf16.mxu0 0
    %673 = vmatpush1.bf16.xpose.msra.mxu0 0
    %674 = vmatprep.subr.bf16.mxu0 0
    %675 = vmatpush1.bf16.xpose.msra.mxu0 0
    %676 = vmatprep.subr.bf16.mxu0 0
    %677 = vmatpush1.bf16.xpose.msra.mxu0 0
    %678 = vmatprep.subr.bf16.mxu0 %v313
    %679 = vmatpush1.bf16.xpose.msra.mxu0 %v312
    %680 = vmatprep.subr.bf16.mxu0 0
    %681 = vmatpush2.bf16.xpose.msra.mxu0 0
    %682 = vmatprep.subr.bf16.mxu0 0
    %683 = vmatpush2.bf16.xpose.msra.mxu0 0
    %684 = vmatprep.subr.bf16.mxu0 0
    %685 = vmatpush2.bf16.xpose.msra.mxu0 0
    %686 = vmatprep.subr.bf16.mxu0 0
    %687 = vmatpush2.bf16.xpose.msra.mxu0 0
    %688 = vmatprep.subr.bf16.mxu0 0
    %689 = vmatpush2.bf16.xpose.msra.mxu0 0
    %690 = vmatprep.subr.bf16.mxu0 0
    %691 = vmatpush2.bf16.xpose.msra.mxu0 0
    %692 = vmatprep.subr.bf16.mxu0 0
    %693 = vmatpush2.bf16.xpose.msra.mxu0 0
    %694 = vmatprep.subr.bf16.mxu0 0
    %695 = vmatpush2.bf16.xpose.msra.mxu0 0
    %696 = vmatprep.mubr.bf16.mxu0 %v188
    %697 = vmatmul.mubr.bf16.gmra.mxu0 %v174
    %v698 = vpop.f32.mrf.mxu0
    %v699 = vadd.f32 %v659, %v698
    %v700 = vpop.f32.mrf.mxu0
    %v701 = vpop.f32.mrf.mxu0
    %v702 = vpop.f32.mrf.mxu0
    %703 = vdwg.mxu0
    %704 = vmatprep.subr.bf16.mxu0 0
    %705 = vmatpush1.bf16.xpose.msra.mxu0 0
    %706 = vmatprep.subr.bf16.mxu0 0
    %707 = vmatpush1.bf16.xpose.msra.mxu0 0
    %708 = vmatprep.subr.bf16.mxu0 0
    %709 = vmatpush1.bf16.xpose.msra.mxu0 0
    %710 = vmatprep.subr.bf16.mxu0 0
    %711 = vmatpush1.bf16.xpose.msra.mxu0 0
    %712 = vmatprep.subr.bf16.mxu0 0
    %713 = vmatpush1.bf16.xpose.msra.mxu0 0
    %714 = vmatprep.subr.bf16.mxu0 0
    %715 = vmatpush1.bf16.xpose.msra.mxu0 0
    %716 = vmatprep.subr.bf16.mxu0 0
    %717 = vmatpush1.bf16.xpose.msra.mxu0 0
    %718 = vmatprep.subr.bf16.mxu0 %v315
    %719 = vmatpush1.bf16.xpose.msra.mxu0 %v314
    %720 = vmatprep.subr.bf16.mxu0 0
    %721 = vmatpush2.bf16.xpose.msra.mxu0 0
    %722 = vmatprep.subr.bf16.mxu0 0
    %723 = vmatpush2.bf16.xpose.msra.mxu0 0
    %724 = vmatprep.subr.bf16.mxu0 0
    %725 = vmatpush2.bf16.xpose.msra.mxu0 0
    %726 = vmatprep.subr.bf16.mxu0 0
    %727 = vmatpush2.bf16.xpose.msra.mxu0 0
    %728 = vmatprep.subr.bf16.mxu0 0
    %729 = vmatpush2.bf16.xpose.msra.mxu0 0
    %730 = vmatprep.subr.bf16.mxu0 0
    %731 = vmatpush2.bf16.xpose.msra.mxu0 0
    %732 = vmatprep.subr.bf16.mxu0 0
    %733 = vmatpush2.bf16.xpose.msra.mxu0 0
    %734 = vmatprep.subr.bf16.mxu0 0
    %735 = vmatpush2.bf16.xpose.msra.mxu0 0
    %736 = vmatprep.mubr.bf16.mxu0 %v198
    %737 = vmatmul.mubr.bf16.gmra.mxu0 %v196
    %v738 = vpop.f32.mrf.mxu0
    %v739 = vadd.f32 %v699, %v738
    %v740 = vpop.f32.mrf.mxu0
    %v741 = vpop.f32.mrf.mxu0
    %v742 = vpop.f32.mrf.mxu0
    %743 = vdwg.mxu0
    %744 = vmatprep.subr.bf16.mxu0 0
    %745 = vmatpush1.bf16.xpose.msra.mxu0 0
    %746 = vmatprep.subr.bf16.mxu0 0
    %747 = vmatpush1.bf16.xpose.msra.mxu0 0
    %748 = vmatprep.subr.bf16.mxu0 0
    %749 = vmatpush1.bf16.xpose.msra.mxu0 0
    %750 = vmatprep.subr.bf16.mxu0 0
    %751 = vmatpush1.bf16.xpose.msra.mxu0 0
    %752 = vmatprep.subr.bf16.mxu0 0
    %753 = vmatpush1.bf16.xpose.msra.mxu0 0
    %754 = vmatprep.subr.bf16.mxu0 0
    %755 = vmatpush1.bf16.xpose.msra.mxu0 0
    %756 = vmatprep.subr.bf16.mxu0 0
    %757 = vmatpush1.bf16.xpose.msra.mxu0 0
    %758 = vmatprep.subr.bf16.mxu0 %v317
    %759 = vmatpush1.bf16.xpose.msra.mxu0 %v316
    %760 = vmatprep.subr.bf16.mxu0 0
    %761 = vmatpush2.bf16.xpose.msra.mxu0 0
    %762 = vmatprep.subr.bf16.mxu0 0
    %763 = vmatpush2.bf16.xpose.msra.mxu0 0
    %764 = vmatprep.subr.bf16.mxu0 0
    %765 = vmatpush2.bf16.xpose.msra.mxu0 0
    %766 = vmatprep.subr.bf16.mxu0 0
    %767 = vmatpush2.bf16.xpose.msra.mxu0 0
    %768 = vmatprep.subr.bf16.mxu0 0
    %769 = vmatpush2.bf16.xpose.msra.mxu0 0
    %770 = vmatprep.subr.bf16.mxu0 0
    %771 = vmatpush2.bf16.xpose.msra.mxu0 0
    %772 = vmatprep.subr.bf16.mxu0 0
    %773 = vmatpush2.bf16.xpose.msra.mxu0 0
    %774 = vmatprep.subr.bf16.mxu0 0
    %775 = vmatpush2.bf16.xpose.msra.mxu0 0
    %776 = vmatprep.mubr.bf16.mxu0 %v195
    %777 = vmatmul.mubr.bf16.gmra.mxu0 %v181
    %v778 = vpop.f32.mrf.mxu0
    %v779 = vadd.f32 %v739, %v778
    %v780 = vpop.f32.mrf.mxu0
    %v781 = vpop.f32.mrf.mxu0
    %v782 = vpop.f32.mrf.mxu0
    %783 = vdwg.mxu0
    %784 = vmatprep.subr.bf16.mxu0 0
    %785 = vmatpush1.bf16.xpose.msra.mxu0 0
    %786 = vmatprep.subr.bf16.mxu0 0
    %787 = vmatpush1.bf16.xpose.msra.mxu0 0
    %788 = vmatprep.subr.bf16.mxu0 0
    %789 = vmatpush1.bf16.xpose.msra.mxu0 0
    %790 = vmatprep.subr.bf16.mxu0 0
    %791 = vmatpush1.bf16.xpose.msra.mxu0 0
    %792 = vmatprep.subr.bf16.mxu0 0
    %793 = vmatpush1.bf16.xpose.msra.mxu0 0
    %794 = vmatprep.subr.bf16.mxu0 0
    %795 = vmatpush1.bf16.xpose.msra.mxu0 0
    %796 = vmatprep.subr.bf16.mxu0 0
    %797 = vmatpush1.bf16.xpose.msra.mxu0 0
    %798 = vmatprep.subr.bf16.mxu0 %v319
    %799 = vmatpush1.bf16.xpose.msra.mxu0 %v318
    %800 = vmatprep.subr.bf16.mxu0 0
    %801 = vmatpush2.bf16.xpose.msra.mxu0 0
    %802 = vmatprep.subr.bf16.mxu0 0
    %803 = vmatpush2.bf16.xpose.msra.mxu0 0
    %804 = vmatprep.subr.bf16.mxu0 0
    %805 = vmatpush2.bf16.xpose.msra.mxu0 0
    %806 = vmatprep.subr.bf16.mxu0 0
    %807 = vmatpush2.bf16.xpose.msra.mxu0 0
    %808 = vmatprep.subr.bf16.mxu0 0
    %809 = vmatpush2.bf16.xpose.msra.mxu0 0
    %810 = vmatprep.subr.bf16.mxu0 0
    %811 = vmatpush2.bf16.xpose.msra.mxu0 0
    %812 = vmatprep.subr.bf16.mxu0 0
    %813 = vmatpush2.bf16.xpose.msra.mxu0 0
    %814 = vmatprep.subr.bf16.mxu0 0
    %815 = vmatpush2.bf16.xpose.msra.mxu0 0
    %816 = vmatprep.mubr.bf16.mxu0 %v199
    %817 = vmatmul.mubr.bf16.gmra.mxu0 %v197
    %v818 = vpop.f32.mrf.mxu0
    %v819 = vadd.f32 %v779, %v818
    %v820 = vpop.f32.mrf.mxu0
    %v821 = vpop.f32.mrf.mxu0
    %v822 = vpop.f32.mrf.mxu0
    %823 = vdwg.mxu0
    %vm824 = vcmask 74752
    %825 = vst.msk [vmem:[#allocation2] sm:$0x3] %vm824, %v819
    // Predicated region
    $region14: #{frozen_densenet_esc50_forward.3} parent=1 // pred_check
      _
    $region15: #{frozen_densenet_esc50_forward.3} parent=1 // pred_check_branch
      %827 = sbr.rel (0) target = $region17
    $region16: #{frozen_densenet_esc50_forward.3} parent=1 // pred_region
      %s829 = ssub.s32 32, 32
      %830 = vsyncadd [#allocation3], %s829
      %s832 = sshll.u32 [#allocation2], 4
      %s833 = int_to_ptr.vmem [resolvable:$true] %s832
      %835 = dma.vmem_to_hbm [thread:$0]  %s833, 32, %s3, [#allocation3]
    $region17: #{frozen_densenet_esc50_forward.3} parent=1 // pred_fallthru
      _
    // Predicated region
    $region18: #{frozen_densenet_esc50_forward.3} parent=1 // pred_check
      _
    $region19: #{frozen_densenet_esc50_forward.3} parent=1 // pred_check_branch
      %837 = sbr.rel (0) target = $region21
    $region20: #{frozen_densenet_esc50_forward.3} parent=1 // pred_region
      %838 = dma.done [#allocation3], 32
    $region21: #{frozen_densenet_esc50_forward.3} parent=1 // pred_fallthru
      _
    %839 = vsyncpa [#allocation3], 1

// kernel: frozen_densenet_esc50_forward.2
$region0: #{frozen_densenet_esc50_forward.2}
  #allocation0 [shape = 'u32[]', space=smem, size = 0x4, offset = 0x4, fixed_abs, tag = 'smem constant byte address 0x4 - core index']
  #allocation1 [shape = 'u32[144,128]{1,0:T(1,128)}', space=vmem, size = 0x12000, scoped, tag = 'internal scratch']
  #allocation2 [shape = 'bf16[16,12,1152]{2,1,0:T(8,128)(2,1)}', space=vmem, size = 0x90000, scoped, tag = 'scratch operand']
  #allocation3 [shape = 'f32[8,12,128]{2,1,0:T(8,128)}', space=vmem, size = 0x10000, scoped, tag = 'scratch operand']
  %s0 = inlined_call_operand.vmem [shape: bf16[2,10,14,128], index: 0, kind: input, shape index: {}]
  %s1 = inlined_call_operand.hbm [shape: bf16[1152,128], index: 1, kind: input, shape index: {}]
  %s2 = inlined_call_operand.vmem [shape: f32[1,128], index: 2, kind: input, shape index: {}]
  %s3 = inlined_call_operand.vmem [shape: bf16[2,1,4,6,128], index: 3, kind: output, shape index: {}]
  %s4 = sld [smem:[#allocation0]]
  $region26: #{frozen_densenet_esc50_forward.2} parent=0
    _
  %s6 = ssub.s32 1, %s4
  %s7 = scalar_select 0, %s6, %s4
  $region1: #{frozen_densenet_esc50_forward.2} parent=0
    #allocation4 [shape = 'u8[294912]{0}', space=vmem, size = 0x48000, scoped, tag = 'input window, operand 1, single buffered']
    #allocation5 [shape = 's32[1]{0}', space=sflag, size = 0x4, scoped, tag = 'scoped memory for frozen_densenet_esc50_forward.2']
    %8 = vsyncpa [#allocation5], 0
    // Predicated region
    $region2: #{frozen_densenet_esc50_forward.2} parent=1 // pred_check
      _
    $region3: #{frozen_densenet_esc50_forward.2} parent=1 // pred_check_branch
      %10 = sbr.rel (0) target = $region5
    $region4: #{frozen_densenet_esc50_forward.2} parent=1 // pred_region
      _
    $region5: #{frozen_densenet_esc50_forward.2} parent=1 // pred_fallthru
      _
    // Predicated region
    $region6: #{frozen_densenet_esc50_forward.2} parent=1 // pred_check
      _
    $region7: #{frozen_densenet_esc50_forward.2} parent=1 // pred_check_branch
      %12 = sbr.rel (0) target = $region9
    $region8: #{frozen_densenet_esc50_forward.2} parent=1 // pred_region
      %s14 = ssub.s32 9216, 9216
      %15 = vsyncadd [#allocation5], %s14
      %s16 = sshll.u32 [#allocation4], 4
      %s17 = int_to_ptr.vmem [resolvable:$true] %s16
      %22 = dma.hbm_to_vmem [thread:$0]  %s1, 9216, %s17, [#allocation5], 64, 64, 4
    $region9: #{frozen_densenet_esc50_forward.2} parent=1 // pred_fallthru
      _
    // Predicated region
    $region10: #{frozen_densenet_esc50_forward.2} parent=1 // pred_check
      _
    $region11: #{frozen_densenet_esc50_forward.2} parent=1 // pred_check_branch
      %24 = sbr.rel (0) target = $region13
    $region12: #{frozen_densenet_esc50_forward.2} parent=1 // pred_region
      _
    $region13: #{frozen_densenet_esc50_forward.2} parent=1 // pred_fallthru
      _
    // Predicated region
    $region14: #{frozen_densenet_esc50_forward.2} parent=1 // pred_check
      _
    $region15: #{frozen_densenet_esc50_forward.2} parent=1 // pred_check_branch
      %26 = sbr.rel (0) target = $region17
    $region16: #{frozen_densenet_esc50_forward.2} parent=1 // pred_region
      %27 = dma.done [#allocation5], 9216
    $region17: #{frozen_densenet_esc50_forward.2} parent=1 // pred_fallthru
      _
    %v29 = vld [vmem:[%s0] sm:$0xf]
    %v30 = vld [vmem:[%s0 + $0x4] sm:$0x7]
    %v31 = vld [vmem:[%s0 + $0x8] sm:$0xf]
    %v32 = vld [vmem:[%s0 + $0xc] sm:$0x7]
    %v33 = vld [vmem:[%s0 + $0x10] sm:$0xf]
    %v34 = vld [vmem:[%s0 + $0x14] sm:$0x7]
    %v35 = vld [vmem:[%s0 + $0x18] sm:$0xf]
    %v36 = vld [vmem:[%s0 + $0x1c] sm:$0x7]
    %v37 = vld [vmem:[%s0 + $0x20] sm:$0xf]
    %v38 = vld [vmem:[%s0 + $0x24] sm:$0x7]
    %v39 = vld [vmem:[%s0 + $0x28] sm:$0xf]
    %v40 = vld [vmem:[%s0 + $0x2c] sm:$0x7]
    %v41 = vld [vmem:[%s0 + $0x30] sm:$0xf]
    %v42 = vld [vmem:[%s0 + $0x34] sm:$0x7]
    %v43 = vld [vmem:[%s0 + $0x38] sm:$0xf]
    %v44 = vld [vmem:[%s0 + $0x3c] sm:$0x7]
    %v45 = vld [vmem:[%s0 + $0x40] sm:$0xf]
    %v46 = vld [vmem:[%s0 + $0x44] sm:$0x7]
    %v47 = vld [vmem:[%s0 + $0x48] sm:$0xf]
    %v48 = vld [vmem:[%s0 + $0x4c] sm:$0x7]
    %v49 = vld [vmem:[%s0 + $0x50] sm:$0xf]
    %v50 = vld [vmem:[%s0 + $0x54] sm:$0x7]
    %v51 = vld [vmem:[%s0 + $0x58] sm:$0xf]
    %v52 = vld [vmem:[%s0 + $0x5c] sm:$0x7]
    %v53 = vld [vmem:[%s0 + $0x60] sm:$0xf]
    %v54 = vld [vmem:[%s0 + $0x64] sm:$0x7]
    %v55 = vld [vmem:[%s0 + $0x68] sm:$0xf]
    %v56 = vld [vmem:[%s0 + $0x6c] sm:$0x7]
    %v57 = vld [vmem:[%s0 + $0x70] sm:$0xf]
    %v58 = vld [vmem:[%s0 + $0x74] sm:$0x7]
    %v59 = vld [vmem:[%s0 + $0x78] sm:$0xf]
    %v60 = vld [vmem:[%s0 + $0x7c] sm:$0x7]
    %v61 = vld [vmem:[%s0 + $0x80] sm:$0xf]
    %v62 = vld [vmem:[%s0 + $0x84] sm:$0x7]
    %v63 = vld [vmem:[%s0 + $0x88] sm:$0xf]
    %v64 = vld [vmem:[%s0 + $0x8c] sm:$0x7]
    %v65 = vld [vmem:[%s0 + $0x90] sm:$0xf]
    %v66 = vld [vmem:[%s0 + $0x94] sm:$0x7]
    %v67 = vld [vmem:[%s0 + $0x98] sm:$0xf]
    %v68 = vld [vmem:[%s0 + $0x9c] sm:$0x7]
    %69 = vst [vmem:[#allocation2] sm:$0xf] %v29
    %70 = vst [vmem:[#allocation2 + $0x24] sm:$0x3] %v30
    %71 = vst [vmem:[#allocation2 + $0x48] sm:$0xf] %v31
    %72 = vst [vmem:[#allocation2 + $0x6c] sm:$0x3] %v32
    %73 = vst [vmem:[#allocation2 + $0x90] sm:$0xf] %v33
    %74 = vst [vmem:[#allocation2 + $0xb4] sm:$0x3] %v34
    %75 = vst [vmem:[#allocation2 + $0xd8] sm:$0xf] %v35
    %76 = vst [vmem:[#allocation2 + $0xfc] sm:$0x3] %v36
    %77 = vst [vmem:[#allocation2 + $0x120] sm:$0xf] %v37
    %78 = vst [vmem:[#allocation2 + $0x144] sm:$0x3] %v38
    %79 = vst [vmem:[#allocation2 + $0x168] sm:$0xf] %v39
    %80 = vst [vmem:[#allocation2 + $0x18c] sm:$0x3] %v40
    %81 = vst [vmem:[#allocation2 + $0x1b0] sm:$0xf] %v41
    %82 = vst [vmem:[#allocation2 + $0x1d4] sm:$0x3] %v42
    %83 = vst [vmem:[#allocation2 + $0x1f8] sm:$0xf] %v43
    %84 = vst [vmem:[#allocation2 + $0x21c] sm:$0x3] %v44
    %85 = vst [vmem:[#allocation2 + $0x240] sm:$0xf] %v49
    %86 = vst [vmem:[#allocation2 + $0x264] sm:$0x3] %v50
    %87 = vst [vmem:[#allocation2 + $0x288] sm:$0xf] %v51
    %88 = vst [vmem:[#allocation2 + $0x2ac] sm:$0x3] %v52
    %89 = vst [vmem:[#allocation2 + $0x2d0] sm:$0xf] %v53
    %90 = vst [vmem:[#allocation2 + $0x2f4] sm:$0x3] %v54
    %91 = vst [vmem:[#allocation2 + $0x318] sm:$0xf] %v55
    %92 = vst [vmem:[#allocation2 + $0x33c] sm:$0x3] %v56
    %93 = vst [vmem:[#allocation2 + $0x360] sm:$0xf] %v57
    %94 = vst [vmem:[#allocation2 + $0x384] sm:$0x3] %v58
    %95 = vst [vmem:[#allocation2 + $0x3a8] sm:$0xf] %v59
    %96 = vst [vmem:[#allocation2 + $0x3cc] sm:$0x3] %v60
    %97 = vst [vmem:[#allocation2 + $0x3f0] sm:$0xf] %v61
    %98 = vst [vmem:[#allocation2 + $0x414] sm:$0x3] %v62
    %99 = vst [vmem:[#allocation2 + $0x438] sm:$0xf] %v63
    %100 = vst [vmem:[#allocation2 + $0x45c] sm:$0x3] %v64
    %vm101 = vsmask.f32 3328
    %vm102 = vsmask.f32 7440
    %vm103 = vmor %vm101, %vm102
    %v105 = vshrl.u32 %v29, 16
    %v107 = vrot.slane %v105, 4
    %v108 = vshll.u32 %v29, 16
    %v110 = vrot.slane %v108, 5
    %v111 = vor.u32 %v107, %v110
    %v112 = vrot.slane %v111, 4
    %v114 = vshll.u32 %v30, 16
    %v116 = vrot.slane %v114, 5
    %v117 = vsel %vm103, %v112, %v116
    %v118 = vshrl.u32 %v30, 16
    %v120 = vrot.slane %v118, 4
    %v121 = vor.u32 %v120, %v116
    %v122 = vrot.slane %v121, 4
    %v124 = vshrl.u32 %v31, 16
    %v126 = vrot.slane %v124, 4
    %v127 = vshll.u32 %v31, 16
    %v129 = vrot.slane %v127, 5
    %v130 = vor.u32 %v126, %v129
    %v131 = vrot.slane %v130, 4
    %v133 = vshll.u32 %v32, 16
    %v135 = vrot.slane %v133, 5
    %v136 = vsel %vm103, %v131, %v135
    %v137 = vshrl.u32 %v32, 16
    %v139 = vrot.slane %v137, 4
    %v140 = vor.u32 %v139, %v135
    %v141 = vrot.slane %v140, 4
    %v143 = vshrl.u32 %v33, 16
    %v145 = vrot.slane %v143, 4
    %v146 = vshll.u32 %v33, 16
    %v148 = vrot.slane %v146, 5
    %v149 = vor.u32 %v145, %v148
    %v150 = vrot.slane %v149, 4
    %v152 = vshll.u32 %v34, 16
    %v154 = vrot.slane %v152, 5
    %v155 = vsel %vm103, %v150, %v154
    %v156 = vshrl.u32 %v34, 16
    %v158 = vrot.slane %v156, 4
    %v159 = vor.u32 %v158, %v154
    %v160 = vrot.slane %v159, 4
    %v162 = vshrl.u32 %v35, 16
    %v164 = vrot.slane %v162, 4
    %v165 = vshll.u32 %v35, 16
    %v167 = vrot.slane %v165, 5
    %v168 = vor.u32 %v164, %v167
    %v169 = vrot.slane %v168, 4
    %v171 = vshll.u32 %v36, 16
    %v173 = vrot.slane %v171, 5
    %v174 = vsel %vm103, %v169, %v173
    %v175 = vshrl.u32 %v36, 16
    %v177 = vrot.slane %v175, 4
    %v178 = vor.u32 %v177, %v173
    %v179 = vrot.slane %v178, 4
    %v181 = vshrl.u32 %v37, 16
    %v183 = vrot.slane %v181, 4
    %v184 = vshll.u32 %v37, 16
    %v186 = vrot.slane %v184, 5
    %v187 = vor.u32 %v183, %v186
    %v188 = vrot.slane %v187, 4
    %v190 = vshll.u32 %v38, 16
    %v192 = vrot.slane %v190, 5
    %v193 = vsel %vm103, %v188, %v192
    %v194 = vshrl.u32 %v38, 16
    %v196 = vrot.slane %v194, 4
    %v197 = vor.u32 %v196, %v192
    %v198 = vrot.slane %v197, 4
    %v200 = vshrl.u32 %v39, 16
    %v202 = vrot.slane %v200, 4
    %v203 = vshll.u32 %v39, 16
    %v205 = vrot.slane %v203, 5
    %v206 = vor.u32 %v202, %v205
    %v207 = vrot.slane %v206, 4
    %v209 = vshll.u32 %v40, 16
    %v211 = vrot.slane %v209, 5
    %v212 = vsel %vm103, %v207, %v211
    %v213 = vshrl.u32 %v40, 16
    %v215 = vrot.slane %v213, 4
    %v216 = vor.u32 %v215, %v211
    %v217 = vrot.slane %v216, 4
    %v219 = vshrl.u32 %v41, 16
    %v221 = vrot.slane %v219, 4
    %v222 = vshll.u32 %v41, 16
    %v224 = vrot.slane %v222, 5
    %v225 = vor.u32 %v221, %v224
    %v226 = vrot.slane %v225, 4
    %v228 = vshll.u32 %v42, 16
    %v230 = vrot.slane %v228, 5
    %v231 = vsel %vm103, %v226, %v230
    %v232 = vshrl.u32 %v42, 16
    %v234 = vrot.slane %v232, 4
    %v235 = vor.u32 %v234, %v230
    %v236 = vrot.slane %v235, 4
    %v238 = vshrl.u32 %v43, 16
    %v240 = vrot.slane %v238, 4
    %v241 = vshll.u32 %v43, 16
    %v243 = vrot.slane %v241, 5
    %v244 = vor.u32 %v240, %v243
    %v245 = vrot.slane %v244, 4
    %v247 = vshll.u32 %v44, 16
    %v249 = vrot.slane %v247, 5
    %v250 = vsel %vm103, %v245, %v249
    %v251 = vshrl.u32 %v44, 16
    %v253 = vrot.slane %v251, 4
    %v254 = vor.u32 %v253, %v249
    %v255 = vrot.slane %v254, 4
    %v257 = vshrl.u32 %v49, 16
    %v259 = vrot.slane %v257, 4
    %v260 = vshll.u32 %v49, 16
    %v262 = vrot.slane %v260, 5
    %v263 = vor.u32 %v259, %v262
    %v264 = vrot.slane %v263, 4
    %v266 = vshll.u32 %v50, 16
    %v268 = vrot.slane %v266, 5
    %v269 = vsel %vm103, %v264, %v268
    %v270 = vshrl.u32 %v50, 16
    %v272 = vrot.slane %v270, 4
    %v273 = vor.u32 %v272, %v268
    %v274 = vrot.slane %v273, 4
    %v276 = vshrl.u32 %v51, 16
    %v278 = vrot.slane %v276, 4
    %v279 = vshll.u32 %v51, 16
    %v281 = vrot.slane %v279, 5
    %v282 = vor.u32 %v278, %v281
    %v283 = vrot.slane %v282, 4
    %v285 = vshll.u32 %v52, 16
    %v287 = vrot.slane %v285, 5
    %v288 = vsel %vm103, %v283, %v287
    %v289 = vshrl.u32 %v52, 16
    %v291 = vrot.slane %v289, 4
    %v292 = vor.u32 %v291, %v287
    %v293 = vrot.slane %v292, 4
    %v295 = vshrl.u32 %v53, 16
    %v297 = vrot.slane %v295, 4
    %v298 = vshll.u32 %v53, 16
    %v300 = vrot.slane %v298, 5
    %v301 = vor.u32 %v297, %v300
    %v302 = vrot.slane %v301, 4
    %v304 = vshll.u32 %v54, 16
    %v306 = vrot.slane %v304, 5
    %v307 = vsel %vm103, %v302, %v306
    %v308 = vshrl.u32 %v54, 16
    %v310 = vrot.slane %v308, 4
    %v311 = vor.u32 %v310, %v306
    %v312 = vrot.slane %v311, 4
    %v314 = vshrl.u32 %v55, 16
    %v316 = vrot.slane %v314, 4
    %v317 = vshll.u32 %v55, 16
    %v319 = vrot.slane %v317, 5
    %v320 = vor.u32 %v316, %v319
    %v321 = vrot.slane %v320, 4
    %v323 = vshll.u32 %v56, 16
    %v325 = vrot.slane %v323, 5
    %v326 = vsel %vm103, %v321, %v325
    %v327 = vshrl.u32 %v56, 16
    %v329 = vrot.slane %v327, 4
    %v330 = vor.u32 %v329, %v325
    %v331 = vrot.slane %v330, 4
    %v333 = vshrl.u32 %v57, 16
    %v335 = vrot.slane %v333, 4
    %v336 = vshll.u32 %v57, 16
    %v338 = vrot.slane %v336, 5
    %v339 = vor.u32 %v335, %v338
    %v340 = vrot.slane %v339, 4
    %v342 = vshll.u32 %v58, 16
    %v344 = vrot.slane %v342, 5
    %v345 = vsel %vm103, %v340, %v344
    %v346 = vshrl.u32 %v58, 16
    %v348 = vrot.slane %v346, 4
    %v349 = vor.u32 %v348, %v344
    %v350 = vrot.slane %v349, 4
    %v352 = vshrl.u32 %v59, 16
    %v354 = vrot.slane %v352, 4
    %v355 = vshll.u32 %v59, 16
    %v357 = vrot.slane %v355, 5
    %v358 = vor.u32 %v354, %v357
    %v359 = vrot.slane %v358, 4
    %v361 = vshll.u32 %v60, 16
    %v363 = vrot.slane %v361, 5
    %v364 = vsel %vm103, %v359, %v363
    %v365 = vshrl.u32 %v60, 16
    %v367 = vrot.slane %v365, 4
    %v368 = vor.u32 %v367, %v363
    %v369 = vrot.slane %v368, 4
    %v371 = vshrl.u32 %v61, 16
    %v373 = vrot.slane %v371, 4
    %v374 = vshll.u32 %v61, 16
    %v376 = vrot.slane %v374, 5
    %v377 = vor.u32 %v373, %v376
    %v378 = vrot.slane %v377, 4
    %v380 = vshll.u32 %v62, 16
    %v382 = vrot.slane %v380, 5
    %v383 = vsel %vm103, %v378, %v382
    %v384 = vshrl.u32 %v62, 16
    %v386 = vrot.slane %v384, 4
    %v387 = vor.u32 %v386, %v382
    %v388 = vrot.slane %v387, 4
    %v390 = vshrl.u32 %v63, 16
    %v392 = vrot.slane %v390, 4
    %v393 = vshll.u32 %v63, 16
    %v395 = vrot.slane %v393, 5
    %v396 = vor.u32 %v392, %v395
    %v397 = vrot.slane %v396, 4
    %v399 = vshll.u32 %v64, 16
    %v401 = vrot.slane %v399, 5
    %v402 = vsel %vm103, %v397, %v401
    %v403 = vshrl.u32 %v64, 16
    %v405 = vrot.slane %v403, 4
    %v406 = vor.u32 %v405, %v401
    %v407 = vrot.slane %v406, 4
    %440 = vst [vmem:[#allocation2 + $0x4] sm:$0xf] %v117
    %441 = vst [vmem:[#allocation2 + $0x28] sm:$0x3] %v122
    %442 = vst [vmem:[#allocation2 + $0x4c] sm:$0xf] %v136
    %443 = vst [vmem:[#allocation2 + $0x70] sm:$0x3] %v141
    %444 = vst [vmem:[#allocation2 + $0x94] sm:$0xf] %v155
    %445 = vst [vmem:[#allocation2 + $0xb8] sm:$0x3] %v160
    %446 = vst [vmem:[#allocation2 + $0xdc] sm:$0xf] %v174
    %447 = vst [vmem:[#allocation2 + $0x100] sm:$0x3] %v179
    %448 = vst [vmem:[#allocation2 + $0x124] sm:$0xf] %v193
    %449 = vst [vmem:[#allocation2 + $0x148] sm:$0x3] %v198
    %450 = vst [vmem:[#allocation2 + $0x16c] sm:$0xf] %v212
    %451 = vst [vmem:[#allocation2 + $0x190] sm:$0x3] %v217
    %452 = vst [vmem:[#allocation2 + $0x1b4] sm:$0xf] %v231
    %453 = vst [vmem:[#allocation2 + $0x1d8] sm:$0x3] %v236
    %454 = vst [vmem:[#allocation2 + $0x1fc] sm:$0xf] %v250
    %455 = vst [vmem:[#allocation2 + $0x220] sm:$0x3] %v255
    %456 = vst [vmem:[#allocation2 + $0x244] sm:$0xf] %v269
    %457 = vst [vmem:[#allocation2 + $0x268] sm:$0x3] %v274
    %458 = vst [vmem:[#allocation2 + $0x28c] sm:$0xf] %v288
    %459 = vst [vmem:[#allocation2 + $0x2b0] sm:$0x3] %v293
    %460 = vst [vmem:[#allocation2 + $0x2d4] sm:$0xf] %v307
    %461 = vst [vmem:[#allocation2 + $0x2f8] sm:$0x3] %v312
    %462 = vst [vmem:[#allocation2 + $0x31c] sm:$0xf] %v326
    %463 = vst [vmem:[#allocation2 + $0x340] sm:$0x3] %v331
    %464 = vst [vmem:[#allocation2 + $0x364] sm:$0xf] %v345
    %465 = vst [vmem:[#allocation2 + $0x388] sm:$0x3] %v350
    %466 = vst [vmem:[#allocation2 + $0x3ac] sm:$0xf] %v364
    %467 = vst [vmem:[#allocation2 + $0x3d0] sm:$0x3] %v369
    %468 = vst [vmem:[#allocation2 + $0x3f4] sm:$0xf] %v383
    %469 = vst [vmem:[#allocation2 + $0x418] sm:$0x3] %v388
    %470 = vst [vmem:[#allocation2 + $0x43c] sm:$0xf] %v402
    %471 = vst [vmem:[#allocation2 + $0x460] sm:$0x3] %v407
    %vm504 = vcmask 1042432
    %vm505 = vcmask 1046532
    %vm506 = vmor %vm504, %vm505
    %v507 = vrot.slane %v29, 5
    %v508 = vrot.slane %v507, 4
    %v509 = vrot.slane %v30, 5
    %v510 = vsel %vm506, %v508, %v509
    %v511 = vrot.slane %v509, 4
    %v512 = vrot.slane %v31, 5
    %v513 = vrot.slane %v512, 4
    %v514 = vrot.slane %v32, 5
    %v515 = vsel %vm506, %v513, %v514
    %v516 = vrot.slane %v514, 4
    %v517 = vrot.slane %v33, 5
    %v518 = vrot.slane %v517, 4
    %v519 = vrot.slane %v34, 5
    %v520 = vsel %vm506, %v518, %v519
    %v521 = vrot.slane %v519, 4
    %v522 = vrot.slane %v35, 5
    %v523 = vrot.slane %v522, 4
    %v524 = vrot.slane %v36, 5
    %v525 = vsel %vm506, %v523, %v524
    %v526 = vrot.slane %v524, 4
    %v527 = vrot.slane %v37, 5
    %v528 = vrot.slane %v527, 4
    %v529 = vrot.slane %v38, 5
    %v530 = vsel %vm506, %v528, %v529
    %v531 = vrot.slane %v529, 4
    %v532 = vrot.slane %v39, 5
    %v533 = vrot.slane %v532, 4
    %v534 = vrot.slane %v40, 5
    %v535 = vsel %vm506, %v533, %v534
    %v536 = vrot.slane %v534, 4
    %v537 = vrot.slane %v41, 5
    %v538 = vrot.slane %v537, 4
    %v539 = vrot.slane %v42, 5
    %v540 = vsel %vm506, %v538, %v539
    %v541 = vrot.slane %v539, 4
    %v542 = vrot.slane %v43, 5
    %v543 = vrot.slane %v542, 4
    %v544 = vrot.slane %v44, 5
    %v545 = vsel %vm506, %v543, %v544
    %v546 = vrot.slane %v544, 4
    %v547 = vrot.slane %v49, 5
    %v548 = vrot.slane %v547, 4
    %v549 = vrot.slane %v50, 5
    %v550 = vsel %vm506, %v548, %v549
    %v551 = vrot.slane %v549, 4
    %v552 = vrot.slane %v51, 5
    %v553 = vrot.slane %v552, 4
    %v554 = vrot.slane %v52, 5
    %v555 = vsel %vm506, %v553, %v554
    %v556 = vrot.slane %v554, 4
    %v557 = vrot.slane %v53, 5
    %v558 = vrot.slane %v557, 4
    %v559 = vrot.slane %v54, 5
    %v560 = vsel %vm506, %v558, %v559
    %v561 = vrot.slane %v559, 4
    %v562 = vrot.slane %v55, 5
    %v563 = vrot.slane %v562, 4
    %v564 = vrot.slane %v56, 5
    %v565 = vsel %vm506, %v563, %v564
    %v566 = vrot.slane %v564, 4
    %v567 = vrot.slane %v57, 5
    %v568 = vrot.slane %v567, 4
    %v569 = vrot.slane %v58, 5
    %v570 = vsel %vm506, %v568, %v569
    %v571 = vrot.slane %v569, 4
    %v572 = vrot.slane %v59, 5
    %v573 = vrot.slane %v572, 4
    %v574 = vrot.slane %v60, 5
    %v575 = vsel %vm506, %v573, %v574
    %v576 = vrot.slane %v574, 4
    %v577 = vrot.slane %v61, 5
    %v578 = vrot.slane %v577, 4
    %v579 = vrot.slane %v62, 5
    %v580 = vsel %vm506, %v578, %v579
    %v581 = vrot.slane %v579, 4
    %v582 = vrot.slane %v63, 5
    %v583 = vrot.slane %v582, 4
    %v584 = vrot.slane %v64, 5
    %v585 = vsel %vm506, %v583, %v584
    %v586 = vrot.slane %v584, 4
    %619 = vst [vmem:[#allocation2 + $0x8] sm:$0xf] %v510
    %620 = vst [vmem:[#allocation2 + $0x2c] sm:$0x3] %v511
    %621 = vst [vmem:[#allocation2 + $0x50] sm:$0xf] %v515
    %622 = vst [vmem:[#allocation2 + $0x74] sm:$0x3] %v516
    %623 = vst [vmem:[#allocation2 + $0x98] sm:$0xf] %v520
    %624 = vst [vmem:[#allocation2 + $0xbc] sm:$0x3] %v521
    %625 = vst [vmem:[#allocation2 + $0xe0] sm:$0xf] %v525
    %626 = vst [vmem:[#allocation2 + $0x104] sm:$0x3] %v526
    %627 = vst [vmem:[#allocation2 + $0x128] sm:$0xf] %v530
    %628 = vst [vmem:[#allocation2 + $0x14c] sm:$0x3] %v531
    %629 = vst [vmem:[#allocation2 + $0x170] sm:$0xf] %v535
    %630 = vst [vmem:[#allocation2 + $0x194] sm:$0x3] %v536
    %631 = vst [vmem:[#allocation2 + $0x1b8] sm:$0xf] %v540
    %632 = vst [vmem:[#allocation2 + $0x1dc] sm:$0x3] %v541
    %633 = vst [vmem:[#allocation2 + $0x200] sm:$0xf] %v545
    %634 = vst [vmem:[#allocation2 + $0x224] sm:$0x3] %v546
    %635 = vst [vmem:[#allocation2 + $0x248] sm:$0xf] %v550
    %636 = vst [vmem:[#allocation2 + $0x26c] sm:$0x3] %v551
    %637 = vst [vmem:[#allocation2 + $0x290] sm:$0xf] %v555
    %638 = vst [vmem:[#allocation2 + $0x2b4] sm:$0x3] %v556
    %639 = vst [vmem:[#allocation2 + $0x2d8] sm:$0xf] %v560
    %640 = vst [vmem:[#allocation2 + $0x2fc] sm:$0x3] %v561
    %641 = vst [vmem:[#allocation2 + $0x320] sm:$0xf] %v565
    %642 = vst [vmem:[#allocation2 + $0x344] sm:$0x3] %v566
    %643 = vst [vmem:[#allocation2 + $0x368] sm:$0xf] %v570
    %644 = vst [vmem:[#allocation2 + $0x38c] sm:$0x3] %v571
    %645 = vst [vmem:[#allocation2 + $0x3b0] sm:$0xf] %v575
    %646 = vst [vmem:[#allocation2 + $0x3d4] sm:$0x3] %v576
    %647 = vst [vmem:[#allocation2 + $0x3f8] sm:$0xf] %v580
    %648 = vst [vmem:[#allocation2 + $0x41c] sm:$0x3] %v581
    %649 = vst [vmem:[#allocation2 + $0x440] sm:$0xf] %v585
    %650 = vst [vmem:[#allocation2 + $0x464] sm:$0x3] %v586
    %651 = vst [vmem:[#allocation2 + $0xc] sm:$0xf] %v31
    %652 = vst [vmem:[#allocation2 + $0x30] sm:$0x3] %v32
    %653 = vst [vmem:[#allocation2 + $0x54] sm:$0xf] %v33
    %654 = vst [vmem:[#allocation2 + $0x78] sm:$0x3] %v34
    %655 = vst [vmem:[#allocation2 + $0x9c] sm:$0xf] %v35
    %656 = vst [vmem:[#allocation2 + $0xc0] sm:$0x3] %v36
    %657 = vst [vmem:[#allocation2 + $0xe4] sm:$0xf] %v37
    %658 = vst [vmem:[#allocation2 + $0x108] sm:$0x3] %v38
    %659 = vst [vmem:[#allocation2 + $0x12c] sm:$0xf] %v39
    %660 = vst [vmem:[#allocation2 + $0x150] sm:$0x3] %v40
    %661 = vst [vmem:[#allocation2 + $0x174] sm:$0xf] %v41
    %662 = vst [vmem:[#allocation2 + $0x198] sm:$0x3] %v42
    %663 = vst [vmem:[#allocation2 + $0x1bc] sm:$0xf] %v43
    %664 = vst [vmem:[#allocation2 + $0x1e0] sm:$0x3] %v44
    %665 = vst [vmem:[#allocation2 + $0x204] sm:$0xf] %v45
    %666 = vst [vmem:[#allocation2 + $0x228] sm:$0x3] %v46
    %667 = vst [vmem:[#allocation2 + $0x24c] sm:$0xf] %v51
    %668 = vst [vmem:[#allocation2 + $0x270] sm:$0x3] %v52
    %669 = vst [vmem:[#allocation2 + $0x294] sm:$0xf] %v53
    %670 = vst [vmem:[#allocation2 + $0x2b8] sm:$0x3] %v54
    %671 = vst [vmem:[#allocation2 + $0x2dc] sm:$0xf] %v55
    %672 = vst [vmem:[#allocation2 + $0x300] sm:$0x3] %v56
    %673 = vst [vmem:[#allocation2 + $0x324] sm:$0xf] %v57
    %674 = vst [vmem:[#allocation2 + $0x348] sm:$0x3] %v58
    %675 = vst [vmem:[#allocation2 + $0x36c] sm:$0xf] %v59
    %676 = vst [vmem:[#allocation2 + $0x390] sm:$0x3] %v60
    %677 = vst [vmem:[#allocation2 + $0x3b4] sm:$0xf] %v61
    %678 = vst [vmem:[#allocation2 + $0x3d8] sm:$0x3] %v62
    %679 = vst [vmem:[#allocation2 + $0x3fc] sm:$0xf] %v63
    %680 = vst [vmem:[#allocation2 + $0x420] sm:$0x3] %v64
    %681 = vst [vmem:[#allocation2 + $0x444] sm:$0xf] %v65
    %682 = vst [vmem:[#allocation2 + $0x468] sm:$0x3] %v66
    %v684 = vshrl.u32 %v45, 16
    %v686 = vrot.slane %v684, 4
    %v687 = vshll.u32 %v45, 16
    %v689 = vrot.slane %v687, 5
    %v690 = vor.u32 %v686, %v689
    %v691 = vrot.slane %v690, 4
    %v693 = vshll.u32 %v46, 16
    %v695 = vrot.slane %v693, 5
    %v696 = vsel %vm103, %v691, %v695
    %v697 = vshrl.u32 %v46, 16
    %v699 = vrot.slane %v697, 4
    %v700 = vor.u32 %v699, %v695
    %v701 = vrot.slane %v700, 4
    %v703 = vshrl.u32 %v65, 16
    %v705 = vrot.slane %v703, 4
    %v706 = vshll.u32 %v65, 16
    %v708 = vrot.slane %v706, 5
    %v709 = vor.u32 %v705, %v708
    %v710 = vrot.slane %v709, 4
    %v712 = vshll.u32 %v66, 16
    %v714 = vrot.slane %v712, 5
    %v715 = vsel %vm103, %v710, %v714
    %v716 = vshrl.u32 %v66, 16
    %v718 = vrot.slane %v716, 4
    %v719 = vor.u32 %v718, %v714
    %v720 = vrot.slane %v719, 4
    %725 = vst [vmem:[#allocation2 + $0x10] sm:$0xf] %v136
    %726 = vst [vmem:[#allocation2 + $0x34] sm:$0x3] %v141
    %727 = vst [vmem:[#allocation2 + $0x58] sm:$0xf] %v155
    %728 = vst [vmem:[#allocation2 + $0x7c] sm:$0x3] %v160
    %729 = vst [vmem:[#allocation2 + $0xa0] sm:$0xf] %v174
    %730 = vst [vmem:[#allocation2 + $0xc4] sm:$0x3] %v179
    %731 = vst [vmem:[#allocation2 + $0xe8] sm:$0xf] %v193
    %732 = vst [vmem:[#allocation2 + $0x10c] sm:$0x3] %v198
    %733 = vst [vmem:[#allocation2 + $0x130] sm:$0xf] %v212
    %734 = vst [vmem:[#allocation2 + $0x154] sm:$0x3] %v217
    %735 = vst [vmem:[#allocation2 + $0x178] sm:$0xf] %v231
    %736 = vst [vmem:[#allocation2 + $0x19c] sm:$0x3] %v236
    %737 = vst [vmem:[#allocation2 + $0x1c0] sm:$0xf] %v250
    %738 = vst [vmem:[#allocation2 + $0x1e4] sm:$0x3] %v255
    %739 = vst [vmem:[#allocation2 + $0x208] sm:$0xf] %v696
    %740 = vst [vmem:[#allocation2 + $0x22c] sm:$0x3] %v701
    %741 = vst [vmem:[#allocation2 + $0x250] sm:$0xf] %v288
    %742 = vst [vmem:[#allocation2 + $0x274] sm:$0x3] %v293
    %743 = vst [vmem:[#allocation2 + $0x298] sm:$0xf] %v307
    %744 = vst [vmem:[#allocation2 + $0x2bc] sm:$0x3] %v312
    %745 = vst [vmem:[#allocation2 + $0x2e0] sm:$0xf] %v326
    %746 = vst [vmem:[#allocation2 + $0x304] sm:$0x3] %v331
    %747 = vst [vmem:[#allocation2 + $0x328] sm:$0xf] %v345
    %748 = vst [vmem:[#allocation2 + $0x34c] sm:$0x3] %v350
    %749 = vst [vmem:[#allocation2 + $0x370] sm:$0xf] %v364
    %750 = vst [vmem:[#allocation2 + $0x394] sm:$0x3] %v369
    %751 = vst [vmem:[#allocation2 + $0x3b8] sm:$0xf] %v383
    %752 = vst [vmem:[#allocation2 + $0x3dc] sm:$0x3] %v388
    %753 = vst [vmem:[#allocation2 + $0x400] sm:$0xf] %v402
    %754 = vst [vmem:[#allocation2 + $0x424] sm:$0x3] %v407
    %755 = vst [vmem:[#allocation2 + $0x448] sm:$0xf] %v715
    %756 = vst [vmem:[#allocation2 + $0x46c] sm:$0x3] %v720
    %v761 = vrot.slane %v45, 5
    %v762 = vrot.slane %v761, 4
    %v763 = vrot.slane %v46, 5
    %v764 = vsel %vm506, %v762, %v763
    %v765 = vrot.slane %v763, 4
    %v766 = vrot.slane %v65, 5
    %v767 = vrot.slane %v766, 4
    %v768 = vrot.slane %v66, 5
    %v769 = vsel %vm506, %v767, %v768
    %v770 = vrot.slane %v768, 4
    %775 = vst [vmem:[#allocation2 + $0x14] sm:$0xf] %v515
    %776 = vst [vmem:[#allocation2 + $0x38] sm:$0x3] %v516
    %777 = vst [vmem:[#allocation2 + $0x5c] sm:$0xf] %v520
    %778 = vst [vmem:[#allocation2 + $0x80] sm:$0x3] %v521
    %779 = vst [vmem:[#allocation2 + $0xa4] sm:$0xf] %v525
    %780 = vst [vmem:[#allocation2 + $0xc8] sm:$0x3] %v526
    %781 = vst [vmem:[#allocation2 + $0xec] sm:$0xf] %v530
    %782 = vst [vmem:[#allocation2 + $0x110] sm:$0x3] %v531
    %783 = vst [vmem:[#allocation2 + $0x134] sm:$0xf] %v535
    %784 = vst [vmem:[#allocation2 + $0x158] sm:$0x3] %v536
    %785 = vst [vmem:[#allocation2 + $0x17c] sm:$0xf] %v540
    %786 = vst [vmem:[#allocation2 + $0x1a0] sm:$0x3] %v541
    %787 = vst [vmem:[#allocation2 + $0x1c4] sm:$0xf] %v545
    %788 = vst [vmem:[#allocation2 + $0x1e8] sm:$0x3] %v546
    %789 = vst [vmem:[#allocation2 + $0x20c] sm:$0xf] %v764
    %790 = vst [vmem:[#allocation2 + $0x230] sm:$0x3] %v765
    %791 = vst [vmem:[#allocation2 + $0x254] sm:$0xf] %v555
    %792 = vst [vmem:[#allocation2 + $0x278] sm:$0x3] %v556
    %793 = vst [vmem:[#allocation2 + $0x29c] sm:$0xf] %v560
    %794 = vst [vmem:[#allocation2 + $0x2c0] sm:$0x3] %v561
    %795 = vst [vmem:[#allocation2 + $0x2e4] sm:$0xf] %v565
    %796 = vst [vmem:[#allocation2 + $0x308] sm:$0x3] %v566
    %797 = vst [vmem:[#allocation2 + $0x32c] sm:$0xf] %v570
    %798 = vst [vmem:[#allocation2 + $0x350] sm:$0x3] %v571
    %799 = vst [vmem:[#allocation2 + $0x374] sm:$0xf] %v575
    %800 = vst [vmem:[#allocation2 + $0x398] sm:$0x3] %v576
    %801 = vst [vmem:[#allocation2 + $0x3bc] sm:$0xf] %v580
    %802 = vst [vmem:[#allocation2 + $0x3e0] sm:$0x3] %v581
    %803 = vst [vmem:[#allocation2 + $0x404] sm:$0xf] %v585
    %804 = vst [vmem:[#allocation2 + $0x428] sm:$0x3] %v586
    %805 = vst [vmem:[#allocation2 + $0x44c] sm:$0xf] %v769
    %806 = vst [vmem:[#allocation2 + $0x470] sm:$0x3] %v770
    %807 = vst [vmem:[#allocation2 + $0x18] sm:$0xf] %v33
    %808 = vst [vmem:[#allocation2 + $0x3c] sm:$0x3] %v34
    %809 = vst [vmem:[#allocation2 + $0x60] sm:$0xf] %v35
    %810 = vst [vmem:[#allocation2 + $0x84] sm:$0x3] %v36
    %811 = vst [vmem:[#allocation2 + $0xa8] sm:$0xf] %v37
    %812 = vst [vmem:[#allocation2 + $0xcc] sm:$0x3] %v38
    %813 = vst [vmem:[#allocation2 + $0xf0] sm:$0xf] %v39
    %814 = vst [vmem:[#allocation2 + $0x114] sm:$0x3] %v40
    %815 = vst [vmem:[#allocation2 + $0x138] sm:$0xf] %v41
    %816 = vst [vmem:[#allocation2 + $0x15c] sm:$0x3] %v42
    %817 = vst [vmem:[#allocation2 + $0x180] sm:$0xf] %v43
    %818 = vst [vmem:[#allocation2 + $0x1a4] sm:$0x3] %v44
    %819 = vst [vmem:[#allocation2 + $0x1c8] sm:$0xf] %v45
    %820 = vst [vmem:[#allocation2 + $0x1ec] sm:$0x3] %v46
    %821 = vst [vmem:[#allocation2 + $0x210] sm:$0xf] %v47
    %822 = vst [vmem:[#allocation2 + $0x234] sm:$0x3] %v48
    %823 = vst [vmem:[#allocation2 + $0x258] sm:$0xf] %v53
    %824 = vst [vmem:[#allocation2 + $0x27c] sm:$0x3] %v54
    %825 = vst [vmem:[#allocation2 + $0x2a0] sm:$0xf] %v55
    %826 = vst [vmem:[#allocation2 + $0x2c4] sm:$0x3] %v56
    %827 = vst [vmem:[#allocation2 + $0x2e8] sm:$0xf] %v57
    %828 = vst [vmem:[#allocation2 + $0x30c] sm:$0x3] %v58
    %829 = vst [vmem:[#allocation2 + $0x330] sm:$0xf] %v59
    %830 = vst [vmem:[#allocation2 + $0x354] sm:$0x3] %v60
    %831 = vst [vmem:[#allocation2 + $0x378] sm:$0xf] %v61
    %832 = vst [vmem:[#allocation2 + $0x39c] sm:$0x3] %v62
    %833 = vst [vmem:[#allocation2 + $0x3c0] sm:$0xf] %v63
    %834 = vst [vmem:[#allocation2 + $0x3e4] sm:$0x3] %v64
    %835 = vst [vmem:[#allocation2 + $0x408] sm:$0xf] %v65
    %836 = vst [vmem:[#allocation2 + $0x42c] sm:$0x3] %v66
    %837 = vst [vmem:[#allocation2 + $0x450] sm:$0xf] %v67
    %838 = vst [vmem:[#allocation2 + $0x474] sm:$0x3] %v68
    %v840 = vshrl.u32 %v47, 16
    %v842 = vrot.slane %v840, 4
    %v843 = vshll.u32 %v47, 16
    %v845 = vrot.slane %v843, 5
    %v846 = vor.u32 %v842, %v845
    %v847 = vrot.slane %v846, 4
    %v849 = vshll.u32 %v48, 16
    %v851 = vrot.slane %v849, 5
    %v852 = vsel %vm103, %v847, %v851
    %v853 = vshrl.u32 %v48, 16
    %v855 = vrot.slane %v853, 4
    %v856 = vor.u32 %v855, %v851
    %v857 = vrot.slane %v856, 4
    %v859 = vshrl.u32 %v67, 16
    %v861 = vrot.slane %v859, 4
    %v862 = vshll.u32 %v67, 16
    %v864 = vrot.slane %v862, 5
    %v865 = vor.u32 %v861, %v864
    %v866 = vrot.slane %v865, 4
    %v868 = vshll.u32 %v68, 16
    %v870 = vrot.slane %v868, 5
    %v871 = vsel %vm103, %v866, %v870
    %v872 = vshrl.u32 %v68, 16
    %v874 = vrot.slane %v872, 4
    %v875 = vor.u32 %v874, %v870
    %v876 = vrot.slane %v875, 4
    %881 = vst [vmem:[#allocation2 + $0x1c] sm:$0xf] %v155
    %882 = vst [vmem:[#allocation2 + $0x40] sm:$0x3] %v160
    %883 = vst [vmem:[#allocation2 + $0x64] sm:$0xf] %v174
    %884 = vst [vmem:[#allocation2 + $0x88] sm:$0x3] %v179
    %885 = vst [vmem:[#allocation2 + $0xac] sm:$0xf] %v193
    %886 = vst [vmem:[#allocation2 + $0xd0] sm:$0x3] %v198
    %887 = vst [vmem:[#allocation2 + $0xf4] sm:$0xf] %v212
    %888 = vst [vmem:[#allocation2 + $0x118] sm:$0x3] %v217
    %889 = vst [vmem:[#allocation2 + $0x13c] sm:$0xf] %v231
    %890 = vst [vmem:[#allocation2 + $0x160] sm:$0x3] %v236
    %891 = vst [vmem:[#allocation2 + $0x184] sm:$0xf] %v250
    %892 = vst [vmem:[#allocation2 + $0x1a8] sm:$0x3] %v255
    %893 = vst [vmem:[#allocation2 + $0x1cc] sm:$0xf] %v696
    %894 = vst [vmem:[#allocation2 + $0x1f0] sm:$0x3] %v701
    %895 = vst [vmem:[#allocation2 + $0x214] sm:$0xf] %v852
    %896 = vst [vmem:[#allocation2 + $0x238] sm:$0x3] %v857
    %897 = vst [vmem:[#allocation2 + $0x25c] sm:$0xf] %v307
    %898 = vst [vmem:[#allocation2 + $0x280] sm:$0x3] %v312
    %899 = vst [vmem:[#allocation2 + $0x2a4] sm:$0xf] %v326
    %900 = vst [vmem:[#allocation2 + $0x2c8] sm:$0x3] %v331
    %901 = vst [vmem:[#allocation2 + $0x2ec] sm:$0xf] %v345
    %902 = vst [vmem:[#allocation2 + $0x310] sm:$0x3] %v350
    %903 = vst [vmem:[#allocation2 + $0x334] sm:$0xf] %v364
    %904 = vst [vmem:[#allocation2 + $0x358] sm:$0x3] %v369
    %905 = vst [vmem:[#allocation2 + $0x37c] sm:$0xf] %v383
    %906 = vst [vmem:[#allocation2 + $0x3a0] sm:$0x3] %v388
    %907 = vst [vmem:[#allocation2 + $0x3c4] sm:$0xf] %v402
    %908 = vst [vmem:[#allocation2 + $0x3e8] sm:$0x3] %v407
    %909 = vst [vmem:[#allocation2 + $0x40c] sm:$0xf] %v715
    %910 = vst [vmem:[#allocation2 + $0x430] sm:$0x3] %v720
    %911 = vst [vmem:[#allocation2 + $0x454] sm:$0xf] %v871
    %912 = vst [vmem:[#allocation2 + $0x478] sm:$0x3] %v876
    %v917 = vrot.slane %v47, 5
    %v918 = vrot.slane %v917, 4
    %v919 = vrot.slane %v48, 5
    %v920 = vsel %vm506, %v918, %v919
    %v921 = vrot.slane %v919, 4
    %v922 = vrot.slane %v67, 5
    %v923 = vrot.slane %v922, 4
    %v924 = vrot.slane %v68, 5
    %v925 = vsel %vm506, %v923, %v924
    %v926 = vrot.slane %v924, 4
    %931 = vst [vmem:[#allocation2 + $0x20] sm:$0xf] %v520
    %932 = vst [vmem:[#allocation2 + $0x44] sm:$0x3] %v521
    %933 = vst [vmem:[#allocation2 + $0x68] sm:$0xf] %v525
    %934 = vst [vmem:[#allocation2 + $0x8c] sm:$0x3] %v526
    %935 = vst [vmem:[#allocation2 + $0xb0] sm:$0xf] %v530
    %936 = vst [vmem:[#allocation2 + $0xd4] sm:$0x3] %v531
    %937 = vst [vmem:[#allocation2 + $0xf8] sm:$0xf] %v535
    %938 = vst [vmem:[#allocation2 + $0x11c] sm:$0x3] %v536
    %939 = vst [vmem:[#allocation2 + $0x140] sm:$0xf] %v540
    %940 = vst [vmem:[#allocation2 + $0x164] sm:$0x3] %v541
    %941 = vst [vmem:[#allocation2 + $0x188] sm:$0xf] %v545
    %942 = vst [vmem:[#allocation2 + $0x1ac] sm:$0x3] %v546
    %943 = vst [vmem:[#allocation2 + $0x1d0] sm:$0xf] %v764
    %944 = vst [vmem:[#allocation2 + $0x1f4] sm:$0x3] %v765
    %945 = vst [vmem:[#allocation2 + $0x218] sm:$0xf] %v920
    %946 = vst [vmem:[#allocation2 + $0x23c] sm:$0x3] %v921
    %947 = vst [vmem:[#allocation2 + $0x260] sm:$0xf] %v560
    %948 = vst [vmem:[#allocation2 + $0x284] sm:$0x3] %v561
    %949 = vst [vmem:[#allocation2 + $0x2a8] sm:$0xf] %v565
    %950 = vst [vmem:[#allocation2 + $0x2cc] sm:$0x3] %v566
    %951 = vst [vmem:[#allocation2 + $0x2f0] sm:$0xf] %v570
    %952 = vst [vmem:[#allocation2 + $0x314] sm:$0x3] %v571
    %953 = vst [vmem:[#allocation2 + $0x338] sm:$0xf] %v575
    %954 = vst [vmem:[#allocation2 + $0x35c] sm:$0x3] %v576
    %955 = vst [vmem:[#allocation2 + $0x380] sm:$0xf] %v580
    %956 = vst [vmem:[#allocation2 + $0x3a4] sm:$0x3] %v581
    %957 = vst [vmem:[#allocation2 + $0x3c8] sm:$0xf] %v585
    %958 = vst [vmem:[#allocation2 + $0x3ec] sm:$0x3] %v586
    %959 = vst [vmem:[#allocation2 + $0x410] sm:$0xf] %v769
    %960 = vst [vmem:[#allocation2 + $0x434] sm:$0x3] %v770
    %961 = vst [vmem:[#allocation2 + $0x458] sm:$0xf] %v925
    %962 = vst [vmem:[#allocation2 + $0x47c] sm:$0x3] %v926
    %v963 = vld [vmem:[#allocation2] sm:$0xff]
    %v964 = vld [vmem:[#allocation2 + $0x8] sm:$0xff]
    %v965 = vld [vmem:[#allocation2 + $0x10] sm:$0xff]
    %v966 = vld [vmem:[#allocation2 + $0x18] sm:$0xff]
    %v967 = vld [vmem:[#allocation2 + $0x20] sm:$0xf]
    %v968 = vld [vmem:[#allocation2 + $0x24] sm:$0x33]
    %v969 = vld [vmem:[#allocation2 + $0x2c] sm:$0x33]
    %v970 = vld [vmem:[#allocation2 + $0x34] sm:$0x33]
    %v971 = vld [vmem:[#allocation2 + $0x3c] sm:$0x33]
    %v972 = vld [vmem:[#allocation2 + $0x44] sm:$0x3]
    %v973 = vld [vmem:[#allocation2 + $0x48] sm:$0xff]
    %v974 = vld [vmem:[#allocation2 + $0x50] sm:$0xff]
    %v975 = vld [vmem:[#allocation2 + $0x58] sm:$0xff]
    %v976 = vld [vmem:[#allocation2 + $0x60] sm:$0xff]
    %v977 = vld [vmem:[#allocation2 + $0x68] sm:$0xf]
    %v978 = vld [vmem:[#allocation2 + $0x6c] sm:$0x33]
    %v979 = vld [vmem:[#allocation2 + $0x74] sm:$0x33]
    %v980 = vld [vmem:[#allocation2 + $0x7c] sm:$0x33]
    %v981 = vld [vmem:[#allocation2 + $0x84] sm:$0x33]
    %v982 = vld [vmem:[#allocation2 + $0x8c] sm:$0x3]
    %v983 = vld [vmem:[#allocation2 + $0x90] sm:$0xff]
    %v984 = vld [vmem:[#allocation2 + $0x98] sm:$0xff]
    %v985 = vld [vmem:[#allocation2 + $0xa0] sm:$0xff]
    %v986 = vld [vmem:[#allocation2 + $0xa8] sm:$0xff]
    %v987 = vld [vmem:[#allocation2 + $0xb0] sm:$0xf]
    %v988 = vld [vmem:[#allocation2 + $0xb4] sm:$0x33]
    %v989 = vld [vmem:[#allocation2 + $0xbc] sm:$0x33]
    %v990 = vld [vmem:[#allocation2 + $0xc4] sm:$0x33]
    %v991 = vld [vmem:[#allocation2 + $0xcc] sm:$0x33]
    %v992 = vld [vmem:[#allocation2 + $0xd4] sm:$0x3]
    %v993 = vld [vmem:[#allocation2 + $0xd8] sm:$0xff]
    %v994 = vld [vmem:[#allocation2 + $0xe0] sm:$0xff]
    %v995 = vld [vmem:[#allocation2 + $0xe8] sm:$0xff]
    %v996 = vld [vmem:[#allocation2 + $0xf0] sm:$0xff]
    %v997 = vld [vmem:[#allocation2 + $0xf8] sm:$0xf]
    %v998 = vld [vmem:[#allocation2 + $0xfc] sm:$0x33]
    %v999 = vld [vmem:[#allocation2 + $0x104] sm:$0x33]
    %v1000 = vld [vmem:[#allocation2 + $0x10c] sm:$0x33]
    %v1001 = vld [vmem:[#allocation2 + $0x114] sm:$0x33]
    %v1002 = vld [vmem:[#allocation2 + $0x11c] sm:$0x3]
    %v1003 = vld [vmem:[#allocation2 + $0x120] sm:$0xff]
    %v1004 = vld [vmem:[#allocation2 + $0x128] sm:$0xff]
    %v1005 = vld [vmem:[#allocation2 + $0x130] sm:$0xff]
    %v1006 = vld [vmem:[#allocation2 + $0x138] sm:$0xff]
    %v1007 = vld [vmem:[#allocation2 + $0x140] sm:$0xf]
    %v1008 = vld [vmem:[#allocation2 + $0x144] sm:$0x33]
    %v1009 = vld [vmem:[#allocation2 + $0x14c] sm:$0x33]
    %v1010 = vld [vmem:[#allocation2 + $0x154] sm:$0x33]
    %v1011 = vld [vmem:[#allocation2 + $0x15c] sm:$0x33]
    %v1012 = vld [vmem:[#allocation2 + $0x164] sm:$0x3]
    %v1013 = vld [vmem:[#allocation2 + $0x168] sm:$0xff]
    %v1014 = vld [vmem:[#allocation2 + $0x170] sm:$0xff]
    %v1015 = vld [vmem:[#allocation2 + $0x178] sm:$0xff]
    %v1016 = vld [vmem:[#allocation2 + $0x180] sm:$0xff]
    %v1017 = vld [vmem:[#allocation2 + $0x188] sm:$0xf]
    %v1018 = vld [vmem:[#allocation2 + $0x18c] sm:$0x33]
    %v1019 = vld [vmem:[#allocation2 + $0x194] sm:$0x33]
    %v1020 = vld [vmem:[#allocation2 + $0x19c] sm:$0x33]
    %v1021 = vld [vmem:[#allocation2 + $0x1a4] sm:$0x33]
    %v1022 = vld [vmem:[#allocation2 + $0x1ac] sm:$0x3]
    %v1023 = vld [vmem:[#allocation2 + $0x1b0] sm:$0xff]
    %v1024 = vld [vmem:[#allocation2 + $0x1b8] sm:$0xff]
    %v1025 = vld [vmem:[#allocation2 + $0x1c0] sm:$0xff]
    %v1026 = vld [vmem:[#allocation2 + $0x1c8] sm:$0xff]
    %v1027 = vld [vmem:[#allocation2 + $0x1d0] sm:$0xf]
    %v1028 = vld [vmem:[#allocation2 + $0x1d4] sm:$0x33]
    %v1029 = vld [vmem:[#allocation2 + $0x1dc] sm:$0x33]
    %v1030 = vld [vmem:[#allocation2 + $0x1e4] sm:$0x33]
    %v1031 = vld [vmem:[#allocation2 + $0x1ec] sm:$0x33]
    %v1032 = vld [vmem:[#allocation2 + $0x1f4] sm:$0x3]
    %v1033 = vld [vmem:[#allocation2 + $0x1f8] sm:$0xff]
    %v1034 = vld [vmem:[#allocation2 + $0x200] sm:$0xff]
    %v1035 = vld [vmem:[#allocation2 + $0x208] sm:$0xff]
    %v1036 = vld [vmem:[#allocation2 + $0x210] sm:$0xff]
    %v1037 = vld [vmem:[#allocation2 + $0x218] sm:$0xf]
    %v1038 = vld [vmem:[#allocation2 + $0x21c] sm:$0x33]
    %v1039 = vld [vmem:[#allocation2 + $0x224] sm:$0x33]
    %v1040 = vld [vmem:[#allocation2 + $0x22c] sm:$0x33]
    %v1041 = vld [vmem:[#allocation2 + $0x234] sm:$0x33]
    %v1042 = vld [vmem:[#allocation2 + $0x23c] sm:$0x3]
    %v1043 = vld [vmem:[#allocation2 + $0x240] sm:$0xff]
    %v1044 = vld [vmem:[#allocation2 + $0x248] sm:$0xff]
    %v1045 = vld [vmem:[#allocation2 + $0x250] sm:$0xff]
    %v1046 = vld [vmem:[#allocation2 + $0x258] sm:$0xff]
    %v1047 = vld [vmem:[#allocation2 + $0x260] sm:$0xf]
    %v1048 = vld [vmem:[#allocation2 + $0x264] sm:$0x33]
    %v1049 = vld [vmem:[#allocation2 + $0x26c] sm:$0x33]
    %v1050 = vld [vmem:[#allocation2 + $0x274] sm:$0x33]
    %v1051 = vld [vmem:[#allocation2 + $0x27c] sm:$0x33]
    %v1052 = vld [vmem:[#allocation2 + $0x284] sm:$0x3]
    %v1053 = vld [vmem:[#allocation2 + $0x288] sm:$0xff]
    %v1054 = vld [vmem:[#allocation2 + $0x290] sm:$0xff]
    %v1055 = vld [vmem:[#allocation2 + $0x298] sm:$0xff]
    %v1056 = vld [vmem:[#allocation2 + $0x2a0] sm:$0xff]
    %v1057 = vld [vmem:[#allocation2 + $0x2a8] sm:$0xf]
    %v1058 = vld [vmem:[#allocation2 + $0x2ac] sm:$0x33]
    %v1059 = vld [vmem:[#allocation2 + $0x2b4] sm:$0x33]
    %v1060 = vld [vmem:[#allocation2 + $0x2bc] sm:$0x33]
    %v1061 = vld [vmem:[#allocation2 + $0x2c4] sm:$0x33]
    %v1062 = vld [vmem:[#allocation2 + $0x2cc] sm:$0x3]
    %v1063 = vld [vmem:[#allocation2 + $0x2d0] sm:$0xff]
    %v1064 = vld [vmem:[#allocation2 + $0x2d8] sm:$0xff]
    %v1065 = vld [vmem:[#allocation2 + $0x2e0] sm:$0xff]
    %v1066 = vld [vmem:[#allocation2 + $0x2e8] sm:$0xff]
    %v1067 = vld [vmem:[#allocation2 + $0x2f0] sm:$0xf]
    %v1068 = vld [vmem:[#allocation2 + $0x2f4] sm:$0x33]
    %v1069 = vld [vmem:[#allocation2 + $0x2fc] sm:$0x33]
    %v1070 = vld [vmem:[#allocation2 + $0x304] sm:$0x33]
    %v1071 = vld [vmem:[#allocation2 + $0x30c] sm:$0x33]
    %v1072 = vld [vmem:[#allocation2 + $0x314] sm:$0x3]
    %v1073 = vld [vmem:[#allocation2 + $0x318] sm:$0xff]
    %v1074 = vld [vmem:[#allocation2 + $0x320] sm:$0xff]
    %v1075 = vld [vmem:[#allocation2 + $0x328] sm:$0xff]
    %v1076 = vld [vmem:[#allocation2 + $0x330] sm:$0xff]
    %v1077 = vld [vmem:[#allocation2 + $0x338] sm:$0xf]
    %v1078 = vld [vmem:[#allocation2 + $0x33c] sm:$0x33]
    %v1079 = vld [vmem:[#allocation2 + $0x344] sm:$0x33]
    %v1080 = vld [vmem:[#allocation2 + $0x34c] sm:$0x33]
    %v1081 = vld [vmem:[#allocation2 + $0x354] sm:$0x33]
    %v1082 = vld [vmem:[#allocation2 + $0x35c] sm:$0x3]
    %v1083 = vld [vmem:[#allocation2 + $0x360] sm:$0xff]
    %v1084 = vld [vmem:[#allocation2 + $0x368] sm:$0xff]
    %v1085 = vld [vmem:[#allocation2 + $0x370] sm:$0xff]
    %v1086 = vld [vmem:[#allocation2 + $0x378] sm:$0xff]
    %v1087 = vld [vmem:[#allocation2 + $0x380] sm:$0xf]
    %v1088 = vld [vmem:[#allocation2 + $0x384] sm:$0x33]
    %v1089 = vld [vmem:[#allocation2 + $0x38c] sm:$0x33]
    %v1090 = vld [vmem:[#allocation2 + $0x394] sm:$0x33]
    %v1091 = vld [vmem:[#allocation2 + $0x39c] sm:$0x33]
    %v1092 = vld [vmem:[#allocation2 + $0x3a4] sm:$0x3]
    %v1093 = vld [vmem:[#allocation2 + $0x3a8] sm:$0xff]
    %v1094 = vld [vmem:[#allocation2 + $0x3b0] sm:$0xff]
    %v1095 = vld [vmem:[#allocation2 + $0x3b8] sm:$0xff]
    %v1096 = vld [vmem:[#allocation2 + $0x3c0] sm:$0xff]
    %v1097 = vld [vmem:[#allocation2 + $0x3c8] sm:$0xf]
    %v1098 = vld [vmem:[#allocation2 + $0x3cc] sm:$0x33]
    %v1099 = vld [vmem:[#allocation2 + $0x3d4] sm:$0x33]
    %v1100 = vld [vmem:[#allocation2 + $0x3dc] sm:$0x33]
    %v1101 = vld [vmem:[#allocation2 + $0x3e4] sm:$0x33]
    %v1102 = vld [vmem:[#allocation2 + $0x3ec] sm:$0x3]
    %v1103 = vld [vmem:[#allocation2 + $0x3f0] sm:$0xff]
    %v1104 = vld [vmem:[#allocation2 + $0x3f8] sm:$0xff]
    %v1105 = vld [vmem:[#allocation2 + $0x400] sm:$0xff]
    %v1106 = vld [vmem:[#allocation2 + $0x408] sm:$0xff]
    %v1107 = vld [vmem:[#allocation2 + $0x410] sm:$0xf]
    %v1108 = vld [vmem:[#allocation2 + $0x414] sm:$0x33]
    %v1109 = vld [vmem:[#allocation2 + $0x41c] sm:$0x33]
    %v1110 = vld [vmem:[#allocation2 + $0x424] sm:$0x33]
    %v1111 = vld [vmem:[#allocation2 + $0x42c] sm:$0x33]
    %v1112 = vld [vmem:[#allocation2 + $0x434] sm:$0x3]
    %v1113 = vld [vmem:[#allocation2 + $0x438] sm:$0xff]
    %v1114 = vld [vmem:[#allocation2 + $0x440] sm:$0xff]
    %v1115 = vld [vmem:[#allocation2 + $0x448] sm:$0xff]
    %v1116 = vld [vmem:[#allocation2 + $0x450] sm:$0xff]
    %v1117 = vld [vmem:[#allocation2 + $0x458] sm:$0xf]
    %v1118 = vld [vmem:[#allocation2 + $0x45c] sm:$0x33]
    %v1119 = vld [vmem:[#allocation2 + $0x464] sm:$0x33]
    %v1120 = vld [vmem:[#allocation2 + $0x46c] sm:$0x33]
    %v1121 = vld [vmem:[#allocation2 + $0x474] sm:$0x33]
    %v1122 = vld [vmem:[#allocation2 + $0x47c] sm:$0x3]
    %v1123 = vld [vmem:[#allocation4] sm:$0xf]
    %v1124 = vld [vmem:[#allocation4 + $0x4] sm:$0xf]
    %v1125 = vld [vmem:[#allocation4 + $0x8] sm:$0xf]
    %v1126 = vld [vmem:[#allocation4 + $0xc] sm:$0xf]
    %v1127 = vld [vmem:[#allocation4 + $0x10] sm:$0xf]
    %v1128 = vld [vmem:[#allocation4 + $0x14] sm:$0xf]
    %v1129 = vld [vmem:[#allocation4 + $0x18] sm:$0xf]
    %v1130 = vld [vmem:[#allocation4 + $0x1c] sm:$0xf]
    %v1131 = vld [vmem:[#allocation4 + $0x20] sm:$0xf]
    %v1132 = vld [vmem:[#allocation4 + $0x24] sm:$0xf]
    %v1133 = vld [vmem:[#allocation4 + $0x28] sm:$0xf]
    %v1134 = vld [vmem:[#allocation4 + $0x2c] sm:$0xf]
    %v1135 = vld [vmem:[#allocation4 + $0x30] sm:$0xf]
    %v1136 = vld [vmem:[#allocation4 + $0x34] sm:$0xf]
    %v1137 = vld [vmem:[#allocation4 + $0x38] sm:$0xf]
    %v1138 = vld [vmem:[#allocation4 + $0x3c] sm:$0xf]
    %v1139 = vld [vmem:[#allocation4 + $0x40] sm:$0xf]
    %v1140 = vld [vmem:[#allocation4 + $0x44] sm:$0xf]
    %v1141 = vld [vmem:[#allocation4 + $0x48] sm:$0xf]
    %v1142 = vld [vmem:[#allocation4 + $0x4c] sm:$0xf]
    %v1143 = vld [vmem:[#allocation4 + $0x50] sm:$0xf]
    %v1144 = vld [vmem:[#allocation4 + $0x54] sm:$0xf]
    %v1145 = vld [vmem:[#allocation4 + $0x58] sm:$0xf]
    %v1146 = vld [vmem:[#allocation4 + $0x5c] sm:$0xf]
    %v1147 = vld [vmem:[#allocation4 + $0x60] sm:$0xf]
    %v1148 = vld [vmem:[#allocation4 + $0x64] sm:$0xf]
    %v1149 = vld [vmem:[#allocation4 + $0x68] sm:$0xf]
    %v1150 = vld [vmem:[#allocation4 + $0x6c] sm:$0xf]
    %v1151 = vld [vmem:[#allocation4 + $0x70] sm:$0xf]
    %v1152 = vld [vmem:[#allocation4 + $0x74] sm:$0xf]
    %v1153 = vld [vmem:[#allocation4 + $0x78] sm:$0xf]
    %v1154 = vld [vmem:[#allocation4 + $0x7c] sm:$0xf]
    %v1155 = vld [vmem:[#allocation4 + $0x80] sm:$0xf]
    %v1156 = vld [vmem:[#allocation4 + $0x84] sm:$0xf]
    %v1157 = vld [vmem:[#allocation4 + $0x88] sm:$0xf]
    %v1158 = vld [vmem:[#allocation4 + $0x8c] sm:$0xf]
    %v1159 = vld [vmem:[#allocation4 + $0x90] sm:$0xf]
    %v1160 = vld [vmem:[#allocation4 + $0x94] sm:$0xf]
    %v1161 = vld [vmem:[#allocation4 + $0x98] sm:$0xf]
    %v1162 = vld [vmem:[#allocation4 + $0x9c] sm:$0xf]
    %v1163 = vld [vmem:[#allocation4 + $0xa0] sm:$0xf]
    %v1164 = vld [vmem:[#allocation4 + $0xa4] sm:$0xf]
    %v1165 = vld [vmem:[#allocation4 + $0xa8] sm:$0xf]
    %v1166 = vld [vmem:[#allocation4 + $0xac] sm:$0xf]
    %v1167 = vld [vmem:[#allocation4 + $0xb0] sm:$0xf]
    %v1168 = vld [vmem:[#allocation4 + $0xb4] sm:$0xf]
    %v1169 = vld [vmem:[#allocation4 + $0xb8] sm:$0xf]
    %v1170 = vld [vmem:[#allocation4 + $0xbc] sm:$0xf]
    %v1171 = vld [vmem:[#allocation4 + $0xc0] sm:$0xf]
    %v1172 = vld [vmem:[#allocation4 + $0xc4] sm:$0xf]
    %v1173 = vld [vmem:[#allocation4 + $0xc8] sm:$0xf]
    %v1174 = vld [vmem:[#allocation4 + $0xcc] sm:$0xf]
    %v1175 = vld [vmem:[#allocation4 + $0xd0] sm:$0xf]
    %v1176 = vld [vmem:[#allocation4 + $0xd4] sm:$0xf]
    %v1177 = vld [vmem:[#allocation4 + $0xd8] sm:$0xf]
    %v1178 = vld [vmem:[#allocation4 + $0xdc] sm:$0xf]
    %v1179 = vld [vmem:[#allocation4 + $0xe0] sm:$0xf]
    %v1180 = vld [vmem:[#allocation4 + $0xe4] sm:$0xf]
    %v1181 = vld [vmem:[#allocation4 + $0xe8] sm:$0xf]
    %v1182 = vld [vmem:[#allocation4 + $0xec] sm:$0xf]
    %v1183 = vld [vmem:[#allocation4 + $0xf0] sm:$0xf]
    %v1184 = vld [vmem:[#allocation4 + $0xf4] sm:$0xf]
    %v1185 = vld [vmem:[#allocation4 + $0xf8] sm:$0xf]
    %v1186 = vld [vmem:[#allocation4 + $0xfc] sm:$0xf]
    %v1187 = vld [vmem:[#allocation4 + $0x100] sm:$0xf]
    %v1188 = vld [vmem:[#allocation4 + $0x104] sm:$0xf]
    %v1189 = vld [vmem:[#allocation4 + $0x108] sm:$0xf]
    %v1190 = vld [vmem:[#allocation4 + $0x10c] sm:$0xf]
    %v1191 = vld [vmem:[#allocation4 + $0x110] sm:$0xf]
    %v1192 = vld [vmem:[#allocation4 + $0x114] sm:$0xf]
    %v1193 = vld [vmem:[#allocation4 + $0x118] sm:$0xf]
    %v1194 = vld [vmem:[#allocation4 + $0x11c] sm:$0xf]
    %v1195 = vld [vmem:[#allocation4 + $0x120] sm:$0xf]
    %v1196 = vld [vmem:[#allocation4 + $0x124] sm:$0xf]
    %v1197 = vld [vmem:[#allocation4 + $0x128] sm:$0xf]
    %v1198 = vld [vmem:[#allocation4 + $0x12c] sm:$0xf]
    %v1199 = vld [vmem:[#allocation4 + $0x130] sm:$0xf]
    %v1200 = vld [vmem:[#allocation4 + $0x134] sm:$0xf]
    %v1201 = vld [vmem:[#allocation4 + $0x138] sm:$0xf]
    %v1202 = vld [vmem:[#allocation4 + $0x13c] sm:$0xf]
    %v1203 = vld [vmem:[#allocation4 + $0x140] sm:$0xf]
    %v1204 = vld [vmem:[#allocation4 + $0x144] sm:$0xf]
    %v1205 = vld [vmem:[#allocation4 + $0x148] sm:$0xf]
    %v1206 = vld [vmem:[#allocation4 + $0x14c] sm:$0xf]
    %v1207 = vld [vmem:[#allocation4 + $0x150] sm:$0xf]
    %v1208 = vld [vmem:[#allocation4 + $0x154] sm:$0xf]
    %v1209 = vld [vmem:[#allocation4 + $0x158] sm:$0xf]
    %v1210 = vld [vmem:[#allocation4 + $0x15c] sm:$0xf]
    %v1211 = vld [vmem:[#allocation4 + $0x160] sm:$0xf]
    %v1212 = vld [vmem:[#allocation4 + $0x164] sm:$0xf]
    %v1213 = vld [vmem:[#allocation4 + $0x168] sm:$0xf]
    %v1214 = vld [vmem:[#allocation4 + $0x16c] sm:$0xf]
    %v1215 = vld [vmem:[#allocation4 + $0x170] sm:$0xf]
    %v1216 = vld [vmem:[#allocation4 + $0x174] sm:$0xf]
    %v1217 = vld [vmem:[#allocation4 + $0x178] sm:$0xf]
    %v1218 = vld [vmem:[#allocation4 + $0x17c] sm:$0xf]
    %v1219 = vld [vmem:[#allocation4 + $0x180] sm:$0xf]
    %v1220 = vld [vmem:[#allocation4 + $0x184] sm:$0xf]
    %v1221 = vld [vmem:[#allocation4 + $0x188] sm:$0xf]
    %v1222 = vld [vmem:[#allocation4 + $0x18c] sm:$0xf]
    %v1223 = vld [vmem:[#allocation4 + $0x190] sm:$0xf]
    %v1224 = vld [vmem:[#allocation4 + $0x194] sm:$0xf]
    %v1225 = vld [vmem:[#allocation4 + $0x198] sm:$0xf]
    %v1226 = vld [vmem:[#allocation4 + $0x19c] sm:$0xf]
    %v1227 = vld [vmem:[#allocation4 + $0x1a0] sm:$0xf]
    %v1228 = vld [vmem:[#allocation4 + $0x1a4] sm:$0xf]
    %v1229 = vld [vmem:[#allocation4 + $0x1a8] sm:$0xf]
    %v1230 = vld [vmem:[#allocation4 + $0x1ac] sm:$0xf]
    %v1231 = vld [vmem:[#allocation4 + $0x1b0] sm:$0xf]
    %v1232 = vld [vmem:[#allocation4 + $0x1b4] sm:$0xf]
    %v1233 = vld [vmem:[#allocation4 + $0x1b8] sm:$0xf]
    %v1234 = vld [vmem:[#allocation4 + $0x1bc] sm:$0xf]
    %v1235 = vld [vmem:[#allocation4 + $0x1c0] sm:$0xf]
    %v1236 = vld [vmem:[#allocation4 + $0x1c4] sm:$0xf]
    %v1237 = vld [vmem:[#allocation4 + $0x1c8] sm:$0xf]
    %v1238 = vld [vmem:[#allocation4 + $0x1cc] sm:$0xf]
    %v1239 = vld [vmem:[#allocation4 + $0x1d0] sm:$0xf]
    %v1240 = vld [vmem:[#allocation4 + $0x1d4] sm:$0xf]
    %v1241 = vld [vmem:[#allocation4 + $0x1d8] sm:$0xf]
    %v1242 = vld [vmem:[#allocation4 + $0x1dc] sm:$0xf]
    %v1243 = vld [vmem:[#allocation4 + $0x1e0] sm:$0xf]
    %v1244 = vld [vmem:[#allocation4 + $0x1e4] sm:$0xf]
    %v1245 = vld [vmem:[#allocation4 + $0x1e8] sm:$0xf]
    %v1246 = vld [vmem:[#allocation4 + $0x1ec] sm:$0xf]
    %v1247 = vld [vmem:[#allocation4 + $0x1f0] sm:$0xf]
    %v1248 = vld [vmem:[#allocation4 + $0x1f4] sm:$0xf]
    %v1249 = vld [vmem:[#allocation4 + $0x1f8] sm:$0xf]
    %v1250 = vld [vmem:[#allocation4 + $0x1fc] sm:$0xf]
    %v1251 = vld [vmem:[#allocation4 + $0x200] sm:$0xf]
    %v1252 = vld [vmem:[#allocation4 + $0x204] sm:$0xf]
    %v1253 = vld [vmem:[#allocation4 + $0x208] sm:$0xf]
    %v1254 = vld [vmem:[#allocation4 + $0x20c] sm:$0xf]
    %v1255 = vld [vmem:[#allocation4 + $0x210] sm:$0xf]
    %v1256 = vld [vmem:[#allocation4 + $0x214] sm:$0xf]
    %v1257 = vld [vmem:[#allocation4 + $0x218] sm:$0xf]
    %v1258 = vld [vmem:[#allocation4 + $0x21c] sm:$0xf]
    %v1259 = vld [vmem:[#allocation4 + $0x220] sm:$0xf]
    %v1260 = vld [vmem:[#allocation4 + $0x224] sm:$0xf]
    %v1261 = vld [vmem:[#allocation4 + $0x228] sm:$0xf]
    %v1262 = vld [vmem:[#allocation4 + $0x22c] sm:$0xf]
    %v1263 = vld [vmem:[#allocation4 + $0x230] sm:$0xf]
    %v1264 = vld [vmem:[#allocation4 + $0x234] sm:$0xf]
    %v1265 = vld [vmem:[#allocation4 + $0x238] sm:$0xf]
    %v1266 = vld [vmem:[#allocation4 + $0x23c] sm:$0xf]
    %v1267 = vld [vmem:[%s2] sm:$0x1]
    %v1269 = vlaneseq
    %v1270 = vshrl.u32 %v1269, 7
    %v1271 = vsub.s32 0, %v1270
    %v1272 = vrot.slane %v1267, %v1271
    %v1434 = vunpack.c.l.s4 1983009808
    %v1435 = vunpack.c.0.s8 %v1434
    %v1436 = vlaneseq
    %v1437 = vshrl.u32 %v1436, 7
    %v1438 = vsub.s32 %v1435, %v1437
    %v1439 = vrot.slane %v963, %v1438
    %v1441 = vunpack.c.l.s4 1983009808
    %v1442 = vunpack.c.0.s8 %v1441
    %v1443 = vlaneseq
    %v1444 = vshrl.u32 %v1443, 7
    %v1445 = vsub.s32 %v1442, %v1444
    %v1446 = vrot.slane %v964, %v1445
    %v1447 = vcombine.low %v1439, %v1446
    %v1448 = vcombine.high %v1439, %v1446
    %v1450 = vunpack.c.l.s4 1983009808
    %v1451 = vunpack.c.0.s8 %v1450
    %v1452 = vlaneseq
    %v1453 = vshrl.u32 %v1452, 7
    %v1454 = vsub.s32 %v1451, %v1453
    %v1455 = vrot.slane %v965, %v1454
    %v1457 = vunpack.c.l.s4 1983009808
    %v1458 = vunpack.c.0.s8 %v1457
    %v1459 = vlaneseq
    %v1460 = vshrl.u32 %v1459, 7
    %v1461 = vsub.s32 %v1458, %v1460
    %v1462 = vrot.slane %v966, %v1461
    %v1463 = vcombine.low %v1455, %v1462
    %v1464 = vcombine.high %v1455, %v1462
    %v1466 = vunpack.c.l.s4 1983009808
    %v1467 = vunpack.c.0.s8 %v1466
    %v1468 = vlaneseq
    %v1469 = vshrl.u32 %v1468, 7
    %v1470 = vsub.s32 %v1467, %v1469
    %v1471 = vrot.slane %v967, %v1470
    %v1472 = vcombine.high %v1471, %v1471
    %v1474 = vunpack.c.l.s4 1983009808
    %v1475 = vunpack.c.0.s8 %v1474
    %v1476 = vlaneseq
    %v1477 = vshrl.u32 %v1476, 7
    %v1478 = vsub.s32 %v1475, %v1477
    %v1479 = vrot.slane %v968, %v1478
    %v1481 = vunpack.c.l.s4 1983009808
    %v1482 = vunpack.c.0.s8 %v1481
    %v1483 = vlaneseq
    %v1484 = vshrl.u32 %v1483, 7
    %v1485 = vsub.s32 %v1482, %v1484
    %v1486 = vrot.slane %v969, %v1485
    %v1487 = vcombine.low %v1479, %v1486
    %v1489 = vunpack.c.l.s4 1983009808
    %v1490 = vunpack.c.0.s8 %v1489
    %v1491 = vlaneseq
    %v1492 = vshrl.u32 %v1491, 7
    %v1493 = vsub.s32 %v1490, %v1492
    %v1494 = vrot.slane %v970, %v1493
    %v1496 = vunpack.c.l.s4 1983009808
    %v1497 = vunpack.c.0.s8 %v1496
    %v1498 = vlaneseq
    %v1499 = vshrl.u32 %v1498, 7
    %v1500 = vsub.s32 %v1497, %v1499
    %v1501 = vrot.slane %v971, %v1500
    %v1502 = vcombine.low %v1494, %v1501
    %v1504 = vunpack.c.l.s4 1983009808
    %v1505 = vunpack.c.0.s8 %v1504
    %v1506 = vlaneseq
    %v1507 = vshrl.u32 %v1506, 7
    %v1508 = vsub.s32 %v1505, %v1507
    %v1509 = vrot.slane %v972, %v1508
    %v1511 = vunpack.c.l.s4 1983009808
    %v1512 = vunpack.c.0.s8 %v1511
    %v1513 = vlaneseq
    %v1514 = vshrl.u32 %v1513, 7
    %v1515 = vsub.s32 %v1512, %v1514
    %v1516 = vrot.slane %v973, %v1515
    %v1518 = vunpack.c.l.s4 1983009808
    %v1519 = vunpack.c.0.s8 %v1518
    %v1520 = vlaneseq
    %v1521 = vshrl.u32 %v1520, 7
    %v1522 = vsub.s32 %v1519, %v1521
    %v1523 = vrot.slane %v974, %v1522
    %v1524 = vcombine.low %v1516, %v1523
    %v1525 = vcombine.high %v1516, %v1523
    %v1527 = vunpack.c.l.s4 1983009808
    %v1528 = vunpack.c.0.s8 %v1527
    %v1529 = vlaneseq
    %v1530 = vshrl.u32 %v1529, 7
    %v1531 = vsub.s32 %v1528, %v1530
    %v1532 = vrot.slane %v975, %v1531
    %v1534 = vunpack.c.l.s4 1983009808
    %v1535 = vunpack.c.0.s8 %v1534
    %v1536 = vlaneseq
    %v1537 = vshrl.u32 %v1536, 7
    %v1538 = vsub.s32 %v1535, %v1537
    %v1539 = vrot.slane %v976, %v1538
    %v1540 = vcombine.low %v1532, %v1539
    %v1541 = vcombine.high %v1532, %v1539
    %v1543 = vunpack.c.l.s4 1983009808
    %v1544 = vunpack.c.0.s8 %v1543
    %v1545 = vlaneseq
    %v1546 = vshrl.u32 %v1545, 7
    %v1547 = vsub.s32 %v1544, %v1546
    %v1548 = vrot.slane %v977, %v1547
    %v1549 = vcombine.high %v1548, %v1548
    %v1551 = vunpack.c.l.s4 1983009808
    %v1552 = vunpack.c.0.s8 %v1551
    %v1553 = vlaneseq
    %v1554 = vshrl.u32 %v1553, 7
    %v1555 = vsub.s32 %v1552, %v1554
    %v1556 = vrot.slane %v978, %v1555
    %v1558 = vunpack.c.l.s4 1983009808
    %v1559 = vunpack.c.0.s8 %v1558
    %v1560 = vlaneseq
    %v1561 = vshrl.u32 %v1560, 7
    %v1562 = vsub.s32 %v1559, %v1561
    %v1563 = vrot.slane %v979, %v1562
    %v1564 = vcombine.low %v1556, %v1563
    %v1566 = vunpack.c.l.s4 1983009808
    %v1567 = vunpack.c.0.s8 %v1566
    %v1568 = vlaneseq
    %v1569 = vshrl.u32 %v1568, 7
    %v1570 = vsub.s32 %v1567, %v1569
    %v1571 = vrot.slane %v980, %v1570
    %v1573 = vunpack.c.l.s4 1983009808
    %v1574 = vunpack.c.0.s8 %v1573
    %v1575 = vlaneseq
    %v1576 = vshrl.u32 %v1575, 7
    %v1577 = vsub.s32 %v1574, %v1576
    %v1578 = vrot.slane %v981, %v1577
    %v1579 = vcombine.low %v1571, %v1578
    %v1581 = vunpack.c.l.s4 1983009808
    %v1582 = vunpack.c.0.s8 %v1581
    %v1583 = vlaneseq
    %v1584 = vshrl.u32 %v1583, 7
    %v1585 = vsub.s32 %v1582, %v1584
    %v1586 = vrot.slane %v982, %v1585
    %v1588 = vunpack.c.l.s4 1983009808
    %v1589 = vunpack.c.0.s8 %v1588
    %v1590 = vlaneseq
    %v1591 = vshrl.u32 %v1590, 7
    %v1592 = vsub.s32 %v1589, %v1591
    %v1593 = vrot.slane %v983, %v1592
    %v1595 = vunpack.c.l.s4 1983009808
    %v1596 = vunpack.c.0.s8 %v1595
    %v1597 = vlaneseq
    %v1598 = vshrl.u32 %v1597, 7
    %v1599 = vsub.s32 %v1596, %v1598
    %v1600 = vrot.slane %v984, %v1599
    %v1601 = vcombine.low %v1593, %v1600
    %v1602 = vcombine.high %v1593, %v1600
    %v1604 = vunpack.c.l.s4 1983009808
    %v1605 = vunpack.c.0.s8 %v1604
    %v1606 = vlaneseq
    %v1607 = vshrl.u32 %v1606, 7
    %v1608 = vsub.s32 %v1605, %v1607
    %v1609 = vrot.slane %v985, %v1608
    %v1611 = vunpack.c.l.s4 1983009808
    %v1612 = vunpack.c.0.s8 %v1611
    %v1613 = vlaneseq
    %v1614 = vshrl.u32 %v1613, 7
    %v1615 = vsub.s32 %v1612, %v1614
    %v1616 = vrot.slane %v986, %v1615
    %v1617 = vcombine.low %v1609, %v1616
    %v1618 = vcombine.high %v1609, %v1616
    %v1620 = vunpack.c.l.s4 1983009808
    %v1621 = vunpack.c.0.s8 %v1620
    %v1622 = vlaneseq
    %v1623 = vshrl.u32 %v1622, 7
    %v1624 = vsub.s32 %v1621, %v1623
    %v1625 = vrot.slane %v987, %v1624
    %v1626 = vcombine.high %v1625, %v1625
    %v1628 = vunpack.c.l.s4 1983009808
    %v1629 = vunpack.c.0.s8 %v1628
    %v1630 = vlaneseq
    %v1631 = vshrl.u32 %v1630, 7
    %v1632 = vsub.s32 %v1629, %v1631
    %v1633 = vrot.slane %v988, %v1632
    %v1635 = vunpack.c.l.s4 1983009808
    %v1636 = vunpack.c.0.s8 %v1635
    %v1637 = vlaneseq
    %v1638 = vshrl.u32 %v1637, 7
    %v1639 = vsub.s32 %v1636, %v1638
    %v1640 = vrot.slane %v989, %v1639
    %v1641 = vcombine.low %v1633, %v1640
    %v1643 = vunpack.c.l.s4 1983009808
    %v1644 = vunpack.c.0.s8 %v1643
    %v1645 = vlaneseq
    %v1646 = vshrl.u32 %v1645, 7
    %v1647 = vsub.s32 %v1644, %v1646
    %v1648 = vrot.slane %v990, %v1647
    %v1650 = vunpack.c.l.s4 1983009808
    %v1651 = vunpack.c.0.s8 %v1650
    %v1652 = vlaneseq
    %v1653 = vshrl.u32 %v1652, 7
    %v1654 = vsub.s32 %v1651, %v1653
    %v1655 = vrot.slane %v991, %v1654
    %v1656 = vcombine.low %v1648, %v1655
    %v1658 = vunpack.c.l.s4 1983009808
    %v1659 = vunpack.c.0.s8 %v1658
    %v1660 = vlaneseq
    %v1661 = vshrl.u32 %v1660, 7
    %v1662 = vsub.s32 %v1659, %v1661
    %v1663 = vrot.slane %v992, %v1662
    %v1665 = vunpack.c.l.s4 1983009808
    %v1666 = vunpack.c.0.s8 %v1665
    %v1667 = vlaneseq
    %v1668 = vshrl.u32 %v1667, 7
    %v1669 = vsub.s32 %v1666, %v1668
    %v1670 = vrot.slane %v993, %v1669
    %v1672 = vunpack.c.l.s4 1983009808
    %v1673 = vunpack.c.0.s8 %v1672
    %v1674 = vlaneseq
    %v1675 = vshrl.u32 %v1674, 7
    %v1676 = vsub.s32 %v1673, %v1675
    %v1677 = vrot.slane %v994, %v1676
    %v1678 = vcombine.low %v1670, %v1677
    %v1679 = vcombine.high %v1670, %v1677
    %v1681 = vunpack.c.l.s4 1983009808
    %v1682 = vunpack.c.0.s8 %v1681
    %v1683 = vlaneseq
    %v1684 = vshrl.u32 %v1683, 7
    %v1685 = vsub.s32 %v1682, %v1684
    %v1686 = vrot.slane %v995, %v1685
    %v1688 = vunpack.c.l.s4 1983009808
    %v1689 = vunpack.c.0.s8 %v1688
    %v1690 = vlaneseq
    %v1691 = vshrl.u32 %v1690, 7
    %v1692 = vsub.s32 %v1689, %v1691
    %v1693 = vrot.slane %v996, %v1692
    %v1694 = vcombine.low %v1686, %v1693
    %v1695 = vcombine.high %v1686, %v1693
    %v1697 = vunpack.c.l.s4 1983009808
    %v1698 = vunpack.c.0.s8 %v1697
    %v1699 = vlaneseq
    %v1700 = vshrl.u32 %v1699, 7
    %v1701 = vsub.s32 %v1698, %v1700
    %v1702 = vrot.slane %v997, %v1701
    %v1703 = vcombine.high %v1702, %v1702
    %v1705 = vunpack.c.l.s4 1983009808
    %v1706 = vunpack.c.0.s8 %v1705
    %v1707 = vlaneseq
    %v1708 = vshrl.u32 %v1707, 7
    %v1709 = vsub.s32 %v1706, %v1708
    %v1710 = vrot.slane %v998, %v1709
    %v1712 = vunpack.c.l.s4 1983009808
    %v1713 = vunpack.c.0.s8 %v1712
    %v1714 = vlaneseq
    %v1715 = vshrl.u32 %v1714, 7
    %v1716 = vsub.s32 %v1713, %v1715
    %v1717 = vrot.slane %v999, %v1716
    %v1718 = vcombine.low %v1710, %v1717
    %v1720 = vunpack.c.l.s4 1983009808
    %v1721 = vunpack.c.0.s8 %v1720
    %v1722 = vlaneseq
    %v1723 = vshrl.u32 %v1722, 7
    %v1724 = vsub.s32 %v1721, %v1723
    %v1725 = vrot.slane %v1000, %v1724
    %v1727 = vunpack.c.l.s4 1983009808
    %v1728 = vunpack.c.0.s8 %v1727
    %v1729 = vlaneseq
    %v1730 = vshrl.u32 %v1729, 7
    %v1731 = vsub.s32 %v1728, %v1730
    %v1732 = vrot.slane %v1001, %v1731
    %v1733 = vcombine.low %v1725, %v1732
    %v1735 = vunpack.c.l.s4 1983009808
    %v1736 = vunpack.c.0.s8 %v1735
    %v1737 = vlaneseq
    %v1738 = vshrl.u32 %v1737, 7
    %v1739 = vsub.s32 %v1736, %v1738
    %v1740 = vrot.slane %v1002, %v1739
    %v1742 = vunpack.c.l.s4 1983009808
    %v1743 = vunpack.c.0.s8 %v1742
    %v1744 = vlaneseq
    %v1745 = vshrl.u32 %v1744, 7
    %v1746 = vsub.s32 %v1743, %v1745
    %v1747 = vrot.slane %v1003, %v1746
    %v1749 = vunpack.c.l.s4 1983009808
    %v1750 = vunpack.c.0.s8 %v1749
    %v1751 = vlaneseq
    %v1752 = vshrl.u32 %v1751, 7
    %v1753 = vsub.s32 %v1750, %v1752
    %v1754 = vrot.slane %v1004, %v1753
    %v1755 = vcombine.low %v1747, %v1754
    %v1756 = vcombine.high %v1747, %v1754
    %v1758 = vunpack.c.l.s4 1983009808
    %v1759 = vunpack.c.0.s8 %v1758
    %v1760 = vlaneseq
    %v1761 = vshrl.u32 %v1760, 7
    %v1762 = vsub.s32 %v1759, %v1761
    %v1763 = vrot.slane %v1005, %v1762
    %v1765 = vunpack.c.l.s4 1983009808
    %v1766 = vunpack.c.0.s8 %v1765
    %v1767 = vlaneseq
    %v1768 = vshrl.u32 %v1767, 7
    %v1769 = vsub.s32 %v1766, %v1768
    %v1770 = vrot.slane %v1006, %v1769
    %v1771 = vcombine.low %v1763, %v1770
    %v1772 = vcombine.high %v1763, %v1770
    %v1774 = vunpack.c.l.s4 1983009808
    %v1775 = vunpack.c.0.s8 %v1774
    %v1776 = vlaneseq
    %v1777 = vshrl.u32 %v1776, 7
    %v1778 = vsub.s32 %v1775, %v1777
    %v1779 = vrot.slane %v1007, %v1778
    %v1780 = vcombine.high %v1779, %v1779
    %v1782 = vunpack.c.l.s4 1983009808
    %v1783 = vunpack.c.0.s8 %v1782
    %v1784 = vlaneseq
    %v1785 = vshrl.u32 %v1784, 7
    %v1786 = vsub.s32 %v1783, %v1785
    %v1787 = vrot.slane %v1008, %v1786
    %v1789 = vunpack.c.l.s4 1983009808
    %v1790 = vunpack.c.0.s8 %v1789
    %v1791 = vlaneseq
    %v1792 = vshrl.u32 %v1791, 7
    %v1793 = vsub.s32 %v1790, %v1792
    %v1794 = vrot.slane %v1009, %v1793
    %v1795 = vcombine.low %v1787, %v1794
    %v1797 = vunpack.c.l.s4 1983009808
    %v1798 = vunpack.c.0.s8 %v1797
    %v1799 = vlaneseq
    %v1800 = vshrl.u32 %v1799, 7
    %v1801 = vsub.s32 %v1798, %v1800
    %v1802 = vrot.slane %v1010, %v1801
    %v1804 = vunpack.c.l.s4 1983009808
    %v1805 = vunpack.c.0.s8 %v1804
    %v1806 = vlaneseq
    %v1807 = vshrl.u32 %v1806, 7
    %v1808 = vsub.s32 %v1805, %v1807
    %v1809 = vrot.slane %v1011, %v1808
    %v1810 = vcombine.low %v1802, %v1809
    %v1812 = vunpack.c.l.s4 1983009808
    %v1813 = vunpack.c.0.s8 %v1812
    %v1814 = vlaneseq
    %v1815 = vshrl.u32 %v1814, 7
    %v1816 = vsub.s32 %v1813, %v1815
    %v1817 = vrot.slane %v1012, %v1816
    %v1819 = vunpack.c.l.s4 1983009808
    %v1820 = vunpack.c.0.s8 %v1819
    %v1821 = vlaneseq
    %v1822 = vshrl.u32 %v1821, 7
    %v1823 = vsub.s32 %v1820, %v1822
    %v1824 = vrot.slane %v1013, %v1823
    %v1826 = vunpack.c.l.s4 1983009808
    %v1827 = vunpack.c.0.s8 %v1826
    %v1828 = vlaneseq
    %v1829 = vshrl.u32 %v1828, 7
    %v1830 = vsub.s32 %v1827, %v1829
    %v1831 = vrot.slane %v1014, %v1830
    %v1832 = vcombine.low %v1824, %v1831
    %v1833 = vcombine.high %v1824, %v1831
    %v1835 = vunpack.c.l.s4 1983009808
    %v1836 = vunpack.c.0.s8 %v1835
    %v1837 = vlaneseq
    %v1838 = vshrl.u32 %v1837, 7
    %v1839 = vsub.s32 %v1836, %v1838
    %v1840 = vrot.slane %v1015, %v1839
    %v1842 = vunpack.c.l.s4 1983009808
    %v1843 = vunpack.c.0.s8 %v1842
    %v1844 = vlaneseq
    %v1845 = vshrl.u32 %v1844, 7
    %v1846 = vsub.s32 %v1843, %v1845
    %v1847 = vrot.slane %v1016, %v1846
    %v1848 = vcombine.low %v1840, %v1847
    %v1849 = vcombine.high %v1840, %v1847
    %v1851 = vunpack.c.l.s4 1983009808
    %v1852 = vunpack.c.0.s8 %v1851
    %v1853 = vlaneseq
    %v1854 = vshrl.u32 %v1853, 7
    %v1855 = vsub.s32 %v1852, %v1854
    %v1856 = vrot.slane %v1017, %v1855
    %v1857 = vcombine.high %v1856, %v1856
    %v1859 = vunpack.c.l.s4 1983009808
    %v1860 = vunpack.c.0.s8 %v1859
    %v1861 = vlaneseq
    %v1862 = vshrl.u32 %v1861, 7
    %v1863 = vsub.s32 %v1860, %v1862
    %v1864 = vrot.slane %v1018, %v1863
    %v1866 = vunpack.c.l.s4 1983009808
    %v1867 = vunpack.c.0.s8 %v1866
    %v1868 = vlaneseq
    %v1869 = vshrl.u32 %v1868, 7
    %v1870 = vsub.s32 %v1867, %v1869
    %v1871 = vrot.slane %v1019, %v1870
    %v1872 = vcombine.low %v1864, %v1871
    %v1874 = vunpack.c.l.s4 1983009808
    %v1875 = vunpack.c.0.s8 %v1874
    %v1876 = vlaneseq
    %v1877 = vshrl.u32 %v1876, 7
    %v1878 = vsub.s32 %v1875, %v1877
    %v1879 = vrot.slane %v1020, %v1878
    %v1881 = vunpack.c.l.s4 1983009808
    %v1882 = vunpack.c.0.s8 %v1881
    %v1883 = vlaneseq
    %v1884 = vshrl.u32 %v1883, 7
    %v1885 = vsub.s32 %v1882, %v1884
    %v1886 = vrot.slane %v1021, %v1885
    %v1887 = vcombine.low %v1879, %v1886
    %v1889 = vunpack.c.l.s4 1983009808
    %v1890 = vunpack.c.0.s8 %v1889
    %v1891 = vlaneseq
    %v1892 = vshrl.u32 %v1891, 7
    %v1893 = vsub.s32 %v1890, %v1892
    %v1894 = vrot.slane %v1022, %v1893
    %v1896 = vunpack.c.l.s4 1983009808
    %v1897 = vunpack.c.0.s8 %v1896
    %v1898 = vlaneseq
    %v1899 = vshrl.u32 %v1898, 7
    %v1900 = vsub.s32 %v1897, %v1899
    %v1901 = vrot.slane %v1023, %v1900
    %v1903 = vunpack.c.l.s4 1983009808
    %v1904 = vunpack.c.0.s8 %v1903
    %v1905 = vlaneseq
    %v1906 = vshrl.u32 %v1905, 7
    %v1907 = vsub.s32 %v1904, %v1906
    %v1908 = vrot.slane %v1024, %v1907
    %v1909 = vcombine.low %v1901, %v1908
    %v1910 = vcombine.high %v1901, %v1908
    %v1912 = vunpack.c.l.s4 1983009808
    %v1913 = vunpack.c.0.s8 %v1912
    %v1914 = vlaneseq
    %v1915 = vshrl.u32 %v1914, 7
    %v1916 = vsub.s32 %v1913, %v1915
    %v1917 = vrot.slane %v1025, %v1916
    %v1919 = vunpack.c.l.s4 1983009808
    %v1920 = vunpack.c.0.s8 %v1919
    %v1921 = vlaneseq
    %v1922 = vshrl.u32 %v1921, 7
    %v1923 = vsub.s32 %v1920, %v1922
    %v1924 = vrot.slane %v1026, %v1923
    %v1925 = vcombine.low %v1917, %v1924
    %v1926 = vcombine.high %v1917, %v1924
    %v1928 = vunpack.c.l.s4 1983009808
    %v1929 = vunpack.c.0.s8 %v1928
    %v1930 = vlaneseq
    %v1931 = vshrl.u32 %v1930, 7
    %v1932 = vsub.s32 %v1929, %v1931
    %v1933 = vrot.slane %v1027, %v1932
    %v1934 = vcombine.high %v1933, %v1933
    %v1936 = vunpack.c.l.s4 1983009808
    %v1937 = vunpack.c.0.s8 %v1936
    %v1938 = vlaneseq
    %v1939 = vshrl.u32 %v1938, 7
    %v1940 = vsub.s32 %v1937, %v1939
    %v1941 = vrot.slane %v1028, %v1940
    %v1943 = vunpack.c.l.s4 1983009808
    %v1944 = vunpack.c.0.s8 %v1943
    %v1945 = vlaneseq
    %v1946 = vshrl.u32 %v1945, 7
    %v1947 = vsub.s32 %v1944, %v1946
    %v1948 = vrot.slane %v1029, %v1947
    %v1949 = vcombine.low %v1941, %v1948
    %v1951 = vunpack.c.l.s4 1983009808
    %v1952 = vunpack.c.0.s8 %v1951
    %v1953 = vlaneseq
    %v1954 = vshrl.u32 %v1953, 7
    %v1955 = vsub.s32 %v1952, %v1954
    %v1956 = vrot.slane %v1030, %v1955
    %v1958 = vunpack.c.l.s4 1983009808
    %v1959 = vunpack.c.0.s8 %v1958
    %v1960 = vlaneseq
    %v1961 = vshrl.u32 %v1960, 7
    %v1962 = vsub.s32 %v1959, %v1961
    %v1963 = vrot.slane %v1031, %v1962
    %v1964 = vcombine.low %v1956, %v1963
    %v1966 = vunpack.c.l.s4 1983009808
    %v1967 = vunpack.c.0.s8 %v1966
    %v1968 = vlaneseq
    %v1969 = vshrl.u32 %v1968, 7
    %v1970 = vsub.s32 %v1967, %v1969
    %v1971 = vrot.slane %v1032, %v1970
    %v1973 = vunpack.c.l.s4 1983009808
    %v1974 = vunpack.c.0.s8 %v1973
    %v1975 = vlaneseq
    %v1976 = vshrl.u32 %v1975, 7
    %v1977 = vsub.s32 %v1974, %v1976
    %v1978 = vrot.slane %v1033, %v1977
    %v1980 = vunpack.c.l.s4 1983009808
    %v1981 = vunpack.c.0.s8 %v1980
    %v1982 = vlaneseq
    %v1983 = vshrl.u32 %v1982, 7
    %v1984 = vsub.s32 %v1981, %v1983
    %v1985 = vrot.slane %v1034, %v1984
    %v1986 = vcombine.low %v1978, %v1985
    %v1987 = vcombine.high %v1978, %v1985
    %v1989 = vunpack.c.l.s4 1983009808
    %v1990 = vunpack.c.0.s8 %v1989
    %v1991 = vlaneseq
    %v1992 = vshrl.u32 %v1991, 7
    %v1993 = vsub.s32 %v1990, %v1992
    %v1994 = vrot.slane %v1035, %v1993
    %v1996 = vunpack.c.l.s4 1983009808
    %v1997 = vunpack.c.0.s8 %v1996
    %v1998 = vlaneseq
    %v1999 = vshrl.u32 %v1998, 7
    %v2000 = vsub.s32 %v1997, %v1999
    %v2001 = vrot.slane %v1036, %v2000
    %v2002 = vcombine.low %v1994, %v2001
    %v2003 = vcombine.high %v1994, %v2001
    %v2005 = vunpack.c.l.s4 1983009808
    %v2006 = vunpack.c.0.s8 %v2005
    %v2007 = vlaneseq
    %v2008 = vshrl.u32 %v2007, 7
    %v2009 = vsub.s32 %v2006, %v2008
    %v2010 = vrot.slane %v1037, %v2009
    %v2011 = vcombine.high %v2010, %v2010
    %v2013 = vunpack.c.l.s4 1983009808
    %v2014 = vunpack.c.0.s8 %v2013
    %v2015 = vlaneseq
    %v2016 = vshrl.u32 %v2015, 7
    %v2017 = vsub.s32 %v2014, %v2016
    %v2018 = vrot.slane %v1038, %v2017
    %v2020 = vunpack.c.l.s4 1983009808
    %v2021 = vunpack.c.0.s8 %v2020
    %v2022 = vlaneseq
    %v2023 = vshrl.u32 %v2022, 7
    %v2024 = vsub.s32 %v2021, %v2023
    %v2025 = vrot.slane %v1039, %v2024
    %v2026 = vcombine.low %v2018, %v2025
    %v2028 = vunpack.c.l.s4 1983009808
    %v2029 = vunpack.c.0.s8 %v2028
    %v2030 = vlaneseq
    %v2031 = vshrl.u32 %v2030, 7
    %v2032 = vsub.s32 %v2029, %v2031
    %v2033 = vrot.slane %v1040, %v2032
    %v2035 = vunpack.c.l.s4 1983009808
    %v2036 = vunpack.c.0.s8 %v2035
    %v2037 = vlaneseq
    %v2038 = vshrl.u32 %v2037, 7
    %v2039 = vsub.s32 %v2036, %v2038
    %v2040 = vrot.slane %v1041, %v2039
    %v2041 = vcombine.low %v2033, %v2040
    %v2043 = vunpack.c.l.s4 1983009808
    %v2044 = vunpack.c.0.s8 %v2043
    %v2045 = vlaneseq
    %v2046 = vshrl.u32 %v2045, 7
    %v2047 = vsub.s32 %v2044, %v2046
    %v2048 = vrot.slane %v1042, %v2047
    %v2050 = vunpack.c.l.s4 1983009808
    %v2051 = vunpack.c.0.s8 %v2050
    %v2052 = vlaneseq
    %v2053 = vshrl.u32 %v2052, 7
    %v2054 = vsub.s32 %v2051, %v2053
    %v2055 = vrot.slane %v1043, %v2054
    %v2057 = vunpack.c.l.s4 1983009808
    %v2058 = vunpack.c.0.s8 %v2057
    %v2059 = vlaneseq
    %v2060 = vshrl.u32 %v2059, 7
    %v2061 = vsub.s32 %v2058, %v2060
    %v2062 = vrot.slane %v1044, %v2061
    %v2063 = vcombine.low %v2055, %v2062
    %v2064 = vcombine.high %v2055, %v2062
    %v2066 = vunpack.c.l.s4 1983009808
    %v2067 = vunpack.c.0.s8 %v2066
    %v2068 = vlaneseq
    %v2069 = vshrl.u32 %v2068, 7
    %v2070 = vsub.s32 %v2067, %v2069
    %v2071 = vrot.slane %v1045, %v2070
    %v2073 = vunpack.c.l.s4 1983009808
    %v2074 = vunpack.c.0.s8 %v2073
    %v2075 = vlaneseq
    %v2076 = vshrl.u32 %v2075, 7
    %v2077 = vsub.s32 %v2074, %v2076
    %v2078 = vrot.slane %v1046, %v2077
    %v2079 = vcombine.low %v2071, %v2078
    %v2080 = vcombine.high %v2071, %v2078
    %v2082 = vunpack.c.l.s4 1983009808
    %v2083 = vunpack.c.0.s8 %v2082
    %v2084 = vlaneseq
    %v2085 = vshrl.u32 %v2084, 7
    %v2086 = vsub.s32 %v2083, %v2085
    %v2087 = vrot.slane %v1047, %v2086
    %v2088 = vcombine.high %v2087, %v2087
    %v2090 = vunpack.c.l.s4 1983009808
    %v2091 = vunpack.c.0.s8 %v2090
    %v2092 = vlaneseq
    %v2093 = vshrl.u32 %v2092, 7
    %v2094 = vsub.s32 %v2091, %v2093
    %v2095 = vrot.slane %v1048, %v2094
    %v2097 = vunpack.c.l.s4 1983009808
    %v2098 = vunpack.c.0.s8 %v2097
    %v2099 = vlaneseq
    %v2100 = vshrl.u32 %v2099, 7
    %v2101 = vsub.s32 %v2098, %v2100
    %v2102 = vrot.slane %v1049, %v2101
    %v2103 = vcombine.low %v2095, %v2102
    %v2105 = vunpack.c.l.s4 1983009808
    %v2106 = vunpack.c.0.s8 %v2105
    %v2107 = vlaneseq
    %v2108 = vshrl.u32 %v2107, 7
    %v2109 = vsub.s32 %v2106, %v2108
    %v2110 = vrot.slane %v1050, %v2109
    %v2112 = vunpack.c.l.s4 1983009808
    %v2113 = vunpack.c.0.s8 %v2112
    %v2114 = vlaneseq
    %v2115 = vshrl.u32 %v2114, 7
    %v2116 = vsub.s32 %v2113, %v2115
    %v2117 = vrot.slane %v1051, %v2116
    %v2118 = vcombine.low %v2110, %v2117
    %v2120 = vunpack.c.l.s4 1983009808
    %v2121 = vunpack.c.0.s8 %v2120
    %v2122 = vlaneseq
    %v2123 = vshrl.u32 %v2122, 7
    %v2124 = vsub.s32 %v2121, %v2123
    %v2125 = vrot.slane %v1052, %v2124
    %v2127 = vunpack.c.l.s4 1983009808
    %v2128 = vunpack.c.0.s8 %v2127
    %v2129 = vlaneseq
    %v2130 = vshrl.u32 %v2129, 7
    %v2131 = vsub.s32 %v2128, %v2130
    %v2132 = vrot.slane %v1053, %v2131
    %v2134 = vunpack.c.l.s4 1983009808
    %v2135 = vunpack.c.0.s8 %v2134
    %v2136 = vlaneseq
    %v2137 = vshrl.u32 %v2136, 7
    %v2138 = vsub.s32 %v2135, %v2137
    %v2139 = vrot.slane %v1054, %v2138
    %v2140 = vcombine.low %v2132, %v2139
    %v2141 = vcombine.high %v2132, %v2139
    %v2143 = vunpack.c.l.s4 1983009808
    %v2144 = vunpack.c.0.s8 %v2143
    %v2145 = vlaneseq
    %v2146 = vshrl.u32 %v2145, 7
    %v2147 = vsub.s32 %v2144, %v2146
    %v2148 = vrot.slane %v1055, %v2147
    %v2150 = vunpack.c.l.s4 1983009808
    %v2151 = vunpack.c.0.s8 %v2150
    %v2152 = vlaneseq
    %v2153 = vshrl.u32 %v2152, 7
    %v2154 = vsub.s32 %v2151, %v2153
    %v2155 = vrot.slane %v1056, %v2154
    %v2156 = vcombine.low %v2148, %v2155
    %v2157 = vcombine.high %v2148, %v2155
    %v2159 = vunpack.c.l.s4 1983009808
    %v2160 = vunpack.c.0.s8 %v2159
    %v2161 = vlaneseq
    %v2162 = vshrl.u32 %v2161, 7
    %v2163 = vsub.s32 %v2160, %v2162
    %v2164 = vrot.slane %v1057, %v2163
    %v2165 = vcombine.high %v2164, %v2164
    %v2167 = vunpack.c.l.s4 1983009808
    %v2168 = vunpack.c.0.s8 %v2167
    %v2169 = vlaneseq
    %v2170 = vshrl.u32 %v2169, 7
    %v2171 = vsub.s32 %v2168, %v2170
    %v2172 = vrot.slane %v1058, %v2171
    %v2174 = vunpack.c.l.s4 1983009808
    %v2175 = vunpack.c.0.s8 %v2174
    %v2176 = vlaneseq
    %v2177 = vshrl.u32 %v2176, 7
    %v2178 = vsub.s32 %v2175, %v2177
    %v2179 = vrot.slane %v1059, %v2178
    %v2180 = vcombine.low %v2172, %v2179
    %v2182 = vunpack.c.l.s4 1983009808
    %v2183 = vunpack.c.0.s8 %v2182
    %v2184 = vlaneseq
    %v2185 = vshrl.u32 %v2184, 7
    %v2186 = vsub.s32 %v2183, %v2185
    %v2187 = vrot.slane %v1060, %v2186
    %v2189 = vunpack.c.l.s4 1983009808
    %v2190 = vunpack.c.0.s8 %v2189
    %v2191 = vlaneseq
    %v2192 = vshrl.u32 %v2191, 7
    %v2193 = vsub.s32 %v2190, %v2192
    %v2194 = vrot.slane %v1061, %v2193
    %v2195 = vcombine.low %v2187, %v2194
    %v2197 = vunpack.c.l.s4 1983009808
    %v2198 = vunpack.c.0.s8 %v2197
    %v2199 = vlaneseq
    %v2200 = vshrl.u32 %v2199, 7
    %v2201 = vsub.s32 %v2198, %v2200
    %v2202 = vrot.slane %v1062, %v2201
    %v2204 = vunpack.c.l.s4 1983009808
    %v2205 = vunpack.c.0.s8 %v2204
    %v2206 = vlaneseq
    %v2207 = vshrl.u32 %v2206, 7
    %v2208 = vsub.s32 %v2205, %v2207
    %v2209 = vrot.slane %v1063, %v2208
    %v2211 = vunpack.c.l.s4 1983009808
    %v2212 = vunpack.c.0.s8 %v2211
    %v2213 = vlaneseq
    %v2214 = vshrl.u32 %v2213, 7
    %v2215 = vsub.s32 %v2212, %v2214
    %v2216 = vrot.slane %v1064, %v2215
    %v2217 = vcombine.low %v2209, %v2216
    %v2218 = vcombine.high %v2209, %v2216
    %v2220 = vunpack.c.l.s4 1983009808
    %v2221 = vunpack.c.0.s8 %v2220
    %v2222 = vlaneseq
    %v2223 = vshrl.u32 %v2222, 7
    %v2224 = vsub.s32 %v2221, %v2223
    %v2225 = vrot.slane %v1065, %v2224
    %v2227 = vunpack.c.l.s4 1983009808
    %v2228 = vunpack.c.0.s8 %v2227
    %v2229 = vlaneseq
    %v2230 = vshrl.u32 %v2229, 7
    %v2231 = vsub.s32 %v2228, %v2230
    %v2232 = vrot.slane %v1066, %v2231
    %v2233 = vcombine.low %v2225, %v2232
    %v2234 = vcombine.high %v2225, %v2232
    %v2236 = vunpack.c.l.s4 1983009808
    %v2237 = vunpack.c.0.s8 %v2236
    %v2238 = vlaneseq
    %v2239 = vshrl.u32 %v2238, 7
    %v2240 = vsub.s32 %v2237, %v2239
    %v2241 = vrot.slane %v1067, %v2240
    %v2242 = vcombine.high %v2241, %v2241
    %v2244 = vunpack.c.l.s4 1983009808
    %v2245 = vunpack.c.0.s8 %v2244
    %v2246 = vlaneseq
    %v2247 = vshrl.u32 %v2246, 7
    %v2248 = vsub.s32 %v2245, %v2247
    %v2249 = vrot.slane %v1068, %v2248
    %v2251 = vunpack.c.l.s4 1983009808
    %v2252 = vunpack.c.0.s8 %v2251
    %v2253 = vlaneseq
    %v2254 = vshrl.u32 %v2253, 7
    %v2255 = vsub.s32 %v2252, %v2254
    %v2256 = vrot.slane %v1069, %v2255
    %v2257 = vcombine.low %v2249, %v2256
    %v2259 = vunpack.c.l.s4 1983009808
    %v2260 = vunpack.c.0.s8 %v2259
    %v2261 = vlaneseq
    %v2262 = vshrl.u32 %v2261, 7
    %v2263 = vsub.s32 %v2260, %v2262
    %v2264 = vrot.slane %v1070, %v2263
    %v2266 = vunpack.c.l.s4 1983009808
    %v2267 = vunpack.c.0.s8 %v2266
    %v2268 = vlaneseq
    %v2269 = vshrl.u32 %v2268, 7
    %v2270 = vsub.s32 %v2267, %v2269
    %v2271 = vrot.slane %v1071, %v2270
    %v2272 = vcombine.low %v2264, %v2271
    %v2274 = vunpack.c.l.s4 1983009808
    %v2275 = vunpack.c.0.s8 %v2274
    %v2276 = vlaneseq
    %v2277 = vshrl.u32 %v2276, 7
    %v2278 = vsub.s32 %v2275, %v2277
    %v2279 = vrot.slane %v1072, %v2278
    %v2281 = vunpack.c.l.s4 1983009808
    %v2282 = vunpack.c.0.s8 %v2281
    %v2283 = vlaneseq
    %v2284 = vshrl.u32 %v2283, 7
    %v2285 = vsub.s32 %v2282, %v2284
    %v2286 = vrot.slane %v1073, %v2285
    %v2288 = vunpack.c.l.s4 1983009808
    %v2289 = vunpack.c.0.s8 %v2288
    %v2290 = vlaneseq
    %v2291 = vshrl.u32 %v2290, 7
    %v2292 = vsub.s32 %v2289, %v2291
    %v2293 = vrot.slane %v1074, %v2292
    %v2294 = vcombine.low %v2286, %v2293
    %v2295 = vcombine.high %v2286, %v2293
    %v2297 = vunpack.c.l.s4 1983009808
    %v2298 = vunpack.c.0.s8 %v2297
    %v2299 = vlaneseq
    %v2300 = vshrl.u32 %v2299, 7
    %v2301 = vsub.s32 %v2298, %v2300
    %v2302 = vrot.slane %v1075, %v2301
    %v2304 = vunpack.c.l.s4 1983009808
    %v2305 = vunpack.c.0.s8 %v2304
    %v2306 = vlaneseq
    %v2307 = vshrl.u32 %v2306, 7
    %v2308 = vsub.s32 %v2305, %v2307
    %v2309 = vrot.slane %v1076, %v2308
    %v2310 = vcombine.low %v2302, %v2309
    %v2311 = vcombine.high %v2302, %v2309
    %v2313 = vunpack.c.l.s4 1983009808
    %v2314 = vunpack.c.0.s8 %v2313
    %v2315 = vlaneseq
    %v2316 = vshrl.u32 %v2315, 7
    %v2317 = vsub.s32 %v2314, %v2316
    %v2318 = vrot.slane %v1077, %v2317
    %v2319 = vcombine.high %v2318, %v2318
    %v2321 = vunpack.c.l.s4 1983009808
    %v2322 = vunpack.c.0.s8 %v2321
    %v2323 = vlaneseq
    %v2324 = vshrl.u32 %v2323, 7
    %v2325 = vsub.s32 %v2322, %v2324
    %v2326 = vrot.slane %v1078, %v2325
    %v2328 = vunpack.c.l.s4 1983009808
    %v2329 = vunpack.c.0.s8 %v2328
    %v2330 = vlaneseq
    %v2331 = vshrl.u32 %v2330, 7
    %v2332 = vsub.s32 %v2329, %v2331
    %v2333 = vrot.slane %v1079, %v2332
    %v2334 = vcombine.low %v2326, %v2333
    %v2336 = vunpack.c.l.s4 1983009808
    %v2337 = vunpack.c.0.s8 %v2336
    %v2338 = vlaneseq
    %v2339 = vshrl.u32 %v2338, 7
    %v2340 = vsub.s32 %v2337, %v2339
    %v2341 = vrot.slane %v1080, %v2340
    %v2343 = vunpack.c.l.s4 1983009808
    %v2344 = vunpack.c.0.s8 %v2343
    %v2345 = vlaneseq
    %v2346 = vshrl.u32 %v2345, 7
    %v2347 = vsub.s32 %v2344, %v2346
    %v2348 = vrot.slane %v1081, %v2347
    %v2349 = vcombine.low %v2341, %v2348
    %v2351 = vunpack.c.l.s4 1983009808
    %v2352 = vunpack.c.0.s8 %v2351
    %v2353 = vlaneseq
    %v2354 = vshrl.u32 %v2353, 7
    %v2355 = vsub.s32 %v2352, %v2354
    %v2356 = vrot.slane %v1082, %v2355
    %v2358 = vunpack.c.l.s4 1983009808
    %v2359 = vunpack.c.0.s8 %v2358
    %v2360 = vlaneseq
    %v2361 = vshrl.u32 %v2360, 7
    %v2362 = vsub.s32 %v2359, %v2361
    %v2363 = vrot.slane %v1083, %v2362
    %v2365 = vunpack.c.l.s4 1983009808
    %v2366 = vunpack.c.0.s8 %v2365
    %v2367 = vlaneseq
    %v2368 = vshrl.u32 %v2367, 7
    %v2369 = vsub.s32 %v2366, %v2368
    %v2370 = vrot.slane %v1084, %v2369
    %v2371 = vcombine.low %v2363, %v2370
    %v2372 = vcombine.high %v2363, %v2370
    %v2374 = vunpack.c.l.s4 1983009808
    %v2375 = vunpack.c.0.s8 %v2374
    %v2376 = vlaneseq
    %v2377 = vshrl.u32 %v2376, 7
    %v2378 = vsub.s32 %v2375, %v2377
    %v2379 = vrot.slane %v1085, %v2378
    %v2381 = vunpack.c.l.s4 1983009808
    %v2382 = vunpack.c.0.s8 %v2381
    %v2383 = vlaneseq
    %v2384 = vshrl.u32 %v2383, 7
    %v2385 = vsub.s32 %v2382, %v2384
    %v2386 = vrot.slane %v1086, %v2385
    %v2387 = vcombine.low %v2379, %v2386
    %v2388 = vcombine.high %v2379, %v2386
    %v2390 = vunpack.c.l.s4 1983009808
    %v2391 = vunpack.c.0.s8 %v2390
    %v2392 = vlaneseq
    %v2393 = vshrl.u32 %v2392, 7
    %v2394 = vsub.s32 %v2391, %v2393
    %v2395 = vrot.slane %v1087, %v2394
    %v2396 = vcombine.high %v2395, %v2395
    %v2398 = vunpack.c.l.s4 1983009808
    %v2399 = vunpack.c.0.s8 %v2398
    %v2400 = vlaneseq
    %v2401 = vshrl.u32 %v2400, 7
    %v2402 = vsub.s32 %v2399, %v2401
    %v2403 = vrot.slane %v1088, %v2402
    %v2405 = vunpack.c.l.s4 1983009808
    %v2406 = vunpack.c.0.s8 %v2405
    %v2407 = vlaneseq
    %v2408 = vshrl.u32 %v2407, 7
    %v2409 = vsub.s32 %v2406, %v2408
    %v2410 = vrot.slane %v1089, %v2409
    %v2411 = vcombine.low %v2403, %v2410
    %v2413 = vunpack.c.l.s4 1983009808
    %v2414 = vunpack.c.0.s8 %v2413
    %v2415 = vlaneseq
    %v2416 = vshrl.u32 %v2415, 7
    %v2417 = vsub.s32 %v2414, %v2416
    %v2418 = vrot.slane %v1090, %v2417
    %v2420 = vunpack.c.l.s4 1983009808
    %v2421 = vunpack.c.0.s8 %v2420
    %v2422 = vlaneseq
    %v2423 = vshrl.u32 %v2422, 7
    %v2424 = vsub.s32 %v2421, %v2423
    %v2425 = vrot.slane %v1091, %v2424
    %v2426 = vcombine.low %v2418, %v2425
    %v2428 = vunpack.c.l.s4 1983009808
    %v2429 = vunpack.c.0.s8 %v2428
    %v2430 = vlaneseq
    %v2431 = vshrl.u32 %v2430, 7
    %v2432 = vsub.s32 %v2429, %v2431
    %v2433 = vrot.slane %v1092, %v2432
    %v2435 = vunpack.c.l.s4 1983009808
    %v2436 = vunpack.c.0.s8 %v2435
    %v2437 = vlaneseq
    %v2438 = vshrl.u32 %v2437, 7
    %v2439 = vsub.s32 %v2436, %v2438
    %v2440 = vrot.slane %v1093, %v2439
    %v2442 = vunpack.c.l.s4 1983009808
    %v2443 = vunpack.c.0.s8 %v2442
    %v2444 = vlaneseq
    %v2445 = vshrl.u32 %v2444, 7
    %v2446 = vsub.s32 %v2443, %v2445
    %v2447 = vrot.slane %v1094, %v2446
    %v2448 = vcombine.low %v2440, %v2447
    %v2449 = vcombine.high %v2440, %v2447
    %v2451 = vunpack.c.l.s4 1983009808
    %v2452 = vunpack.c.0.s8 %v2451
    %v2453 = vlaneseq
    %v2454 = vshrl.u32 %v2453, 7
    %v2455 = vsub.s32 %v2452, %v2454
    %v2456 = vrot.slane %v1095, %v2455
    %v2458 = vunpack.c.l.s4 1983009808
    %v2459 = vunpack.c.0.s8 %v2458
    %v2460 = vlaneseq
    %v2461 = vshrl.u32 %v2460, 7
    %v2462 = vsub.s32 %v2459, %v2461
    %v2463 = vrot.slane %v1096, %v2462
    %v2464 = vcombine.low %v2456, %v2463
    %v2465 = vcombine.high %v2456, %v2463
    %v2467 = vunpack.c.l.s4 1983009808
    %v2468 = vunpack.c.0.s8 %v2467
    %v2469 = vlaneseq
    %v2470 = vshrl.u32 %v2469, 7
    %v2471 = vsub.s32 %v2468, %v2470
    %v2472 = vrot.slane %v1097, %v2471
    %v2473 = vcombine.high %v2472, %v2472
    %v2475 = vunpack.c.l.s4 1983009808
    %v2476 = vunpack.c.0.s8 %v2475
    %v2477 = vlaneseq
    %v2478 = vshrl.u32 %v2477, 7
    %v2479 = vsub.s32 %v2476, %v2478
    %v2480 = vrot.slane %v1098, %v2479
    %v2482 = vunpack.c.l.s4 1983009808
    %v2483 = vunpack.c.0.s8 %v2482
    %v2484 = vlaneseq
    %v2485 = vshrl.u32 %v2484, 7
    %v2486 = vsub.s32 %v2483, %v2485
    %v2487 = vrot.slane %v1099, %v2486
    %v2488 = vcombine.low %v2480, %v2487
    %v2490 = vunpack.c.l.s4 1983009808
    %v2491 = vunpack.c.0.s8 %v2490
    %v2492 = vlaneseq
    %v2493 = vshrl.u32 %v2492, 7
    %v2494 = vsub.s32 %v2491, %v2493
    %v2495 = vrot.slane %v1100, %v2494
    %v2497 = vunpack.c.l.s4 1983009808
    %v2498 = vunpack.c.0.s8 %v2497
    %v2499 = vlaneseq
    %v2500 = vshrl.u32 %v2499, 7
    %v2501 = vsub.s32 %v2498, %v2500
    %v2502 = vrot.slane %v1101, %v2501
    %v2503 = vcombine.low %v2495, %v2502
    %v2505 = vunpack.c.l.s4 1983009808
    %v2506 = vunpack.c.0.s8 %v2505
    %v2507 = vlaneseq
    %v2508 = vshrl.u32 %v2507, 7
    %v2509 = vsub.s32 %v2506, %v2508
    %v2510 = vrot.slane %v1102, %v2509
    %v2512 = vunpack.c.l.s4 1983009808
    %v2513 = vunpack.c.0.s8 %v2512
    %v2514 = vlaneseq
    %v2515 = vshrl.u32 %v2514, 7
    %v2516 = vsub.s32 %v2513, %v2515
    %v2517 = vrot.slane %v1103, %v2516
    %v2519 = vunpack.c.l.s4 1983009808
    %v2520 = vunpack.c.0.s8 %v2519
    %v2521 = vlaneseq
    %v2522 = vshrl.u32 %v2521, 7
    %v2523 = vsub.s32 %v2520, %v2522
    %v2524 = vrot.slane %v1104, %v2523
    %v2525 = vcombine.low %v2517, %v2524
    %v2526 = vcombine.high %v2517, %v2524
    %v2528 = vunpack.c.l.s4 1983009808
    %v2529 = vunpack.c.0.s8 %v2528
    %v2530 = vlaneseq
    %v2531 = vshrl.u32 %v2530, 7
    %v2532 = vsub.s32 %v2529, %v2531
    %v2533 = vrot.slane %v1105, %v2532
    %v2535 = vunpack.c.l.s4 1983009808
    %v2536 = vunpack.c.0.s8 %v2535
    %v2537 = vlaneseq
    %v2538 = vshrl.u32 %v2537, 7
    %v2539 = vsub.s32 %v2536, %v2538
    %v2540 = vrot.slane %v1106, %v2539
    %v2541 = vcombine.low %v2533, %v2540
    %v2542 = vcombine.high %v2533, %v2540
    %v2544 = vunpack.c.l.s4 1983009808
    %v2545 = vunpack.c.0.s8 %v2544
    %v2546 = vlaneseq
    %v2547 = vshrl.u32 %v2546, 7
    %v2548 = vsub.s32 %v2545, %v2547
    %v2549 = vrot.slane %v1107, %v2548
    %v2550 = vcombine.high %v2549, %v2549
    %v2552 = vunpack.c.l.s4 1983009808
    %v2553 = vunpack.c.0.s8 %v2552
    %v2554 = vlaneseq
    %v2555 = vshrl.u32 %v2554, 7
    %v2556 = vsub.s32 %v2553, %v2555
    %v2557 = vrot.slane %v1108, %v2556
    %v2559 = vunpack.c.l.s4 1983009808
    %v2560 = vunpack.c.0.s8 %v2559
    %v2561 = vlaneseq
    %v2562 = vshrl.u32 %v2561, 7
    %v2563 = vsub.s32 %v2560, %v2562
    %v2564 = vrot.slane %v1109, %v2563
    %v2565 = vcombine.low %v2557, %v2564
    %v2567 = vunpack.c.l.s4 1983009808
    %v2568 = vunpack.c.0.s8 %v2567
    %v2569 = vlaneseq
    %v2570 = vshrl.u32 %v2569, 7
    %v2571 = vsub.s32 %v2568, %v2570
    %v2572 = vrot.slane %v1110, %v2571
    %v2574 = vunpack.c.l.s4 1983009808
    %v2575 = vunpack.c.0.s8 %v2574
    %v2576 = vlaneseq
    %v2577 = vshrl.u32 %v2576, 7
    %v2578 = vsub.s32 %v2575, %v2577
    %v2579 = vrot.slane %v1111, %v2578
    %v2580 = vcombine.low %v2572, %v2579
    %v2582 = vunpack.c.l.s4 1983009808
    %v2583 = vunpack.c.0.s8 %v2582
    %v2584 = vlaneseq
    %v2585 = vshrl.u32 %v2584, 7
    %v2586 = vsub.s32 %v2583, %v2585
    %v2587 = vrot.slane %v1112, %v2586
    %v2589 = vunpack.c.l.s4 1983009808
    %v2590 = vunpack.c.0.s8 %v2589
    %v2591 = vlaneseq
    %v2592 = vshrl.u32 %v2591, 7
    %v2593 = vsub.s32 %v2590, %v2592
    %v2594 = vrot.slane %v1113, %v2593
    %v2596 = vunpack.c.l.s4 1983009808
    %v2597 = vunpack.c.0.s8 %v2596
    %v2598 = vlaneseq
    %v2599 = vshrl.u32 %v2598, 7
    %v2600 = vsub.s32 %v2597, %v2599
    %v2601 = vrot.slane %v1114, %v2600
    %v2602 = vcombine.low %v2594, %v2601
    %v2603 = vcombine.high %v2594, %v2601
    %v2605 = vunpack.c.l.s4 1983009808
    %v2606 = vunpack.c.0.s8 %v2605
    %v2607 = vlaneseq
    %v2608 = vshrl.u32 %v2607, 7
    %v2609 = vsub.s32 %v2606, %v2608
    %v2610 = vrot.slane %v1115, %v2609
    %v2612 = vunpack.c.l.s4 1983009808
    %v2613 = vunpack.c.0.s8 %v2612
    %v2614 = vlaneseq
    %v2615 = vshrl.u32 %v2614, 7
    %v2616 = vsub.s32 %v2613, %v2615
    %v2617 = vrot.slane %v1116, %v2616
    %v2618 = vcombine.low %v2610, %v2617
    %v2619 = vcombine.high %v2610, %v2617
    %v2621 = vunpack.c.l.s4 1983009808
    %v2622 = vunpack.c.0.s8 %v2621
    %v2623 = vlaneseq
    %v2624 = vshrl.u32 %v2623, 7
    %v2625 = vsub.s32 %v2622, %v2624
    %v2626 = vrot.slane %v1117, %v2625
    %v2627 = vcombine.high %v2626, %v2626
    %v2629 = vunpack.c.l.s4 1983009808
    %v2630 = vunpack.c.0.s8 %v2629
    %v2631 = vlaneseq
    %v2632 = vshrl.u32 %v2631, 7
    %v2633 = vsub.s32 %v2630, %v2632
    %v2634 = vrot.slane %v1118, %v2633
    %v2636 = vunpack.c.l.s4 1983009808
    %v2637 = vunpack.c.0.s8 %v2636
    %v2638 = vlaneseq
    %v2639 = vshrl.u32 %v2638, 7
    %v2640 = vsub.s32 %v2637, %v2639
    %v2641 = vrot.slane %v1119, %v2640
    %v2642 = vcombine.low %v2634, %v2641
    %v2644 = vunpack.c.l.s4 1983009808
    %v2645 = vunpack.c.0.s8 %v2644
    %v2646 = vlaneseq
    %v2647 = vshrl.u32 %v2646, 7
    %v2648 = vsub.s32 %v2645, %v2647
    %v2649 = vrot.slane %v1120, %v2648
    %v2651 = vunpack.c.l.s4 1983009808
    %v2652 = vunpack.c.0.s8 %v2651
    %v2653 = vlaneseq
    %v2654 = vshrl.u32 %v2653, 7
    %v2655 = vsub.s32 %v2652, %v2654
    %v2656 = vrot.slane %v1121, %v2655
    %v2657 = vcombine.low %v2649, %v2656
    %v2659 = vunpack.c.l.s4 1983009808
    %v2660 = vunpack.c.0.s8 %v2659
    %v2661 = vlaneseq
    %v2662 = vshrl.u32 %v2661, 7
    %v2663 = vsub.s32 %v2660, %v2662
    %v2664 = vrot.slane %v1122, %v2663
    %v2665 = vcombine.high %v1272, %v1272
    %v2666 = vcombine.low %v1447, %v1448
    %v2667 = vcombine.high %v1447, %v1448
    %v2668 = vcombine.low %v1487, %v1524
    %v2669 = vcombine.high %v1487, %v1524
    %v2671 = vunpack.c.l.s4 1983009808
    %v2672 = vunpack.c.0.s8 %v2671
    %v2673 = vlaneseq
    %v2674 = vshrl.u32 %v2673, 7
    %v2675 = vsub.s32 %v2672, %v2674
    %v2676 = vrot.slane %v2666, %v2675
    %v2678 = vunpack.c.l.s4 1983009808
    %v2679 = vunpack.c.0.s8 %v2678
    %v2680 = vlaneseq
    %v2681 = vshrl.u32 %v2680, 7
    %v2682 = vsub.s32 %v2679, %v2681
    %v2683 = vrot.slane %v2667, %v2682
    %v2685 = vunpack.c.l.s4 1983009808
    %v2686 = vunpack.c.0.s8 %v2685
    %v2687 = vlaneseq
    %v2688 = vshrl.u32 %v2687, 7
    %v2689 = vsub.s32 %v2686, %v2688
    %v2690 = vrot.slane %v2668, %v2689
    %v2692 = vunpack.c.l.s4 1983009808
    %v2693 = vunpack.c.0.s8 %v2692
    %v2694 = vlaneseq
    %v2695 = vshrl.u32 %v2694, 7
    %v2696 = vsub.s32 %v2693, %v2695
    %v2697 = vrot.slane %v2669, %v2696
    %v2698 = vcombine.low %v2676, %v2690
    %v2699 = vcombine.high %v2676, %v2690
    %v2700 = vcombine.low %v2683, %v2697
    %v2701 = vcombine.high %v2683, %v2697
    %v2702 = vcombine.low %v1463, %v1464
    %v2703 = vcombine.high %v1463, %v1464
    %v2704 = vcombine.low %v1502, %v1540
    %v2705 = vcombine.high %v1502, %v1540
    %v2707 = vunpack.c.l.s4 1983009808
    %v2708 = vunpack.c.0.s8 %v2707
    %v2709 = vlaneseq
    %v2710 = vshrl.u32 %v2709, 7
    %v2711 = vsub.s32 %v2708, %v2710
    %v2712 = vrot.slane %v2702, %v2711
    %v2714 = vunpack.c.l.s4 1983009808
    %v2715 = vunpack.c.0.s8 %v2714
    %v2716 = vlaneseq
    %v2717 = vshrl.u32 %v2716, 7
    %v2718 = vsub.s32 %v2715, %v2717
    %v2719 = vrot.slane %v2703, %v2718
    %v2721 = vunpack.c.l.s4 1983009808
    %v2722 = vunpack.c.0.s8 %v2721
    %v2723 = vlaneseq
    %v2724 = vshrl.u32 %v2723, 7
    %v2725 = vsub.s32 %v2722, %v2724
    %v2726 = vrot.slane %v2704, %v2725
    %v2728 = vunpack.c.l.s4 1983009808
    %v2729 = vunpack.c.0.s8 %v2728
    %v2730 = vlaneseq
    %v2731 = vshrl.u32 %v2730, 7
    %v2732 = vsub.s32 %v2729, %v2731
    %v2733 = vrot.slane %v2705, %v2732
    %v2734 = vcombine.low %v2712, %v2726
    %v2735 = vcombine.high %v2712, %v2726
    %v2736 = vcombine.low %v2719, %v2733
    %v2737 = vcombine.high %v2719, %v2733
    %v2738 = vcombine.low %v1471, %v1472
    %v2739 = vcombine.low %v1509, %v1548
    %v2741 = vunpack.c.l.s4 1983009808
    %v2742 = vunpack.c.0.s8 %v2741
    %v2743 = vlaneseq
    %v2744 = vshrl.u32 %v2743, 7
    %v2745 = vsub.s32 %v2742, %v2744
    %v2746 = vrot.slane %v2738, %v2745
    %v2748 = vunpack.c.l.s4 1983009808
    %v2749 = vunpack.c.0.s8 %v2748
    %v2750 = vlaneseq
    %v2751 = vshrl.u32 %v2750, 7
    %v2752 = vsub.s32 %v2749, %v2751
    %v2753 = vrot.slane %v2739, %v2752
    %v2754 = vcombine.low %v2746, %v2753
    %v2755 = vcombine.low %v1525, %v1564
    %v2756 = vcombine.high %v1525, %v1564
    %v2757 = vcombine.low %v1601, %v1602
    %v2758 = vcombine.high %v1601, %v1602
    %v2760 = vunpack.c.l.s4 1983009808
    %v2761 = vunpack.c.0.s8 %v2760
    %v2762 = vlaneseq
    %v2763 = vshrl.u32 %v2762, 7
    %v2764 = vsub.s32 %v2761, %v2763
    %v2765 = vrot.slane %v2755, %v2764
    %v2767 = vunpack.c.l.s4 1983009808
    %v2768 = vunpack.c.0.s8 %v2767
    %v2769 = vlaneseq
    %v2770 = vshrl.u32 %v2769, 7
    %v2771 = vsub.s32 %v2768, %v2770
    %v2772 = vrot.slane %v2756, %v2771
    %v2774 = vunpack.c.l.s4 1983009808
    %v2775 = vunpack.c.0.s8 %v2774
    %v2776 = vlaneseq
    %v2777 = vshrl.u32 %v2776, 7
    %v2778 = vsub.s32 %v2775, %v2777
    %v2779 = vrot.slane %v2757, %v2778
    %v2781 = vunpack.c.l.s4 1983009808
    %v2782 = vunpack.c.0.s8 %v2781
    %v2783 = vlaneseq
    %v2784 = vshrl.u32 %v2783, 7
    %v2785 = vsub.s32 %v2782, %v2784
    %v2786 = vrot.slane %v2758, %v2785
    %v2787 = vcombine.low %v2765, %v2779
    %v2788 = vcombine.high %v2765, %v2779
    %v2789 = vcombine.low %v2772, %v2786
    %v2790 = vcombine.high %v2772, %v2786
    %v2791 = vcombine.low %v1541, %v1579
    %v2792 = vcombine.high %v1541, %v1579
    %v2793 = vcombine.low %v1617, %v1618
    %v2794 = vcombine.high %v1617, %v1618
    %v2796 = vunpack.c.l.s4 1983009808
    %v2797 = vunpack.c.0.s8 %v2796
    %v2798 = vlaneseq
    %v2799 = vshrl.u32 %v2798, 7
    %v2800 = vsub.s32 %v2797, %v2799
    %v2801 = vrot.slane %v2791, %v2800
    %v2803 = vunpack.c.l.s4 1983009808
    %v2804 = vunpack.c.0.s8 %v2803
    %v2805 = vlaneseq
    %v2806 = vshrl.u32 %v2805, 7
    %v2807 = vsub.s32 %v2804, %v2806
    %v2808 = vrot.slane %v2792, %v2807
    %v2810 = vunpack.c.l.s4 1983009808
    %v2811 = vunpack.c.0.s8 %v2810
    %v2812 = vlaneseq
    %v2813 = vshrl.u32 %v2812, 7
    %v2814 = vsub.s32 %v2811, %v2813
    %v2815 = vrot.slane %v2793, %v2814
    %v2817 = vunpack.c.l.s4 1983009808
    %v2818 = vunpack.c.0.s8 %v2817
    %v2819 = vlaneseq
    %v2820 = vshrl.u32 %v2819, 7
    %v2821 = vsub.s32 %v2818, %v2820
    %v2822 = vrot.slane %v2794, %v2821
    %v2823 = vcombine.low %v2801, %v2815
    %v2824 = vcombine.high %v2801, %v2815
    %v2825 = vcombine.low %v2808, %v2822
    %v2826 = vcombine.high %v2808, %v2822
    %v2827 = vcombine.low %v1549, %v1586
    %v2828 = vcombine.low %v1625, %v1626
    %v2830 = vunpack.c.l.s4 1983009808
    %v2831 = vunpack.c.0.s8 %v2830
    %v2832 = vlaneseq
    %v2833 = vshrl.u32 %v2832, 7
    %v2834 = vsub.s32 %v2831, %v2833
    %v2835 = vrot.slane %v2827, %v2834
    %v2837 = vunpack.c.l.s4 1983009808
    %v2838 = vunpack.c.0.s8 %v2837
    %v2839 = vlaneseq
    %v2840 = vshrl.u32 %v2839, 7
    %v2841 = vsub.s32 %v2838, %v2840
    %v2842 = vrot.slane %v2828, %v2841
    %v2843 = vcombine.low %v2835, %v2842
    %v2844 = vcombine.low %v1641, %v1678
    %v2845 = vcombine.high %v1641, %v1678
    %v2846 = vcombine.low %v1679, %v1718
    %v2847 = vcombine.high %v1679, %v1718
    %v2849 = vunpack.c.l.s4 1983009808
    %v2850 = vunpack.c.0.s8 %v2849
    %v2851 = vlaneseq
    %v2852 = vshrl.u32 %v2851, 7
    %v2853 = vsub.s32 %v2850, %v2852
    %v2854 = vrot.slane %v2844, %v2853
    %v2856 = vunpack.c.l.s4 1983009808
    %v2857 = vunpack.c.0.s8 %v2856
    %v2858 = vlaneseq
    %v2859 = vshrl.u32 %v2858, 7
    %v2860 = vsub.s32 %v2857, %v2859
    %v2861 = vrot.slane %v2845, %v2860
    %v2863 = vunpack.c.l.s4 1983009808
    %v2864 = vunpack.c.0.s8 %v2863
    %v2865 = vlaneseq
    %v2866 = vshrl.u32 %v2865, 7
    %v2867 = vsub.s32 %v2864, %v2866
    %v2868 = vrot.slane %v2846, %v2867
    %v2870 = vunpack.c.l.s4 1983009808
    %v2871 = vunpack.c.0.s8 %v2870
    %v2872 = vlaneseq
    %v2873 = vshrl.u32 %v2872, 7
    %v2874 = vsub.s32 %v2871, %v2873
    %v2875 = vrot.slane %v2847, %v2874
    %v2876 = vcombine.low %v2854, %v2868
    %v2877 = vcombine.high %v2854, %v2868
    %v2878 = vcombine.low %v2861, %v2875
    %v2879 = vcombine.high %v2861, %v2875
    %v2880 = vcombine.low %v1656, %v1694
    %v2881 = vcombine.high %v1656, %v1694
    %v2882 = vcombine.low %v1695, %v1733
    %v2883 = vcombine.high %v1695, %v1733
    %v2885 = vunpack.c.l.s4 1983009808
    %v2886 = vunpack.c.0.s8 %v2885
    %v2887 = vlaneseq
    %v2888 = vshrl.u32 %v2887, 7
    %v2889 = vsub.s32 %v2886, %v2888
    %v2890 = vrot.slane %v2880, %v2889
    %v2892 = vunpack.c.l.s4 1983009808
    %v2893 = vunpack.c.0.s8 %v2892
    %v2894 = vlaneseq
    %v2895 = vshrl.u32 %v2894, 7
    %v2896 = vsub.s32 %v2893, %v2895
    %v2897 = vrot.slane %v2881, %v2896
    %v2899 = vunpack.c.l.s4 1983009808
    %v2900 = vunpack.c.0.s8 %v2899
    %v2901 = vlaneseq
    %v2902 = vshrl.u32 %v2901, 7
    %v2903 = vsub.s32 %v2900, %v2902
    %v2904 = vrot.slane %v2882, %v2903
    %v2906 = vunpack.c.l.s4 1983009808
    %v2907 = vunpack.c.0.s8 %v2906
    %v2908 = vlaneseq
    %v2909 = vshrl.u32 %v2908, 7
    %v2910 = vsub.s32 %v2907, %v2909
    %v2911 = vrot.slane %v2883, %v2910
    %v2912 = vcombine.low %v2890, %v2904
    %v2913 = vcombine.high %v2890, %v2904
    %v2914 = vcombine.low %v2897, %v2911
    %v2915 = vcombine.high %v2897, %v2911
    %v2916 = vcombine.low %v1663, %v1702
    %v2917 = vcombine.low %v1703, %v1740
    %v2919 = vunpack.c.l.s4 1983009808
    %v2920 = vunpack.c.0.s8 %v2919
    %v2921 = vlaneseq
    %v2922 = vshrl.u32 %v2921, 7
    %v2923 = vsub.s32 %v2920, %v2922
    %v2924 = vrot.slane %v2916, %v2923
    %v2926 = vunpack.c.l.s4 1983009808
    %v2927 = vunpack.c.0.s8 %v2926
    %v2928 = vlaneseq
    %v2929 = vshrl.u32 %v2928, 7
    %v2930 = vsub.s32 %v2927, %v2929
    %v2931 = vrot.slane %v2917, %v2930
    %v2932 = vcombine.low %v2924, %v2931
    %v2933 = vcombine.low %v1755, %v1756
    %v2934 = vcombine.high %v1755, %v1756
    %v2935 = vcombine.low %v1795, %v1832
    %v2936 = vcombine.high %v1795, %v1832
    %v2938 = vunpack.c.l.s4 1983009808
    %v2939 = vunpack.c.0.s8 %v2938
    %v2940 = vlaneseq
    %v2941 = vshrl.u32 %v2940, 7
    %v2942 = vsub.s32 %v2939, %v2941
    %v2943 = vrot.slane %v2933, %v2942
    %v2945 = vunpack.c.l.s4 1983009808
    %v2946 = vunpack.c.0.s8 %v2945
    %v2947 = vlaneseq
    %v2948 = vshrl.u32 %v2947, 7
    %v2949 = vsub.s32 %v2946, %v2948
    %v2950 = vrot.slane %v2934, %v2949
    %v2952 = vunpack.c.l.s4 1983009808
    %v2953 = vunpack.c.0.s8 %v2952
    %v2954 = vlaneseq
    %v2955 = vshrl.u32 %v2954, 7
    %v2956 = vsub.s32 %v2953, %v2955
    %v2957 = vrot.slane %v2935, %v2956
    %v2959 = vunpack.c.l.s4 1983009808
    %v2960 = vunpack.c.0.s8 %v2959
    %v2961 = vlaneseq
    %v2962 = vshrl.u32 %v2961, 7
    %v2963 = vsub.s32 %v2960, %v2962
    %v2964 = vrot.slane %v2936, %v2963
    %v2965 = vcombine.low %v2943, %v2957
    %v2966 = vcombine.high %v2943, %v2957
    %v2967 = vcombine.low %v2950, %v2964
    %v2968 = vcombine.high %v2950, %v2964
    %v2969 = vcombine.low %v1771, %v1772
    %v2970 = vcombine.high %v1771, %v1772
    %v2971 = vcombine.low %v1810, %v1848
    %v2972 = vcombine.high %v1810, %v1848
    %v2974 = vunpack.c.l.s4 1983009808
    %v2975 = vunpack.c.0.s8 %v2974
    %v2976 = vlaneseq
    %v2977 = vshrl.u32 %v2976, 7
    %v2978 = vsub.s32 %v2975, %v2977
    %v2979 = vrot.slane %v2969, %v2978
    %v2981 = vunpack.c.l.s4 1983009808
    %v2982 = vunpack.c.0.s8 %v2981
    %v2983 = vlaneseq
    %v2984 = vshrl.u32 %v2983, 7
    %v2985 = vsub.s32 %v2982, %v2984
    %v2986 = vrot.slane %v2970, %v2985
    %v2988 = vunpack.c.l.s4 1983009808
    %v2989 = vunpack.c.0.s8 %v2988
    %v2990 = vlaneseq
    %v2991 = vshrl.u32 %v2990, 7
    %v2992 = vsub.s32 %v2989, %v2991
    %v2993 = vrot.slane %v2971, %v2992
    %v2995 = vunpack.c.l.s4 1983009808
    %v2996 = vunpack.c.0.s8 %v2995
    %v2997 = vlaneseq
    %v2998 = vshrl.u32 %v2997, 7
    %v2999 = vsub.s32 %v2996, %v2998
    %v3000 = vrot.slane %v2972, %v2999
    %v3001 = vcombine.low %v2979, %v2993
    %v3002 = vcombine.high %v2979, %v2993
    %v3003 = vcombine.low %v2986, %v3000
    %v3004 = vcombine.high %v2986, %v3000
    %v3005 = vcombine.low %v1779, %v1780
    %v3006 = vcombine.low %v1817, %v1856
    %v3008 = vunpack.c.l.s4 1983009808
    %v3009 = vunpack.c.0.s8 %v3008
    %v3010 = vlaneseq
    %v3011 = vshrl.u32 %v3010, 7
    %v3012 = vsub.s32 %v3009, %v3011
    %v3013 = vrot.slane %v3005, %v3012
    %v3015 = vunpack.c.l.s4 1983009808
    %v3016 = vunpack.c.0.s8 %v3015
    %v3017 = vlaneseq
    %v3018 = vshrl.u32 %v3017, 7
    %v3019 = vsub.s32 %v3016, %v3018
    %v3020 = vrot.slane %v3006, %v3019
    %v3021 = vcombine.low %v3013, %v3020
    %v3022 = vcombine.low %v1833, %v1872
    %v3023 = vcombine.high %v1833, %v1872
    %v3024 = vcombine.low %v1909, %v1910
    %v3025 = vcombine.high %v1909, %v1910
    %v3027 = vunpack.c.l.s4 1983009808
    %v3028 = vunpack.c.0.s8 %v3027
    %v3029 = vlaneseq
    %v3030 = vshrl.u32 %v3029, 7
    %v3031 = vsub.s32 %v3028, %v3030
    %v3032 = vrot.slane %v3022, %v3031
    %v3034 = vunpack.c.l.s4 1983009808
    %v3035 = vunpack.c.0.s8 %v3034
    %v3036 = vlaneseq
    %v3037 = vshrl.u32 %v3036, 7
    %v3038 = vsub.s32 %v3035, %v3037
    %v3039 = vrot.slane %v3023, %v3038
    %v3041 = vunpack.c.l.s4 1983009808
    %v3042 = vunpack.c.0.s8 %v3041
    %v3043 = vlaneseq
    %v3044 = vshrl.u32 %v3043, 7
    %v3045 = vsub.s32 %v3042, %v3044
    %v3046 = vrot.slane %v3024, %v3045
    %v3048 = vunpack.c.l.s4 1983009808
    %v3049 = vunpack.c.0.s8 %v3048
    %v3050 = vlaneseq
    %v3051 = vshrl.u32 %v3050, 7
    %v3052 = vsub.s32 %v3049, %v3051
    %v3053 = vrot.slane %v3025, %v3052
    %v3054 = vcombine.low %v3032, %v3046
    %v3055 = vcombine.high %v3032, %v3046
    %v3056 = vcombine.low %v3039, %v3053
    %v3057 = vcombine.high %v3039, %v3053
    %v3058 = vcombine.low %v1849, %v1887
    %v3059 = vcombine.high %v1849, %v1887
    %v3060 = vcombine.low %v1925, %v1926
    %v3061 = vcombine.high %v1925, %v1926
    %v3063 = vunpack.c.l.s4 1983009808
    %v3064 = vunpack.c.0.s8 %v3063
    %v3065 = vlaneseq
    %v3066 = vshrl.u32 %v3065, 7
    %v3067 = vsub.s32 %v3064, %v3066
    %v3068 = vrot.slane %v3058, %v3067
    %v3070 = vunpack.c.l.s4 1983009808
    %v3071 = vunpack.c.0.s8 %v3070
    %v3072 = vlaneseq
    %v3073 = vshrl.u32 %v3072, 7
    %v3074 = vsub.s32 %v3071, %v3073
    %v3075 = vrot.slane %v3059, %v3074
    %v3077 = vunpack.c.l.s4 1983009808
    %v3078 = vunpack.c.0.s8 %v3077
    %v3079 = vlaneseq
    %v3080 = vshrl.u32 %v3079, 7
    %v3081 = vsub.s32 %v3078, %v3080
    %v3082 = vrot.slane %v3060, %v3081
    %v3084 = vunpack.c.l.s4 1983009808
    %v3085 = vunpack.c.0.s8 %v3084
    %v3086 = vlaneseq
    %v3087 = vshrl.u32 %v3086, 7
    %v3088 = vsub.s32 %v3085, %v3087
    %v3089 = vrot.slane %v3061, %v3088
    %v3090 = vcombine.low %v3068, %v3082
    %v3091 = vcombine.high %v3068, %v3082
    %v3092 = vcombine.low %v3075, %v3089
    %v3093 = vcombine.high %v3075, %v3089
    %v3094 = vcombine.low %v1857, %v1894
    %v3095 = vcombine.low %v1933, %v1934
    %v3097 = vunpack.c.l.s4 1983009808
    %v3098 = vunpack.c.0.s8 %v3097
    %v3099 = vlaneseq
    %v3100 = vshrl.u32 %v3099, 7
    %v3101 = vsub.s32 %v3098, %v3100
    %v3102 = vrot.slane %v3094, %v3101
    %v3104 = vunpack.c.l.s4 1983009808
    %v3105 = vunpack.c.0.s8 %v3104
    %v3106 = vlaneseq
    %v3107 = vshrl.u32 %v3106, 7
    %v3108 = vsub.s32 %v3105, %v3107
    %v3109 = vrot.slane %v3095, %v3108
    %v3110 = vcombine.low %v3102, %v3109
    %v3111 = vcombine.low %v1949, %v1986
    %v3112 = vcombine.high %v1949, %v1986
    %v3113 = vcombine.low %v1987, %v2026
    %v3114 = vcombine.high %v1987, %v2026
    %v3116 = vunpack.c.l.s4 1983009808
    %v3117 = vunpack.c.0.s8 %v3116
    %v3118 = vlaneseq
    %v3119 = vshrl.u32 %v3118, 7
    %v3120 = vsub.s32 %v3117, %v3119
    %v3121 = vrot.slane %v3111, %v3120
    %v3123 = vunpack.c.l.s4 1983009808
    %v3124 = vunpack.c.0.s8 %v3123
    %v3125 = vlaneseq
    %v3126 = vshrl.u32 %v3125, 7
    %v3127 = vsub.s32 %v3124, %v3126
    %v3128 = vrot.slane %v3112, %v3127
    %v3130 = vunpack.c.l.s4 1983009808
    %v3131 = vunpack.c.0.s8 %v3130
    %v3132 = vlaneseq
    %v3133 = vshrl.u32 %v3132, 7
    %v3134 = vsub.s32 %v3131, %v3133
    %v3135 = vrot.slane %v3113, %v3134
    %v3137 = vunpack.c.l.s4 1983009808
    %v3138 = vunpack.c.0.s8 %v3137
    %v3139 = vlaneseq
    %v3140 = vshrl.u32 %v3139, 7
    %v3141 = vsub.s32 %v3138, %v3140
    %v3142 = vrot.slane %v3114, %v3141
    %v3143 = vcombine.low %v3121, %v3135
    %v3144 = vcombine.high %v3121, %v3135
    %v3145 = vcombine.low %v3128, %v3142
    %v3146 = vcombine.high %v3128, %v3142
    %v3147 = vcombine.low %v1964, %v2002
    %v3148 = vcombine.high %v1964, %v2002
    %v3149 = vcombine.low %v2003, %v2041
    %v3150 = vcombine.high %v2003, %v2041
    %v3152 = vunpack.c.l.s4 1983009808
    %v3153 = vunpack.c.0.s8 %v3152
    %v3154 = vlaneseq
    %v3155 = vshrl.u32 %v3154, 7
    %v3156 = vsub.s32 %v3153, %v3155
    %v3157 = vrot.slane %v3147, %v3156
    %v3159 = vunpack.c.l.s4 1983009808
    %v3160 = vunpack.c.0.s8 %v3159
    %v3161 = vlaneseq
    %v3162 = vshrl.u32 %v3161, 7
    %v3163 = vsub.s32 %v3160, %v3162
    %v3164 = vrot.slane %v3148, %v3163
    %v3166 = vunpack.c.l.s4 1983009808
    %v3167 = vunpack.c.0.s8 %v3166
    %v3168 = vlaneseq
    %v3169 = vshrl.u32 %v3168, 7
    %v3170 = vsub.s32 %v3167, %v3169
    %v3171 = vrot.slane %v3149, %v3170
    %v3173 = vunpack.c.l.s4 1983009808
    %v3174 = vunpack.c.0.s8 %v3173
    %v3175 = vlaneseq
    %v3176 = vshrl.u32 %v3175, 7
    %v3177 = vsub.s32 %v3174, %v3176
    %v3178 = vrot.slane %v3150, %v3177
    %v3179 = vcombine.low %v3157, %v3171
    %v3180 = vcombine.high %v3157, %v3171
    %v3181 = vcombine.low %v3164, %v3178
    %v3182 = vcombine.high %v3164, %v3178
    %v3183 = vcombine.low %v1971, %v2010
    %v3184 = vcombine.low %v2011, %v2048
    %v3186 = vunpack.c.l.s4 1983009808
    %v3187 = vunpack.c.0.s8 %v3186
    %v3188 = vlaneseq
    %v3189 = vshrl.u32 %v3188, 7
    %v3190 = vsub.s32 %v3187, %v3189
    %v3191 = vrot.slane %v3183, %v3190
    %v3193 = vunpack.c.l.s4 1983009808
    %v3194 = vunpack.c.0.s8 %v3193
    %v3195 = vlaneseq
    %v3196 = vshrl.u32 %v3195, 7
    %v3197 = vsub.s32 %v3194, %v3196
    %v3198 = vrot.slane %v3184, %v3197
    %v3199 = vcombine.low %v3191, %v3198
    %v3200 = vcombine.low %v2063, %v2064
    %v3201 = vcombine.high %v2063, %v2064
    %v3202 = vcombine.low %v2103, %v2140
    %v3203 = vcombine.high %v2103, %v2140
    %v3205 = vunpack.c.l.s4 1983009808
    %v3206 = vunpack.c.0.s8 %v3205
    %v3207 = vlaneseq
    %v3208 = vshrl.u32 %v3207, 7
    %v3209 = vsub.s32 %v3206, %v3208
    %v3210 = vrot.slane %v3200, %v3209
    %v3212 = vunpack.c.l.s4 1983009808
    %v3213 = vunpack.c.0.s8 %v3212
    %v3214 = vlaneseq
    %v3215 = vshrl.u32 %v3214, 7
    %v3216 = vsub.s32 %v3213, %v3215
    %v3217 = vrot.slane %v3201, %v3216
    %v3219 = vunpack.c.l.s4 1983009808
    %v3220 = vunpack.c.0.s8 %v3219
    %v3221 = vlaneseq
    %v3222 = vshrl.u32 %v3221, 7
    %v3223 = vsub.s32 %v3220, %v3222
    %v3224 = vrot.slane %v3202, %v3223
    %v3226 = vunpack.c.l.s4 1983009808
    %v3227 = vunpack.c.0.s8 %v3226
    %v3228 = vlaneseq
    %v3229 = vshrl.u32 %v3228, 7
    %v3230 = vsub.s32 %v3227, %v3229
    %v3231 = vrot.slane %v3203, %v3230
    %v3232 = vcombine.low %v3210, %v3224
    %v3233 = vcombine.high %v3210, %v3224
    %v3234 = vcombine.low %v3217, %v3231
    %v3235 = vcombine.high %v3217, %v3231
    %v3236 = vcombine.low %v2079, %v2080
    %v3237 = vcombine.high %v2079, %v2080
    %v3238 = vcombine.low %v2118, %v2156
    %v3239 = vcombine.high %v2118, %v2156
    %v3241 = vunpack.c.l.s4 1983009808
    %v3242 = vunpack.c.0.s8 %v3241
    %v3243 = vlaneseq
    %v3244 = vshrl.u32 %v3243, 7
    %v3245 = vsub.s32 %v3242, %v3244
    %v3246 = vrot.slane %v3236, %v3245
    %v3248 = vunpack.c.l.s4 1983009808
    %v3249 = vunpack.c.0.s8 %v3248
    %v3250 = vlaneseq
    %v3251 = vshrl.u32 %v3250, 7
    %v3252 = vsub.s32 %v3249, %v3251
    %v3253 = vrot.slane %v3237, %v3252
    %v3255 = vunpack.c.l.s4 1983009808
    %v3256 = vunpack.c.0.s8 %v3255
    %v3257 = vlaneseq
    %v3258 = vshrl.u32 %v3257, 7
    %v3259 = vsub.s32 %v3256, %v3258
    %v3260 = vrot.slane %v3238, %v3259
    %v3262 = vunpack.c.l.s4 1983009808
    %v3263 = vunpack.c.0.s8 %v3262
    %v3264 = vlaneseq
    %v3265 = vshrl.u32 %v3264, 7
    %v3266 = vsub.s32 %v3263, %v3265
    %v3267 = vrot.slane %v3239, %v3266
    %v3268 = vcombine.low %v3246, %v3260
    %v3269 = vcombine.high %v3246, %v3260
    %v3270 = vcombine.low %v3253, %v3267
    %v3271 = vcombine.high %v3253, %v3267
    %v3272 = vcombine.low %v2087, %v2088
    %v3273 = vcombine.low %v2125, %v2164
    %v3275 = vunpack.c.l.s4 1983009808
    %v3276 = vunpack.c.0.s8 %v3275
    %v3277 = vlaneseq
    %v3278 = vshrl.u32 %v3277, 7
    %v3279 = vsub.s32 %v3276, %v3278
    %v3280 = vrot.slane %v3272, %v3279
    %v3282 = vunpack.c.l.s4 1983009808
    %v3283 = vunpack.c.0.s8 %v3282
    %v3284 = vlaneseq
    %v3285 = vshrl.u32 %v3284, 7
    %v3286 = vsub.s32 %v3283, %v3285
    %v3287 = vrot.slane %v3273, %v3286
    %v3288 = vcombine.low %v3280, %v3287
    %v3289 = vcombine.low %v2141, %v2180
    %v3290 = vcombine.high %v2141, %v2180
    %v3291 = vcombine.low %v2217, %v2218
    %v3292 = vcombine.high %v2217, %v2218
    %v3294 = vunpack.c.l.s4 1983009808
    %v3295 = vunpack.c.0.s8 %v3294
    %v3296 = vlaneseq
    %v3297 = vshrl.u32 %v3296, 7
    %v3298 = vsub.s32 %v3295, %v3297
    %v3299 = vrot.slane %v3289, %v3298
    %v3301 = vunpack.c.l.s4 1983009808
    %v3302 = vunpack.c.0.s8 %v3301
    %v3303 = vlaneseq
    %v3304 = vshrl.u32 %v3303, 7
    %v3305 = vsub.s32 %v3302, %v3304
    %v3306 = vrot.slane %v3290, %v3305
    %v3308 = vunpack.c.l.s4 1983009808
    %v3309 = vunpack.c.0.s8 %v3308
    %v3310 = vlaneseq
    %v3311 = vshrl.u32 %v3310, 7
    %v3312 = vsub.s32 %v3309, %v3311
    %v3313 = vrot.slane %v3291, %v3312
    %v3315 = vunpack.c.l.s4 1983009808
    %v3316 = vunpack.c.0.s8 %v3315
    %v3317 = vlaneseq
    %v3318 = vshrl.u32 %v3317, 7
    %v3319 = vsub.s32 %v3316, %v3318
    %v3320 = vrot.slane %v3292, %v3319
    %v3321 = vcombine.low %v3299, %v3313
    %v3322 = vcombine.high %v3299, %v3313
    %v3323 = vcombine.low %v3306, %v3320
    %v3324 = vcombine.high %v3306, %v3320
    %v3325 = vcombine.low %v2157, %v2195
    %v3326 = vcombine.high %v2157, %v2195
    %v3327 = vcombine.low %v2233, %v2234
    %v3328 = vcombine.high %v2233, %v2234
    %v3330 = vunpack.c.l.s4 1983009808
    %v3331 = vunpack.c.0.s8 %v3330
    %v3332 = vlaneseq
    %v3333 = vshrl.u32 %v3332, 7
    %v3334 = vsub.s32 %v3331, %v3333
    %v3335 = vrot.slane %v3325, %v3334
    %v3337 = vunpack.c.l.s4 1983009808
    %v3338 = vunpack.c.0.s8 %v3337
    %v3339 = vlaneseq
    %v3340 = vshrl.u32 %v3339, 7
    %v3341 = vsub.s32 %v3338, %v3340
    %v3342 = vrot.slane %v3326, %v3341
    %v3344 = vunpack.c.l.s4 1983009808
    %v3345 = vunpack.c.0.s8 %v3344
    %v3346 = vlaneseq
    %v3347 = vshrl.u32 %v3346, 7
    %v3348 = vsub.s32 %v3345, %v3347
    %v3349 = vrot.slane %v3327, %v3348
    %v3351 = vunpack.c.l.s4 1983009808
    %v3352 = vunpack.c.0.s8 %v3351
    %v3353 = vlaneseq
    %v3354 = vshrl.u32 %v3353, 7
    %v3355 = vsub.s32 %v3352, %v3354
    %v3356 = vrot.slane %v3328, %v3355
    %v3357 = vcombine.low %v3335, %v3349
    %v3358 = vcombine.high %v3335, %v3349
    %v3359 = vcombine.low %v3342, %v3356
    %v3360 = vcombine.high %v3342, %v3356
    %v3361 = vcombine.low %v2165, %v2202
    %v3362 = vcombine.low %v2241, %v2242
    %v3364 = vunpack.c.l.s4 1983009808
    %v3365 = vunpack.c.0.s8 %v3364
    %v3366 = vlaneseq
    %v3367 = vshrl.u32 %v3366, 7
    %v3368 = vsub.s32 %v3365, %v3367
    %v3369 = vrot.slane %v3361, %v3368
    %v3371 = vunpack.c.l.s4 1983009808
    %v3372 = vunpack.c.0.s8 %v3371
    %v3373 = vlaneseq
    %v3374 = vshrl.u32 %v3373, 7
    %v3375 = vsub.s32 %v3372, %v3374
    %v3376 = vrot.slane %v3362, %v3375
    %v3377 = vcombine.low %v3369, %v3376
    %v3378 = vcombine.low %v2257, %v2294
    %v3379 = vcombine.high %v2257, %v2294
    %v3380 = vcombine.low %v2295, %v2334
    %v3381 = vcombine.high %v2295, %v2334
    %v3383 = vunpack.c.l.s4 1983009808
    %v3384 = vunpack.c.0.s8 %v3383
    %v3385 = vlaneseq
    %v3386 = vshrl.u32 %v3385, 7
    %v3387 = vsub.s32 %v3384, %v3386
    %v3388 = vrot.slane %v3378, %v3387
    %v3390 = vunpack.c.l.s4 1983009808
    %v3391 = vunpack.c.0.s8 %v3390
    %v3392 = vlaneseq
    %v3393 = vshrl.u32 %v3392, 7
    %v3394 = vsub.s32 %v3391, %v3393
    %v3395 = vrot.slane %v3379, %v3394
    %v3397 = vunpack.c.l.s4 1983009808
    %v3398 = vunpack.c.0.s8 %v3397
    %v3399 = vlaneseq
    %v3400 = vshrl.u32 %v3399, 7
    %v3401 = vsub.s32 %v3398, %v3400
    %v3402 = vrot.slane %v3380, %v3401
    %v3404 = vunpack.c.l.s4 1983009808
    %v3405 = vunpack.c.0.s8 %v3404
    %v3406 = vlaneseq
    %v3407 = vshrl.u32 %v3406, 7
    %v3408 = vsub.s32 %v3405, %v3407
    %v3409 = vrot.slane %v3381, %v3408
    %v3410 = vcombine.low %v3388, %v3402
    %v3411 = vcombine.high %v3388, %v3402
    %v3412 = vcombine.low %v3395, %v3409
    %v3413 = vcombine.high %v3395, %v3409
    %v3414 = vcombine.low %v2272, %v2310
    %v3415 = vcombine.high %v2272, %v2310
    %v3416 = vcombine.low %v2311, %v2349
    %v3417 = vcombine.high %v2311, %v2349
    %v3419 = vunpack.c.l.s4 1983009808
    %v3420 = vunpack.c.0.s8 %v3419
    %v3421 = vlaneseq
    %v3422 = vshrl.u32 %v3421, 7
    %v3423 = vsub.s32 %v3420, %v3422
    %v3424 = vrot.slane %v3414, %v3423
    %v3426 = vunpack.c.l.s4 1983009808
    %v3427 = vunpack.c.0.s8 %v3426
    %v3428 = vlaneseq
    %v3429 = vshrl.u32 %v3428, 7
    %v3430 = vsub.s32 %v3427, %v3429
    %v3431 = vrot.slane %v3415, %v3430
    %v3433 = vunpack.c.l.s4 1983009808
    %v3434 = vunpack.c.0.s8 %v3433
    %v3435 = vlaneseq
    %v3436 = vshrl.u32 %v3435, 7
    %v3437 = vsub.s32 %v3434, %v3436
    %v3438 = vrot.slane %v3416, %v3437
    %v3440 = vunpack.c.l.s4 1983009808
    %v3441 = vunpack.c.0.s8 %v3440
    %v3442 = vlaneseq
    %v3443 = vshrl.u32 %v3442, 7
    %v3444 = vsub.s32 %v3441, %v3443
    %v3445 = vrot.slane %v3417, %v3444
    %v3446 = vcombine.low %v3424, %v3438
    %v3447 = vcombine.high %v3424, %v3438
    %v3448 = vcombine.low %v3431, %v3445
    %v3449 = vcombine.high %v3431, %v3445
    %v3450 = vcombine.low %v2279, %v2318
    %v3451 = vcombine.low %v2319, %v2356
    %v3453 = vunpack.c.l.s4 1983009808
    %v3454 = vunpack.c.0.s8 %v3453
    %v3455 = vlaneseq
    %v3456 = vshrl.u32 %v3455, 7
    %v3457 = vsub.s32 %v3454, %v3456
    %v3458 = vrot.slane %v3450, %v3457
    %v3460 = vunpack.c.l.s4 1983009808
    %v3461 = vunpack.c.0.s8 %v3460
    %v3462 = vlaneseq
    %v3463 = vshrl.u32 %v3462, 7
    %v3464 = vsub.s32 %v3461, %v3463
    %v3465 = vrot.slane %v3451, %v3464
    %v3466 = vcombine.low %v3458, %v3465
    %v3467 = vcombine.low %v2371, %v2372
    %v3468 = vcombine.high %v2371, %v2372
    %v3469 = vcombine.low %v2411, %v2448
    %v3470 = vcombine.high %v2411, %v2448
    %v3472 = vunpack.c.l.s4 1983009808
    %v3473 = vunpack.c.0.s8 %v3472
    %v3474 = vlaneseq
    %v3475 = vshrl.u32 %v3474, 7
    %v3476 = vsub.s32 %v3473, %v3475
    %v3477 = vrot.slane %v3467, %v3476
    %v3479 = vunpack.c.l.s4 1983009808
    %v3480 = vunpack.c.0.s8 %v3479
    %v3481 = vlaneseq
    %v3482 = vshrl.u32 %v3481, 7
    %v3483 = vsub.s32 %v3480, %v3482
    %v3484 = vrot.slane %v3468, %v3483
    %v3486 = vunpack.c.l.s4 1983009808
    %v3487 = vunpack.c.0.s8 %v3486
    %v3488 = vlaneseq
    %v3489 = vshrl.u32 %v3488, 7
    %v3490 = vsub.s32 %v3487, %v3489
    %v3491 = vrot.slane %v3469, %v3490
    %v3493 = vunpack.c.l.s4 1983009808
    %v3494 = vunpack.c.0.s8 %v3493
    %v3495 = vlaneseq
    %v3496 = vshrl.u32 %v3495, 7
    %v3497 = vsub.s32 %v3494, %v3496
    %v3498 = vrot.slane %v3470, %v3497
    %v3499 = vcombine.low %v3477, %v3491
    %v3500 = vcombine.high %v3477, %v3491
    %v3501 = vcombine.low %v3484, %v3498
    %v3502 = vcombine.high %v3484, %v3498
    %v3503 = vcombine.low %v2387, %v2388
    %v3504 = vcombine.high %v2387, %v2388
    %v3505 = vcombine.low %v2426, %v2464
    %v3506 = vcombine.high %v2426, %v2464
    %v3508 = vunpack.c.l.s4 1983009808
    %v3509 = vunpack.c.0.s8 %v3508
    %v3510 = vlaneseq
    %v3511 = vshrl.u32 %v3510, 7
    %v3512 = vsub.s32 %v3509, %v3511
    %v3513 = vrot.slane %v3503, %v3512
    %v3515 = vunpack.c.l.s4 1983009808
    %v3516 = vunpack.c.0.s8 %v3515
    %v3517 = vlaneseq
    %v3518 = vshrl.u32 %v3517, 7
    %v3519 = vsub.s32 %v3516, %v3518
    %v3520 = vrot.slane %v3504, %v3519
    %v3522 = vunpack.c.l.s4 1983009808
    %v3523 = vunpack.c.0.s8 %v3522
    %v3524 = vlaneseq
    %v3525 = vshrl.u32 %v3524, 7
    %v3526 = vsub.s32 %v3523, %v3525
    %v3527 = vrot.slane %v3505, %v3526
    %v3529 = vunpack.c.l.s4 1983009808
    %v3530 = vunpack.c.0.s8 %v3529
    %v3531 = vlaneseq
    %v3532 = vshrl.u32 %v3531, 7
    %v3533 = vsub.s32 %v3530, %v3532
    %v3534 = vrot.slane %v3506, %v3533
    %v3535 = vcombine.low %v3513, %v3527
    %v3536 = vcombine.high %v3513, %v3527
    %v3537 = vcombine.low %v3520, %v3534
    %v3538 = vcombine.high %v3520, %v3534
    %v3539 = vcombine.low %v2395, %v2396
    %v3540 = vcombine.low %v2433, %v2472
    %v3542 = vunpack.c.l.s4 1983009808
    %v3543 = vunpack.c.0.s8 %v3542
    %v3544 = vlaneseq
    %v3545 = vshrl.u32 %v3544, 7
    %v3546 = vsub.s32 %v3543, %v3545
    %v3547 = vrot.slane %v3539, %v3546
    %v3549 = vunpack.c.l.s4 1983009808
    %v3550 = vunpack.c.0.s8 %v3549
    %v3551 = vlaneseq
    %v3552 = vshrl.u32 %v3551, 7
    %v3553 = vsub.s32 %v3550, %v3552
    %v3554 = vrot.slane %v3540, %v3553
    %v3555 = vcombine.low %v3547, %v3554
    %v3556 = vcombine.low %v2449, %v2488
    %v3557 = vcombine.high %v2449, %v2488
    %v3558 = vcombine.low %v2525, %v2526
    %v3559 = vcombine.high %v2525, %v2526
    %v3561 = vunpack.c.l.s4 1983009808
    %v3562 = vunpack.c.0.s8 %v3561
    %v3563 = vlaneseq
    %v3564 = vshrl.u32 %v3563, 7
    %v3565 = vsub.s32 %v3562, %v3564
    %v3566 = vrot.slane %v3556, %v3565
    %v3568 = vunpack.c.l.s4 1983009808
    %v3569 = vunpack.c.0.s8 %v3568
    %v3570 = vlaneseq
    %v3571 = vshrl.u32 %v3570, 7
    %v3572 = vsub.s32 %v3569, %v3571
    %v3573 = vrot.slane %v3557, %v3572
    %v3575 = vunpack.c.l.s4 1983009808
    %v3576 = vunpack.c.0.s8 %v3575
    %v3577 = vlaneseq
    %v3578 = vshrl.u32 %v3577, 7
    %v3579 = vsub.s32 %v3576, %v3578
    %v3580 = vrot.slane %v3558, %v3579
    %v3582 = vunpack.c.l.s4 1983009808
    %v3583 = vunpack.c.0.s8 %v3582
    %v3584 = vlaneseq
    %v3585 = vshrl.u32 %v3584, 7
    %v3586 = vsub.s32 %v3583, %v3585
    %v3587 = vrot.slane %v3559, %v3586
    %v3588 = vcombine.low %v3566, %v3580
    %v3589 = vcombine.high %v3566, %v3580
    %v3590 = vcombine.low %v3573, %v3587
    %v3591 = vcombine.high %v3573, %v3587
    %v3592 = vcombine.low %v2465, %v2503
    %v3593 = vcombine.high %v2465, %v2503
    %v3594 = vcombine.low %v2541, %v2542
    %v3595 = vcombine.high %v2541, %v2542
    %v3597 = vunpack.c.l.s4 1983009808
    %v3598 = vunpack.c.0.s8 %v3597
    %v3599 = vlaneseq
    %v3600 = vshrl.u32 %v3599, 7
    %v3601 = vsub.s32 %v3598, %v3600
    %v3602 = vrot.slane %v3592, %v3601
    %v3604 = vunpack.c.l.s4 1983009808
    %v3605 = vunpack.c.0.s8 %v3604
    %v3606 = vlaneseq
    %v3607 = vshrl.u32 %v3606, 7
    %v3608 = vsub.s32 %v3605, %v3607
    %v3609 = vrot.slane %v3593, %v3608
    %v3611 = vunpack.c.l.s4 1983009808
    %v3612 = vunpack.c.0.s8 %v3611
    %v3613 = vlaneseq
    %v3614 = vshrl.u32 %v3613, 7
    %v3615 = vsub.s32 %v3612, %v3614
    %v3616 = vrot.slane %v3594, %v3615
    %v3618 = vunpack.c.l.s4 1983009808
    %v3619 = vunpack.c.0.s8 %v3618
    %v3620 = vlaneseq
    %v3621 = vshrl.u32 %v3620, 7
    %v3622 = vsub.s32 %v3619, %v3621
    %v3623 = vrot.slane %v3595, %v3622
    %v3624 = vcombine.low %v3602, %v3616
    %v3625 = vcombine.high %v3602, %v3616
    %v3626 = vcombine.low %v3609, %v3623
    %v3627 = vcombine.high %v3609, %v3623
    %v3628 = vcombine.low %v2473, %v2510
    %v3629 = vcombine.low %v2549, %v2550
    %v3631 = vunpack.c.l.s4 1983009808
    %v3632 = vunpack.c.0.s8 %v3631
    %v3633 = vlaneseq
    %v3634 = vshrl.u32 %v3633, 7
    %v3635 = vsub.s32 %v3632, %v3634
    %v3636 = vrot.slane %v3628, %v3635
    %v3638 = vunpack.c.l.s4 1983009808
    %v3639 = vunpack.c.0.s8 %v3638
    %v3640 = vlaneseq
    %v3641 = vshrl.u32 %v3640, 7
    %v3642 = vsub.s32 %v3639, %v3641
    %v3643 = vrot.slane %v3629, %v3642
    %v3644 = vcombine.low %v3636, %v3643
    %v3645 = vcombine.low %v2565, %v2602
    %v3646 = vcombine.high %v2565, %v2602
    %v3647 = vcombine.low %v2603, %v2642
    %v3648 = vcombine.high %v2603, %v2642
    %v3650 = vunpack.c.l.s4 1983009808
    %v3651 = vunpack.c.0.s8 %v3650
    %v3652 = vlaneseq
    %v3653 = vshrl.u32 %v3652, 7
    %v3654 = vsub.s32 %v3651, %v3653
    %v3655 = vrot.slane %v3645, %v3654
    %v3657 = vunpack.c.l.s4 1983009808
    %v3658 = vunpack.c.0.s8 %v3657
    %v3659 = vlaneseq
    %v3660 = vshrl.u32 %v3659, 7
    %v3661 = vsub.s32 %v3658, %v3660
    %v3662 = vrot.slane %v3646, %v3661
    %v3664 = vunpack.c.l.s4 1983009808
    %v3665 = vunpack.c.0.s8 %v3664
    %v3666 = vlaneseq
    %v3667 = vshrl.u32 %v3666, 7
    %v3668 = vsub.s32 %v3665, %v3667
    %v3669 = vrot.slane %v3647, %v3668
    %v3671 = vunpack.c.l.s4 1983009808
    %v3672 = vunpack.c.0.s8 %v3671
    %v3673 = vlaneseq
    %v3674 = vshrl.u32 %v3673, 7
    %v3675 = vsub.s32 %v3672, %v3674
    %v3676 = vrot.slane %v3648, %v3675
    %v3677 = vcombine.low %v3655, %v3669
    %v3678 = vcombine.high %v3655, %v3669
    %v3679 = vcombine.low %v3662, %v3676
    %v3680 = vcombine.high %v3662, %v3676
    %v3681 = vcombine.low %v2580, %v2618
    %v3682 = vcombine.high %v2580, %v2618
    %v3683 = vcombine.low %v2619, %v2657
    %v3684 = vcombine.high %v2619, %v2657
    %v3686 = vunpack.c.l.s4 1983009808
    %v3687 = vunpack.c.0.s8 %v3686
    %v3688 = vlaneseq
    %v3689 = vshrl.u32 %v3688, 7
    %v3690 = vsub.s32 %v3687, %v3689
    %v3691 = vrot.slane %v3681, %v3690
    %v3693 = vunpack.c.l.s4 1983009808
    %v3694 = vunpack.c.0.s8 %v3693
    %v3695 = vlaneseq
    %v3696 = vshrl.u32 %v3695, 7
    %v3697 = vsub.s32 %v3694, %v3696
    %v3698 = vrot.slane %v3682, %v3697
    %v3700 = vunpack.c.l.s4 1983009808
    %v3701 = vunpack.c.0.s8 %v3700
    %v3702 = vlaneseq
    %v3703 = vshrl.u32 %v3702, 7
    %v3704 = vsub.s32 %v3701, %v3703
    %v3705 = vrot.slane %v3683, %v3704
    %v3707 = vunpack.c.l.s4 1983009808
    %v3708 = vunpack.c.0.s8 %v3707
    %v3709 = vlaneseq
    %v3710 = vshrl.u32 %v3709, 7
    %v3711 = vsub.s32 %v3708, %v3710
    %v3712 = vrot.slane %v3684, %v3711
    %v3713 = vcombine.low %v3691, %v3705
    %v3714 = vcombine.high %v3691, %v3705
    %v3715 = vcombine.low %v3698, %v3712
    %v3716 = vcombine.high %v3698, %v3712
    %v3717 = vcombine.low %v2587, %v2626
    %v3718 = vcombine.low %v2627, %v2664
    %v3720 = vunpack.c.l.s4 1983009808
    %v3721 = vunpack.c.0.s8 %v3720
    %v3722 = vlaneseq
    %v3723 = vshrl.u32 %v3722, 7
    %v3724 = vsub.s32 %v3721, %v3723
    %v3725 = vrot.slane %v3717, %v3724
    %v3727 = vunpack.c.l.s4 1983009808
    %v3728 = vunpack.c.0.s8 %v3727
    %v3729 = vlaneseq
    %v3730 = vshrl.u32 %v3729, 7
    %v3731 = vsub.s32 %v3728, %v3730
    %v3732 = vrot.slane %v3718, %v3731
    %v3733 = vcombine.low %v3725, %v3732
    %v3986 = vunpack.c.l.b16 %v1123
    %v3987 = vunpack.c.l.b16 %v1124
    %v3988 = vunpack.c.l.b16 %v1125
    %v3989 = vunpack.c.l.b16 %v1126
    %v3990 = vunpack.c.l.b16 %v1127
    %v3991 = vunpack.c.l.b16 %v1128
    %v3992 = vunpack.c.l.b16 %v1129
    %v3993 = vunpack.c.l.b16 %v1130
    %v3994 = vunpack.c.l.b16 %v1131
    %v3995 = vunpack.c.l.b16 %v1132
    %v3996 = vunpack.c.l.b16 %v1133
    %v3997 = vunpack.c.l.b16 %v1134
    %v3998 = vunpack.c.l.b16 %v1135
    %v3999 = vunpack.c.l.b16 %v1136
    %v4000 = vunpack.c.l.b16 %v1137
    %v4001 = vunpack.c.l.b16 %v1138
    %v4002 = vunpack.c.l.b16 %v1139
    %v4003 = vunpack.c.l.b16 %v1140
    %v4004 = vunpack.c.l.b16 %v1141
    %v4005 = vunpack.c.l.b16 %v1142
    %v4006 = vunpack.c.l.b16 %v1143
    %v4007 = vunpack.c.l.b16 %v1144
    %v4008 = vunpack.c.l.b16 %v1145
    %v4009 = vunpack.c.l.b16 %v1146
    %v4010 = vunpack.c.l.b16 %v1147
    %v4011 = vunpack.c.l.b16 %v1148
    %v4012 = vunpack.c.l.b16 %v1149
    %v4013 = vunpack.c.l.b16 %v1150
    %v4014 = vunpack.c.l.b16 %v1151
    %v4015 = vunpack.c.l.b16 %v1152
    %v4016 = vunpack.c.l.b16 %v1153
    %v4017 = vunpack.c.l.b16 %v1154
    %v4018 = vunpack.c.l.b16 %v1155
    %v4019 = vunpack.c.l.b16 %v1156
    %v4020 = vunpack.c.l.b16 %v1157
    %v4021 = vunpack.c.l.b16 %v1158
    %v4022 = vunpack.c.l.b16 %v1159
    %v4023 = vunpack.c.l.b16 %v1160
    %v4024 = vunpack.c.l.b16 %v1161
    %v4025 = vunpack.c.l.b16 %v1162
    %v4026 = vunpack.c.l.b16 %v1163
    %v4027 = vunpack.c.l.b16 %v1164
    %v4028 = vunpack.c.l.b16 %v1165
    %v4029 = vunpack.c.l.b16 %v1166
    %v4030 = vunpack.c.l.b16 %v1167
    %v4031 = vunpack.c.l.b16 %v1168
    %v4032 = vunpack.c.l.b16 %v1169
    %v4033 = vunpack.c.l.b16 %v1170
    %v4034 = vunpack.c.l.b16 %v1171
    %v4035 = vunpack.c.l.b16 %v1172
    %v4036 = vunpack.c.l.b16 %v1173
    %v4037 = vunpack.c.l.b16 %v1174
    %v4038 = vunpack.c.l.b16 %v1175
    %v4039 = vunpack.c.l.b16 %v1176
    %v4040 = vunpack.c.l.b16 %v1177
    %v4041 = vunpack.c.l.b16 %v1178
    %v4042 = vunpack.c.l.b16 %v1179
    %v4043 = vunpack.c.l.b16 %v1180
    %v4044 = vunpack.c.l.b16 %v1181
    %v4045 = vunpack.c.l.b16 %v1182
    %v4046 = vunpack.c.l.b16 %v1183
    %v4047 = vunpack.c.l.b16 %v1184
    %v4048 = vunpack.c.l.b16 %v1185
    %v4049 = vunpack.c.l.b16 %v1186
    %v4050 = vunpack.c.l.b16 %v1187
    %v4051 = vunpack.c.l.b16 %v1188
    %v4052 = vunpack.c.l.b16 %v1189
    %v4053 = vunpack.c.l.b16 %v1190
    %v4054 = vunpack.c.l.b16 %v1191
    %v4055 = vunpack.c.l.b16 %v1192
    %v4056 = vunpack.c.l.b16 %v1193
    %v4057 = vunpack.c.l.b16 %v1194
    %v4058 = vunpack.c.l.b16 %v1195
    %v4059 = vunpack.c.l.b16 %v1196
    %v4060 = vunpack.c.l.b16 %v1197
    %v4061 = vunpack.c.l.b16 %v1198
    %v4062 = vunpack.c.l.b16 %v1199
    %v4063 = vunpack.c.l.b16 %v1200
    %v4064 = vunpack.c.l.b16 %v1201
    %v4065 = vunpack.c.l.b16 %v1202
    %v4066 = vunpack.c.l.b16 %v1203
    %v4067 = vunpack.c.l.b16 %v1204
    %v4068 = vunpack.c.l.b16 %v1205
    %v4069 = vunpack.c.l.b16 %v1206
    %v4070 = vunpack.c.l.b16 %v1207
    %v4071 = vunpack.c.l.b16 %v1208
    %v4072 = vunpack.c.l.b16 %v1209
    %v4073 = vunpack.c.l.b16 %v1210
    %v4074 = vunpack.c.l.b16 %v1211
    %v4075 = vunpack.c.l.b16 %v1212
    %v4076 = vunpack.c.l.b16 %v1213
    %v4077 = vunpack.c.l.b16 %v1214
    %v4078 = vunpack.c.l.b16 %v1215
    %v4079 = vunpack.c.l.b16 %v1216
    %v4080 = vunpack.c.l.b16 %v1217
    %v4081 = vunpack.c.l.b16 %v1218
    %v4082 = vunpack.c.l.b16 %v1219
    %v4083 = vunpack.c.l.b16 %v1220
    %v4084 = vunpack.c.l.b16 %v1221
    %v4085 = vunpack.c.l.b16 %v1222
    %v4086 = vunpack.c.l.b16 %v1223
    %v4087 = vunpack.c.l.b16 %v1224
    %v4088 = vunpack.c.l.b16 %v1225
    %v4089 = vunpack.c.l.b16 %v1226
    %v4090 = vunpack.c.l.b16 %v1227
    %v4091 = vunpack.c.l.b16 %v1228
    %v4092 = vunpack.c.l.b16 %v1229
    %v4093 = vunpack.c.l.b16 %v1230
    %v4094 = vunpack.c.l.b16 %v1231
    %v4095 = vunpack.c.l.b16 %v1232
    %v4096 = vunpack.c.l.b16 %v1233
    %v4097 = vunpack.c.l.b16 %v1234
    %v4098 = vunpack.c.l.b16 %v1235
    %v4099 = vunpack.c.l.b16 %v1236
    %v4100 = vunpack.c.l.b16 %v1237
    %v4101 = vunpack.c.l.b16 %v1238
    %v4102 = vunpack.c.l.b16 %v1239
    %v4103 = vunpack.c.l.b16 %v1240
    %v4104 = vunpack.c.l.b16 %v1241
    %v4105 = vunpack.c.l.b16 %v1242
    %v4106 = vunpack.c.l.b16 %v1243
    %v4107 = vunpack.c.l.b16 %v1244
    %v4108 = vunpack.c.l.b16 %v1245
    %v4109 = vunpack.c.l.b16 %v1246
    %v4110 = vunpack.c.l.b16 %v1247
    %v4111 = vunpack.c.l.b16 %v1248
    %v4112 = vunpack.c.l.b16 %v1249
    %v4113 = vunpack.c.l.b16 %v1250
    %v4114 = vunpack.c.l.b16 %v1251
    %v4115 = vunpack.c.l.b16 %v1252
    %v4116 = vunpack.c.l.b16 %v1253
    %v4117 = vunpack.c.l.b16 %v1254
    %v4118 = vunpack.c.l.b16 %v1255
    %v4119 = vunpack.c.l.b16 %v1256
    %v4120 = vunpack.c.l.b16 %v1257
    %v4121 = vunpack.c.l.b16 %v1258
    %v4122 = vunpack.c.l.b16 %v1259
    %v4123 = vunpack.c.l.b16 %v1260
    %v4124 = vunpack.c.l.b16 %v1261
    %v4125 = vunpack.c.l.b16 %v1262
    %v4126 = vunpack.c.l.b16 %v1263
    %v4127 = vunpack.c.l.b16 %v1264
    %v4128 = vunpack.c.l.b16 %v1265
    %v4129 = vunpack.c.l.b16 %v1266
    %v4130 = vpack.c.b16 %v3987, %v3986
    %v4131 = vpack.c.b16 %v3989, %v3988
    %v4132 = vpack.c.b16 %v3991, %v3990
    %v4133 = vpack.c.b16 %v3993, %v3992
    %v4134 = vpack.c.b16 %v3995, %v3994
    %v4135 = vpack.c.b16 %v3997, %v3996
    %v4136 = vpack.c.b16 %v3999, %v3998
    %v4137 = vpack.c.b16 %v4001, %v4000
    %v4138 = vpack.c.b16 %v4003, %v4002
    %v4139 = vpack.c.b16 %v4005, %v4004
    %v4140 = vpack.c.b16 %v4007, %v4006
    %v4141 = vpack.c.b16 %v4009, %v4008
    %v4142 = vpack.c.b16 %v4011, %v4010
    %v4143 = vpack.c.b16 %v4013, %v4012
    %v4144 = vpack.c.b16 %v4015, %v4014
    %v4145 = vpack.c.b16 %v4017, %v4016
    %v4146 = vpack.c.b16 %v4019, %v4018
    %v4147 = vpack.c.b16 %v4021, %v4020
    %v4148 = vpack.c.b16 %v4023, %v4022
    %v4149 = vpack.c.b16 %v4025, %v4024
    %v4150 = vpack.c.b16 %v4027, %v4026
    %v4151 = vpack.c.b16 %v4029, %v4028
    %v4152 = vpack.c.b16 %v4031, %v4030
    %v4153 = vpack.c.b16 %v4033, %v4032
    %v4154 = vpack.c.b16 %v4035, %v4034
    %v4155 = vpack.c.b16 %v4037, %v4036
    %v4156 = vpack.c.b16 %v4039, %v4038
    %v4157 = vpack.c.b16 %v4041, %v4040
    %v4158 = vpack.c.b16 %v4043, %v4042
    %v4159 = vpack.c.b16 %v4045, %v4044
    %v4160 = vpack.c.b16 %v4047, %v4046
    %v4161 = vpack.c.b16 %v4049, %v4048
    %v4162 = vpack.c.b16 %v4051, %v4050
    %v4163 = vpack.c.b16 %v4053, %v4052
    %v4164 = vpack.c.b16 %v4055, %v4054
    %v4165 = vpack.c.b16 %v4057, %v4056
    %v4166 = vpack.c.b16 %v4059, %v4058
    %v4167 = vpack.c.b16 %v4061, %v4060
    %v4168 = vpack.c.b16 %v4063, %v4062
    %v4169 = vpack.c.b16 %v4065, %v4064
    %v4170 = vpack.c.b16 %v4067, %v4066
    %v4171 = vpack.c.b16 %v4069, %v4068
    %v4172 = vpack.c.b16 %v4071, %v4070
    %v4173 = vpack.c.b16 %v4073, %v4072
    %v4174 = vpack.c.b16 %v4075, %v4074
    %v4175 = vpack.c.b16 %v4077, %v4076
    %v4176 = vpack.c.b16 %v4079, %v4078
    %v4177 = vpack.c.b16 %v4081, %v4080
    %v4178 = vpack.c.b16 %v4083, %v4082
    %v4179 = vpack.c.b16 %v4085, %v4084
    %v4180 = vpack.c.b16 %v4087, %v4086
    %v4181 = vpack.c.b16 %v4089, %v4088
    %v4182 = vpack.c.b16 %v4091, %v4090
    %v4183 = vpack.c.b16 %v4093, %v4092
    %v4184 = vpack.c.b16 %v4095, %v4094
    %v4185 = vpack.c.b16 %v4097, %v4096
    %v4186 = vpack.c.b16 %v4099, %v4098
    %v4187 = vpack.c.b16 %v4101, %v4100
    %v4188 = vpack.c.b16 %v4103, %v4102
    %v4189 = vpack.c.b16 %v4105, %v4104
    %v4190 = vpack.c.b16 %v4107, %v4106
    %v4191 = vpack.c.b16 %v4109, %v4108
    %v4192 = vpack.c.b16 %v4111, %v4110
    %v4193 = vpack.c.b16 %v4113, %v4112
    %v4194 = vpack.c.b16 %v4115, %v4114
    %v4195 = vpack.c.b16 %v4117, %v4116
    %v4196 = vpack.c.b16 %v4119, %v4118
    %v4197 = vpack.c.b16 %v4121, %v4120
    %v4198 = vpack.c.b16 %v4123, %v4122
    %v4199 = vpack.c.b16 %v4125, %v4124
    %v4200 = vpack.c.b16 %v4127, %v4126
    %v4201 = vpack.c.b16 %v4129, %v4128
    %v4274 = vcombine.low %v1272, %v2665
    %v4275 = vcombine.low %v1272, %v1272
    %v4276 = vcombine.low %v2665, %v1272
    %4280 = vmatprep.subr.bf16.mxu0 0
    %4281 = vmatpush1.bf16.msra.mxu0 %v4137
    %4282 = vmatprep.subr.bf16.mxu0 0
    %4283 = vmatpush1.bf16.msra.mxu0 %v4136
    %4284 = vmatprep.subr.bf16.mxu0 0
    %4285 = vmatpush1.bf16.msra.mxu0 %v4135
    %4286 = vmatprep.subr.bf16.mxu0 0
    %4287 = vmatpush1.bf16.msra.mxu0 %v4134
    %4288 = vmatprep.subr.bf16.mxu0 0
    %4289 = vmatpush1.bf16.msra.mxu0 %v4133
    %4290 = vmatprep.subr.bf16.mxu0 0
    %4291 = vmatpush1.bf16.msra.mxu0 %v4132
    %4292 = vmatprep.subr.bf16.mxu0 0
    %4293 = vmatpush1.bf16.msra.mxu0 %v4131
    %4294 = vmatprep.subr.bf16.mxu0 0
    %4295 = vmatpush1.bf16.msra.mxu0 %v4130
    %4296 = vmatprep.subr.bf16.mxu0 0
    %4297 = vmatpush2.bf16.msra.mxu0 %v4145
    %4298 = vmatprep.subr.bf16.mxu0 0
    %4299 = vmatpush2.bf16.msra.mxu0 %v4144
    %4300 = vmatprep.subr.bf16.mxu0 0
    %4301 = vmatpush2.bf16.msra.mxu0 %v4143
    %4302 = vmatprep.subr.bf16.mxu0 0
    %4303 = vmatpush2.bf16.msra.mxu0 %v4142
    %4304 = vmatprep.subr.bf16.mxu0 0
    %4305 = vmatpush2.bf16.msra.mxu0 %v4141
    %4306 = vmatprep.subr.bf16.mxu0 0
    %4307 = vmatpush2.bf16.msra.mxu0 %v4140
    %4308 = vmatprep.subr.bf16.mxu0 0
    %4309 = vmatpush2.bf16.msra.mxu0 %v4139
    %4310 = vmatprep.subr.bf16.mxu0 0
    %4311 = vmatpush2.bf16.msra.mxu0 %v4138
    %4312 = vmatprep.mubr.bf16.mxu0 %v2699
    %4313 = vmatmul.mubr.bf16.gmra.mxu0 %v2698
    %v4314 = vpop.f32.mrf.mxu0
    %v4315 = vadd.f32 %v4274, %v4314
    %v4316 = vpop.f32.mrf.mxu0
    %v4317 = vpop.f32.mrf.mxu0
    %v4318 = vadd.f32 %v4275, %v4317
    %v4319 = vpop.f32.mrf.mxu0
    %4320 = vmatprep.mubr.bf16.mxu0 %v2788
    %4321 = vmatmul.mubr.bf16.gmra.mxu0 %v2787
    %v4322 = vpop.f32.mrf.mxu0
    %v4323 = vadd.f32 %v4276, %v4322
    %v4324 = vpop.f32.mrf.mxu0
    %v4325 = vpop.f32.mrf.mxu0
    %v4326 = vadd.f32 %v4274, %v4325
    %v4327 = vpop.f32.mrf.mxu0
    %4328 = vmatprep.mubr.bf16.mxu0 %v2877
    %4329 = vmatmul.mubr.bf16.gmra.mxu0 %v2876
    %v4330 = vpop.f32.mrf.mxu0
    %v4331 = vadd.f32 %v4275, %v4330
    %v4332 = vpop.f32.mrf.mxu0
    %v4333 = vpop.f32.mrf.mxu0
    %v4334 = vadd.f32 %v4276, %v4333
    %v4335 = vpop.f32.mrf.mxu0
    %4336 = vmatprep.mubr.bf16.mxu0 %v2966
    %4337 = vmatmul.mubr.bf16.gmra.mxu0 %v2965
    %v4338 = vpop.f32.mrf.mxu0
    %v4339 = vadd.f32 %v4274, %v4338
    %v4340 = vpop.f32.mrf.mxu0
    %v4341 = vpop.f32.mrf.mxu0
    %v4342 = vadd.f32 %v4275, %v4341
    %v4343 = vpop.f32.mrf.mxu0
    %4344 = vmatprep.mubr.bf16.mxu0 %v3055
    %4345 = vmatmul.mubr.bf16.gmra.mxu0 %v3054
    %v4346 = vpop.f32.mrf.mxu0
    %v4347 = vadd.f32 %v4276, %v4346
    %v4348 = vpop.f32.mrf.mxu0
    %v4349 = vpop.f32.mrf.mxu0
    %v4350 = vadd.f32 %v4274, %v4349
    %v4351 = vpop.f32.mrf.mxu0
    %4352 = vmatprep.mubr.bf16.mxu0 %v3144
    %4353 = vmatmul.mubr.bf16.gmra.mxu0 %v3143
    %v4354 = vpop.f32.mrf.mxu0
    %v4355 = vadd.f32 %v4275, %v4354
    %v4356 = vpop.f32.mrf.mxu0
    %v4357 = vpop.f32.mrf.mxu0
    %v4358 = vadd.f32 %v4276, %v4357
    %v4359 = vpop.f32.mrf.mxu0
    %4360 = vmatprep.mubr.bf16.mxu0 %v3233
    %4361 = vmatmul.mubr.bf16.gmra.mxu0 %v3232
    %v4362 = vpop.f32.mrf.mxu0
    %v4363 = vadd.f32 %v4274, %v4362
    %v4364 = vpop.f32.mrf.mxu0
    %v4365 = vpop.f32.mrf.mxu0
    %v4366 = vadd.f32 %v4275, %v4365
    %v4367 = vpop.f32.mrf.mxu0
    %4368 = vmatprep.mubr.bf16.mxu0 %v3322
    %4369 = vmatmul.mubr.bf16.gmra.mxu0 %v3321
    %v4370 = vpop.f32.mrf.mxu0
    %v4371 = vadd.f32 %v4276, %v4370
    %v4372 = vpop.f32.mrf.mxu0
    %v4373 = vpop.f32.mrf.mxu0
    %v4374 = vadd.f32 %v4274, %v4373
    %v4375 = vpop.f32.mrf.mxu0
    %4376 = vmatprep.mubr.bf16.mxu0 %v3411
    %4377 = vmatmul.mubr.bf16.gmra.mxu0 %v3410
    %v4378 = vpop.f32.mrf.mxu0
    %v4379 = vadd.f32 %v4275, %v4378
    %v4380 = vpop.f32.mrf.mxu0
    %v4381 = vpop.f32.mrf.mxu0
    %v4382 = vadd.f32 %v4276, %v4381
    %v4383 = vpop.f32.mrf.mxu0
    %4384 = vmatprep.mubr.bf16.mxu0 %v3500
    %4385 = vmatmul.mubr.bf16.gmra.mxu0 %v3499
    %v4386 = vpop.f32.mrf.mxu0
    %v4387 = vadd.f32 %v4274, %v4386
    %v4388 = vpop.f32.mrf.mxu0
    %v4389 = vpop.f32.mrf.mxu0
    %v4390 = vadd.f32 %v4275, %v4389
    %v4391 = vpop.f32.mrf.mxu0
    %4392 = vmatprep.mubr.bf16.mxu0 %v3589
    %4393 = vmatmul.mubr.bf16.gmra.mxu0 %v3588
    %v4394 = vpop.f32.mrf.mxu0
    %v4395 = vadd.f32 %v4276, %v4394
    %v4396 = vpop.f32.mrf.mxu0
    %v4397 = vpop.f32.mrf.mxu0
    %v4398 = vadd.f32 %v4274, %v4397
    %v4399 = vpop.f32.mrf.mxu0
    %4400 = vmatprep.mubr.bf16.mxu0 %v3678
    %4401 = vmatmul.mubr.bf16.gmra.mxu0 %v3677
    %v4402 = vpop.f32.mrf.mxu0
    %v4403 = vadd.f32 %v4275, %v4402
    %v4404 = vpop.f32.mrf.mxu0
    %v4405 = vpop.f32.mrf.mxu0
    %v4406 = vadd.f32 %v4276, %v4405
    %v4407 = vpop.f32.mrf.mxu0
    %4408 = vdwg.mxu0
    %4409 = vmatprep.subr.bf16.mxu0 0
    %4410 = vmatpush1.bf16.msra.mxu0 %v4153
    %4411 = vmatprep.subr.bf16.mxu0 0
    %4412 = vmatpush1.bf16.msra.mxu0 %v4152
    %4413 = vmatprep.subr.bf16.mxu0 0
    %4414 = vmatpush1.bf16.msra.mxu0 %v4151
    %4415 = vmatprep.subr.bf16.mxu0 0
    %4416 = vmatpush1.bf16.msra.mxu0 %v4150
    %4417 = vmatprep.subr.bf16.mxu0 0
    %4418 = vmatpush1.bf16.msra.mxu0 %v4149
    %4419 = vmatprep.subr.bf16.mxu0 0
    %4420 = vmatpush1.bf16.msra.mxu0 %v4148
    %4421 = vmatprep.subr.bf16.mxu0 0
    %4422 = vmatpush1.bf16.msra.mxu0 %v4147
    %4423 = vmatprep.subr.bf16.mxu0 0
    %4424 = vmatpush1.bf16.msra.mxu0 %v4146
    %4425 = vmatprep.subr.bf16.mxu0 0
    %4426 = vmatpush2.bf16.msra.mxu0 %v4161
    %4427 = vmatprep.subr.bf16.mxu0 0
    %4428 = vmatpush2.bf16.msra.mxu0 %v4160
    %4429 = vmatprep.subr.bf16.mxu0 0
    %4430 = vmatpush2.bf16.msra.mxu0 %v4159
    %4431 = vmatprep.subr.bf16.mxu0 0
    %4432 = vmatpush2.bf16.msra.mxu0 %v4158
    %4433 = vmatprep.subr.bf16.mxu0 0
    %4434 = vmatpush2.bf16.msra.mxu0 %v4157
    %4435 = vmatprep.subr.bf16.mxu0 0
    %4436 = vmatpush2.bf16.msra.mxu0 %v4156
    %4437 = vmatprep.subr.bf16.mxu0 0
    %4438 = vmatpush2.bf16.msra.mxu0 %v4155
    %4439 = vmatprep.subr.bf16.mxu0 0
    %4440 = vmatpush2.bf16.msra.mxu0 %v4154
    %4441 = vmatprep.mubr.bf16.mxu0 %v2701
    %4442 = vmatmul.mubr.bf16.gmra.mxu0 %v2700
    %v4443 = vpop.f32.mrf.mxu0
    %v4444 = vadd.f32 %v4315, %v4443
    %v4445 = vpop.f32.mrf.mxu0
    %v4446 = vpop.f32.mrf.mxu0
    %v4447 = vadd.f32 %v4318, %v4446
    %v4448 = vpop.f32.mrf.mxu0
    %4449 = vmatprep.mubr.bf16.mxu0 %v2790
    %4450 = vmatmul.mubr.bf16.gmra.mxu0 %v2789
    %v4451 = vpop.f32.mrf.mxu0
    %v4452 = vadd.f32 %v4323, %v4451
    %v4453 = vpop.f32.mrf.mxu0
    %v4454 = vpop.f32.mrf.mxu0
    %v4455 = vadd.f32 %v4326, %v4454
    %v4456 = vpop.f32.mrf.mxu0
    %4457 = vmatprep.mubr.bf16.mxu0 %v2879
    %4458 = vmatmul.mubr.bf16.gmra.mxu0 %v2878
    %v4459 = vpop.f32.mrf.mxu0
    %v4460 = vadd.f32 %v4331, %v4459
    %v4461 = vpop.f32.mrf.mxu0
    %v4462 = vpop.f32.mrf.mxu0
    %v4463 = vadd.f32 %v4334, %v4462
    %v4464 = vpop.f32.mrf.mxu0
    %4465 = vmatprep.mubr.bf16.mxu0 %v2968
    %4466 = vmatmul.mubr.bf16.gmra.mxu0 %v2967
    %v4467 = vpop.f32.mrf.mxu0
    %v4468 = vadd.f32 %v4339, %v4467
    %v4469 = vpop.f32.mrf.mxu0
    %v4470 = vpop.f32.mrf.mxu0
    %v4471 = vadd.f32 %v4342, %v4470
    %v4472 = vpop.f32.mrf.mxu0
    %4473 = vmatprep.mubr.bf16.mxu0 %v3057
    %4474 = vmatmul.mubr.bf16.gmra.mxu0 %v3056
    %v4475 = vpop.f32.mrf.mxu0
    %v4476 = vadd.f32 %v4347, %v4475
    %v4477 = vpop.f32.mrf.mxu0
    %v4478 = vpop.f32.mrf.mxu0
    %v4479 = vadd.f32 %v4350, %v4478
    %v4480 = vpop.f32.mrf.mxu0
    %4481 = vmatprep.mubr.bf16.mxu0 %v3146
    %4482 = vmatmul.mubr.bf16.gmra.mxu0 %v3145
    %v4483 = vpop.f32.mrf.mxu0
    %v4484 = vadd.f32 %v4355, %v4483
    %v4485 = vpop.f32.mrf.mxu0
    %v4486 = vpop.f32.mrf.mxu0
    %v4487 = vadd.f32 %v4358, %v4486
    %v4488 = vpop.f32.mrf.mxu0
    %4489 = vmatprep.mubr.bf16.mxu0 %v3235
    %4490 = vmatmul.mubr.bf16.gmra.mxu0 %v3234
    %v4491 = vpop.f32.mrf.mxu0
    %v4492 = vadd.f32 %v4363, %v4491
    %v4493 = vpop.f32.mrf.mxu0
    %v4494 = vpop.f32.mrf.mxu0
    %v4495 = vadd.f32 %v4366, %v4494
    %v4496 = vpop.f32.mrf.mxu0
    %4497 = vmatprep.mubr.bf16.mxu0 %v3324
    %4498 = vmatmul.mubr.bf16.gmra.mxu0 %v3323
    %v4499 = vpop.f32.mrf.mxu0
    %v4500 = vadd.f32 %v4371, %v4499
    %v4501 = vpop.f32.mrf.mxu0
    %v4502 = vpop.f32.mrf.mxu0
    %v4503 = vadd.f32 %v4374, %v4502
    %v4504 = vpop.f32.mrf.mxu0
    %4505 = vmatprep.mubr.bf16.mxu0 %v3413
    %4506 = vmatmul.mubr.bf16.gmra.mxu0 %v3412
    %v4507 = vpop.f32.mrf.mxu0
    %v4508 = vadd.f32 %v4379, %v4507
    %v4509 = vpop.f32.mrf.mxu0
    %v4510 = vpop.f32.mrf.mxu0
    %v4511 = vadd.f32 %v4382, %v4510
    %v4512 = vpop.f32.mrf.mxu0
    %4513 = vmatprep.mubr.bf16.mxu0 %v3502
    %4514 = vmatmul.mubr.bf16.gmra.mxu0 %v3501
    %v4515 = vpop.f32.mrf.mxu0
    %v4516 = vadd.f32 %v4387, %v4515
    %v4517 = vpop.f32.mrf.mxu0
    %v4518 = vpop.f32.mrf.mxu0
    %v4519 = vadd.f32 %v4390, %v4518
    %v4520 = vpop.f32.mrf.mxu0
    %4521 = vmatprep.mubr.bf16.mxu0 %v3591
    %4522 = vmatmul.mubr.bf16.gmra.mxu0 %v3590
    %v4523 = vpop.f32.mrf.mxu0
    %v4524 = vadd.f32 %v4395, %v4523
    %v4525 = vpop.f32.mrf.mxu0
    %v4526 = vpop.f32.mrf.mxu0
    %v4527 = vadd.f32 %v4398, %v4526
    %v4528 = vpop.f32.mrf.mxu0
    %4529 = vmatprep.mubr.bf16.mxu0 %v3680
    %4530 = vmatmul.mubr.bf16.gmra.mxu0 %v3679
    %v4531 = vpop.f32.mrf.mxu0
    %v4532 = vadd.f32 %v4403, %v4531
    %v4533 = vpop.f32.mrf.mxu0
    %v4534 = vpop.f32.mrf.mxu0
    %v4535 = vadd.f32 %v4406, %v4534
    %v4536 = vpop.f32.mrf.mxu0
    %4537 = vdwg.mxu0
    %4538 = vmatprep.subr.bf16.mxu0 0
    %4539 = vmatpush1.bf16.msra.mxu0 %v4169
    %4540 = vmatprep.subr.bf16.mxu0 0
    %4541 = vmatpush1.bf16.msra.mxu0 %v4168
    %4542 = vmatprep.subr.bf16.mxu0 0
    %4543 = vmatpush1.bf16.msra.mxu0 %v4167
    %4544 = vmatprep.subr.bf16.mxu0 0
    %4545 = vmatpush1.bf16.msra.mxu0 %v4166
    %4546 = vmatprep.subr.bf16.mxu0 0
    %4547 = vmatpush1.bf16.msra.mxu0 %v4165
    %4548 = vmatprep.subr.bf16.mxu0 0
    %4549 = vmatpush1.bf16.msra.mxu0 %v4164
    %4550 = vmatprep.subr.bf16.mxu0 0
    %4551 = vmatpush1.bf16.msra.mxu0 %v4163
    %4552 = vmatprep.subr.bf16.mxu0 0
    %4553 = vmatpush1.bf16.msra.mxu0 %v4162
    %4554 = vmatprep.subr.bf16.mxu0 0
    %4555 = vmatpush2.bf16.msra.mxu0 %v4177
    %4556 = vmatprep.subr.bf16.mxu0 0
    %4557 = vmatpush2.bf16.msra.mxu0 %v4176
    %4558 = vmatprep.subr.bf16.mxu0 0
    %4559 = vmatpush2.bf16.msra.mxu0 %v4175
    %4560 = vmatprep.subr.bf16.mxu0 0
    %4561 = vmatpush2.bf16.msra.mxu0 %v4174
    %4562 = vmatprep.subr.bf16.mxu0 0
    %4563 = vmatpush2.bf16.msra.mxu0 %v4173
    %4564 = vmatprep.subr.bf16.mxu0 0
    %4565 = vmatpush2.bf16.msra.mxu0 %v4172
    %4566 = vmatprep.subr.bf16.mxu0 0
    %4567 = vmatpush2.bf16.msra.mxu0 %v4171
    %4568 = vmatprep.subr.bf16.mxu0 0
    %4569 = vmatpush2.bf16.msra.mxu0 %v4170
    %4570 = vmatprep.mubr.bf16.mxu0 %v2735
    %4571 = vmatmul.mubr.bf16.gmra.mxu0 %v2734
    %v4572 = vpop.f32.mrf.mxu0
    %v4573 = vadd.f32 %v4444, %v4572
    %v4574 = vpop.f32.mrf.mxu0
    %v4575 = vpop.f32.mrf.mxu0
    %v4576 = vadd.f32 %v4447, %v4575
    %v4577 = vpop.f32.mrf.mxu0
    %4578 = vmatprep.mubr.bf16.mxu0 %v2824
    %4579 = vmatmul.mubr.bf16.gmra.mxu0 %v2823
    %v4580 = vpop.f32.mrf.mxu0
    %v4581 = vadd.f32 %v4452, %v4580
    %v4582 = vpop.f32.mrf.mxu0
    %v4583 = vpop.f32.mrf.mxu0
    %v4584 = vadd.f32 %v4455, %v4583
    %v4585 = vpop.f32.mrf.mxu0
    %4586 = vmatprep.mubr.bf16.mxu0 %v2913
    %4587 = vmatmul.mubr.bf16.gmra.mxu0 %v2912
    %v4588 = vpop.f32.mrf.mxu0
    %v4589 = vadd.f32 %v4460, %v4588
    %v4590 = vpop.f32.mrf.mxu0
    %v4591 = vpop.f32.mrf.mxu0
    %v4592 = vadd.f32 %v4463, %v4591
    %v4593 = vpop.f32.mrf.mxu0
    %4594 = vmatprep.mubr.bf16.mxu0 %v3002
    %4595 = vmatmul.mubr.bf16.gmra.mxu0 %v3001
    %v4596 = vpop.f32.mrf.mxu0
    %v4597 = vadd.f32 %v4468, %v4596
    %v4598 = vpop.f32.mrf.mxu0
    %v4599 = vpop.f32.mrf.mxu0
    %v4600 = vadd.f32 %v4471, %v4599
    %v4601 = vpop.f32.mrf.mxu0
    %4602 = vmatprep.mubr.bf16.mxu0 %v3091
    %4603 = vmatmul.mubr.bf16.gmra.mxu0 %v3090
    %v4604 = vpop.f32.mrf.mxu0
    %v4605 = vadd.f32 %v4476, %v4604
    %v4606 = vpop.f32.mrf.mxu0
    %v4607 = vpop.f32.mrf.mxu0
    %v4608 = vadd.f32 %v4479, %v4607
    %v4609 = vpop.f32.mrf.mxu0
    %4610 = vmatprep.mubr.bf16.mxu0 %v3180
    %4611 = vmatmul.mubr.bf16.gmra.mxu0 %v3179
    %v4612 = vpop.f32.mrf.mxu0
    %v4613 = vadd.f32 %v4484, %v4612
    %v4614 = vpop.f32.mrf.mxu0
    %v4615 = vpop.f32.mrf.mxu0
    %v4616 = vadd.f32 %v4487, %v4615
    %v4617 = vpop.f32.mrf.mxu0
    %4618 = vmatprep.mubr.bf16.mxu0 %v3269
    %4619 = vmatmul.mubr.bf16.gmra.mxu0 %v3268
    %v4620 = vpop.f32.mrf.mxu0
    %v4621 = vadd.f32 %v4492, %v4620
    %v4622 = vpop.f32.mrf.mxu0
    %v4623 = vpop.f32.mrf.mxu0
    %v4624 = vadd.f32 %v4495, %v4623
    %v4625 = vpop.f32.mrf.mxu0
    %4626 = vmatprep.mubr.bf16.mxu0 %v3358
    %4627 = vmatmul.mubr.bf16.gmra.mxu0 %v3357
    %v4628 = vpop.f32.mrf.mxu0
    %v4629 = vadd.f32 %v4500, %v4628
    %v4630 = vpop.f32.mrf.mxu0
    %v4631 = vpop.f32.mrf.mxu0
    %v4632 = vadd.f32 %v4503, %v4631
    %v4633 = vpop.f32.mrf.mxu0
    %4634 = vmatprep.mubr.bf16.mxu0 %v3447
    %4635 = vmatmul.mubr.bf16.gmra.mxu0 %v3446
    %v4636 = vpop.f32.mrf.mxu0
    %v4637 = vadd.f32 %v4508, %v4636
    %v4638 = vpop.f32.mrf.mxu0
    %v4639 = vpop.f32.mrf.mxu0
    %v4640 = vadd.f32 %v4511, %v4639
    %v4641 = vpop.f32.mrf.mxu0
    %4642 = vmatprep.mubr.bf16.mxu0 %v3536
    %4643 = vmatmul.mubr.bf16.gmra.mxu0 %v3535
    %v4644 = vpop.f32.mrf.mxu0
    %v4645 = vadd.f32 %v4516, %v4644
    %v4646 = vpop.f32.mrf.mxu0
    %v4647 = vpop.f32.mrf.mxu0
    %v4648 = vadd.f32 %v4519, %v4647
    %v4649 = vpop.f32.mrf.mxu0
    %4650 = vmatprep.mubr.bf16.mxu0 %v3625
    %4651 = vmatmul.mubr.bf16.gmra.mxu0 %v3624
    %v4652 = vpop.f32.mrf.mxu0
    %v4653 = vadd.f32 %v4524, %v4652
    %v4654 = vpop.f32.mrf.mxu0
    %v4655 = vpop.f32.mrf.mxu0
    %v4656 = vadd.f32 %v4527, %v4655
    %v4657 = vpop.f32.mrf.mxu0
    %4658 = vmatprep.mubr.bf16.mxu0 %v3714
    %4659 = vmatmul.mubr.bf16.gmra.mxu0 %v3713
    %v4660 = vpop.f32.mrf.mxu0
    %v4661 = vadd.f32 %v4532, %v4660
    %v4662 = vpop.f32.mrf.mxu0
    %v4663 = vpop.f32.mrf.mxu0
    %v4664 = vadd.f32 %v4535, %v4663
    %v4665 = vpop.f32.mrf.mxu0
    %4666 = vdwg.mxu0
    %4667 = vmatprep.subr.bf16.mxu0 0
    %4668 = vmatpush1.bf16.msra.mxu0 %v4185
    %4669 = vmatprep.subr.bf16.mxu0 0
    %4670 = vmatpush1.bf16.msra.mxu0 %v4184
    %4671 = vmatprep.subr.bf16.mxu0 0
    %4672 = vmatpush1.bf16.msra.mxu0 %v4183
    %4673 = vmatprep.subr.bf16.mxu0 0
    %4674 = vmatpush1.bf16.msra.mxu0 %v4182
    %4675 = vmatprep.subr.bf16.mxu0 0
    %4676 = vmatpush1.bf16.msra.mxu0 %v4181
    %4677 = vmatprep.subr.bf16.mxu0 0
    %4678 = vmatpush1.bf16.msra.mxu0 %v4180
    %4679 = vmatprep.subr.bf16.mxu0 0
    %4680 = vmatpush1.bf16.msra.mxu0 %v4179
    %4681 = vmatprep.subr.bf16.mxu0 0
    %4682 = vmatpush1.bf16.msra.mxu0 %v4178
    %4683 = vmatprep.subr.bf16.mxu0 0
    %4684 = vmatpush2.bf16.msra.mxu0 %v4193
    %4685 = vmatprep.subr.bf16.mxu0 0
    %4686 = vmatpush2.bf16.msra.mxu0 %v4192
    %4687 = vmatprep.subr.bf16.mxu0 0
    %4688 = vmatpush2.bf16.msra.mxu0 %v4191
    %4689 = vmatprep.subr.bf16.mxu0 0
    %4690 = vmatpush2.bf16.msra.mxu0 %v4190
    %4691 = vmatprep.subr.bf16.mxu0 0
    %4692 = vmatpush2.bf16.msra.mxu0 %v4189
    %4693 = vmatprep.subr.bf16.mxu0 0
    %4694 = vmatpush2.bf16.msra.mxu0 %v4188
    %4695 = vmatprep.subr.bf16.mxu0 0
    %4696 = vmatpush2.bf16.msra.mxu0 %v4187
    %4697 = vmatprep.subr.bf16.mxu0 0
    %4698 = vmatpush2.bf16.msra.mxu0 %v4186
    %4699 = vmatprep.mubr.bf16.mxu0 %v2737
    %4700 = vmatmul.mubr.bf16.gmra.mxu0 %v2736
    %v4701 = vpop.f32.mrf.mxu0
    %v4702 = vadd.f32 %v4573, %v4701
    %v4703 = vpop.f32.mrf.mxu0
    %v4704 = vpop.f32.mrf.mxu0
    %v4705 = vadd.f32 %v4576, %v4704
    %v4706 = vpop.f32.mrf.mxu0
    %4707 = vmatprep.mubr.bf16.mxu0 %v2826
    %4708 = vmatmul.mubr.bf16.gmra.mxu0 %v2825
    %v4709 = vpop.f32.mrf.mxu0
    %v4710 = vadd.f32 %v4581, %v4709
    %v4711 = vpop.f32.mrf.mxu0
    %v4712 = vpop.f32.mrf.mxu0
    %v4713 = vadd.f32 %v4584, %v4712
    %v4714 = vpop.f32.mrf.mxu0
    %4715 = vmatprep.mubr.bf16.mxu0 %v2915
    %4716 = vmatmul.mubr.bf16.gmra.mxu0 %v2914
    %v4717 = vpop.f32.mrf.mxu0
    %v4718 = vadd.f32 %v4589, %v4717
    %v4719 = vpop.f32.mrf.mxu0
    %v4720 = vpop.f32.mrf.mxu0
    %v4721 = vadd.f32 %v4592, %v4720
    %v4722 = vpop.f32.mrf.mxu0
    %4723 = vmatprep.mubr.bf16.mxu0 %v3004
    %4724 = vmatmul.mubr.bf16.gmra.mxu0 %v3003
    %v4725 = vpop.f32.mrf.mxu0
    %v4726 = vadd.f32 %v4597, %v4725
    %v4727 = vpop.f32.mrf.mxu0
    %v4728 = vpop.f32.mrf.mxu0
    %v4729 = vadd.f32 %v4600, %v4728
    %v4730 = vpop.f32.mrf.mxu0
    %4731 = vmatprep.mubr.bf16.mxu0 %v3093
    %4732 = vmatmul.mubr.bf16.gmra.mxu0 %v3092
    %v4733 = vpop.f32.mrf.mxu0
    %v4734 = vadd.f32 %v4605, %v4733
    %v4735 = vpop.f32.mrf.mxu0
    %v4736 = vpop.f32.mrf.mxu0
    %v4737 = vadd.f32 %v4608, %v4736
    %v4738 = vpop.f32.mrf.mxu0
    %4739 = vmatprep.mubr.bf16.mxu0 %v3182
    %4740 = vmatmul.mubr.bf16.gmra.mxu0 %v3181
    %v4741 = vpop.f32.mrf.mxu0
    %v4742 = vadd.f32 %v4613, %v4741
    %v4743 = vpop.f32.mrf.mxu0
    %v4744 = vpop.f32.mrf.mxu0
    %v4745 = vadd.f32 %v4616, %v4744
    %v4746 = vpop.f32.mrf.mxu0
    %4747 = vmatprep.mubr.bf16.mxu0 %v3271
    %4748 = vmatmul.mubr.bf16.gmra.mxu0 %v3270
    %v4749 = vpop.f32.mrf.mxu0
    %v4750 = vadd.f32 %v4621, %v4749
    %v4751 = vpop.f32.mrf.mxu0
    %v4752 = vpop.f32.mrf.mxu0
    %v4753 = vadd.f32 %v4624, %v4752
    %v4754 = vpop.f32.mrf.mxu0
    %4755 = vmatprep.mubr.bf16.mxu0 %v3360
    %4756 = vmatmul.mubr.bf16.gmra.mxu0 %v3359
    %v4757 = vpop.f32.mrf.mxu0
    %v4758 = vadd.f32 %v4629, %v4757
    %v4759 = vpop.f32.mrf.mxu0
    %v4760 = vpop.f32.mrf.mxu0
    %v4761 = vadd.f32 %v4632, %v4760
    %v4762 = vpop.f32.mrf.mxu0
    %4763 = vmatprep.mubr.bf16.mxu0 %v3449
    %4764 = vmatmul.mubr.bf16.gmra.mxu0 %v3448
    %v4765 = vpop.f32.mrf.mxu0
    %v4766 = vadd.f32 %v4637, %v4765
    %v4767 = vpop.f32.mrf.mxu0
    %v4768 = vpop.f32.mrf.mxu0
    %v4769 = vadd.f32 %v4640, %v4768
    %v4770 = vpop.f32.mrf.mxu0
    %4771 = vmatprep.mubr.bf16.mxu0 %v3538
    %4772 = vmatmul.mubr.bf16.gmra.mxu0 %v3537
    %v4773 = vpop.f32.mrf.mxu0
    %v4774 = vadd.f32 %v4645, %v4773
    %v4775 = vpop.f32.mrf.mxu0
    %v4776 = vpop.f32.mrf.mxu0
    %v4777 = vadd.f32 %v4648, %v4776
    %v4778 = vpop.f32.mrf.mxu0
    %4779 = vmatprep.mubr.bf16.mxu0 %v3627
    %4780 = vmatmul.mubr.bf16.gmra.mxu0 %v3626
    %v4781 = vpop.f32.mrf.mxu0
    %v4782 = vadd.f32 %v4653, %v4781
    %v4783 = vpop.f32.mrf.mxu0
    %v4784 = vpop.f32.mrf.mxu0
    %v4785 = vadd.f32 %v4656, %v4784
    %v4786 = vpop.f32.mrf.mxu0
    %4787 = vmatprep.mubr.bf16.mxu0 %v3716
    %4788 = vmatmul.mubr.bf16.gmra.mxu0 %v3715
    %v4789 = vpop.f32.mrf.mxu0
    %v4790 = vadd.f32 %v4661, %v4789
    %v4791 = vpop.f32.mrf.mxu0
    %v4792 = vpop.f32.mrf.mxu0
    %v4793 = vadd.f32 %v4664, %v4792
    %v4794 = vpop.f32.mrf.mxu0
    %4795 = vdwg.mxu0
    %4796 = vmatprep.subr.bf16.mxu0 0
    %4797 = vmatpush1.bf16.msra.mxu0 %v4201
    %4798 = vmatprep.subr.bf16.mxu0 0
    %4799 = vmatpush1.bf16.msra.mxu0 %v4200
    %4800 = vmatprep.subr.bf16.mxu0 0
    %4801 = vmatpush1.bf16.msra.mxu0 %v4199
    %4802 = vmatprep.subr.bf16.mxu0 0
    %4803 = vmatpush1.bf16.msra.mxu0 %v4198
    %4804 = vmatprep.subr.bf16.mxu0 0
    %4805 = vmatpush1.bf16.msra.mxu0 %v4197
    %4806 = vmatprep.subr.bf16.mxu0 0
    %4807 = vmatpush1.bf16.msra.mxu0 %v4196
    %4808 = vmatprep.subr.bf16.mxu0 0
    %4809 = vmatpush1.bf16.msra.mxu0 %v4195
    %4810 = vmatprep.subr.bf16.mxu0 0
    %4811 = vmatpush1.bf16.msra.mxu0 %v4194
    %4812 = vmatprep.subr.bf16.mxu0 0
    %4813 = vmatpush2.bf16.msra.mxu0 0
    %4814 = vmatprep.subr.bf16.mxu0 0
    %4815 = vmatpush2.bf16.msra.mxu0 0
    %4816 = vmatprep.subr.bf16.mxu0 0
    %4817 = vmatpush2.bf16.msra.mxu0 0
    %4818 = vmatprep.subr.bf16.mxu0 0
    %4819 = vmatpush2.bf16.msra.mxu0 0
    %4820 = vmatprep.subr.bf16.mxu0 0
    %4821 = vmatpush2.bf16.msra.mxu0 0
    %4822 = vmatprep.subr.bf16.mxu0 0
    %4823 = vmatpush2.bf16.msra.mxu0 0
    %4824 = vmatprep.subr.bf16.mxu0 0
    %4825 = vmatpush2.bf16.msra.mxu0 0
    %4826 = vmatprep.subr.bf16.mxu0 0
    %4827 = vmatpush2.bf16.msra.mxu0 0
    %4828 = vmatprep.mubr.bf16.mxu0 0
    %4829 = vmatmul.mubr.bf16.gmra.mxu0 %v2754
    %v4830 = vpop.f32.mrf.mxu0
    %v4831 = vadd.f32 %v4702, %v4830
    %v4832 = vpop.f32.mrf.mxu0
    %v4833 = vpop.f32.mrf.mxu0
    %v4834 = vadd.f32 %v4705, %v4833
    %v4835 = vpop.f32.mrf.mxu0
    %4836 = vmatprep.mubr.bf16.mxu0 0
    %4837 = vmatmul.mubr.bf16.gmra.mxu0 %v2843
    %v4838 = vpop.f32.mrf.mxu0
    %v4839 = vadd.f32 %v4710, %v4838
    %v4840 = vpop.f32.mrf.mxu0
    %v4841 = vpop.f32.mrf.mxu0
    %v4842 = vadd.f32 %v4713, %v4841
    %v4843 = vpop.f32.mrf.mxu0
    %4844 = vmatprep.mubr.bf16.mxu0 0
    %4845 = vmatmul.mubr.bf16.gmra.mxu0 %v2932
    %v4846 = vpop.f32.mrf.mxu0
    %v4847 = vadd.f32 %v4718, %v4846
    %v4848 = vpop.f32.mrf.mxu0
    %v4849 = vpop.f32.mrf.mxu0
    %v4850 = vadd.f32 %v4721, %v4849
    %v4851 = vpop.f32.mrf.mxu0
    %4852 = vmatprep.mubr.bf16.mxu0 0
    %4853 = vmatmul.mubr.bf16.gmra.mxu0 %v3021
    %v4854 = vpop.f32.mrf.mxu0
    %v4855 = vadd.f32 %v4726, %v4854
    %v4856 = vpop.f32.mrf.mxu0
    %v4857 = vpop.f32.mrf.mxu0
    %v4858 = vadd.f32 %v4729, %v4857
    %v4859 = vpop.f32.mrf.mxu0
    %4860 = vmatprep.mubr.bf16.mxu0 0
    %4861 = vmatmul.mubr.bf16.gmra.mxu0 %v3110
    %v4862 = vpop.f32.mrf.mxu0
    %v4863 = vadd.f32 %v4734, %v4862
    %v4864 = vpop.f32.mrf.mxu0
    %v4865 = vpop.f32.mrf.mxu0
    %v4866 = vadd.f32 %v4737, %v4865
    %v4867 = vpop.f32.mrf.mxu0
    %4868 = vmatprep.mubr.bf16.mxu0 0
    %4869 = vmatmul.mubr.bf16.gmra.mxu0 %v3199
    %v4870 = vpop.f32.mrf.mxu0
    %v4871 = vadd.f32 %v4742, %v4870
    %v4872 = vpop.f32.mrf.mxu0
    %v4873 = vpop.f32.mrf.mxu0
    %v4874 = vadd.f32 %v4745, %v4873
    %v4875 = vpop.f32.mrf.mxu0
    %4876 = vmatprep.mubr.bf16.mxu0 0
    %4877 = vmatmul.mubr.bf16.gmra.mxu0 %v3288
    %v4878 = vpop.f32.mrf.mxu0
    %v4879 = vadd.f32 %v4750, %v4878
    %v4880 = vpop.f32.mrf.mxu0
    %v4881 = vpop.f32.mrf.mxu0
    %v4882 = vadd.f32 %v4753, %v4881
    %v4883 = vpop.f32.mrf.mxu0
    %4884 = vmatprep.mubr.bf16.mxu0 0
    %4885 = vmatmul.mubr.bf16.gmra.mxu0 %v3377
    %v4886 = vpop.f32.mrf.mxu0
    %v4887 = vadd.f32 %v4758, %v4886
    %v4888 = vpop.f32.mrf.mxu0
    %v4889 = vpop.f32.mrf.mxu0
    %v4890 = vadd.f32 %v4761, %v4889
    %v4891 = vpop.f32.mrf.mxu0
    %4892 = vmatprep.mubr.bf16.mxu0 0
    %4893 = vmatmul.mubr.bf16.gmra.mxu0 %v3466
    %v4894 = vpop.f32.mrf.mxu0
    %v4895 = vadd.f32 %v4766, %v4894
    %v4896 = vpop.f32.mrf.mxu0
    %v4897 = vpop.f32.mrf.mxu0
    %v4898 = vadd.f32 %v4769, %v4897
    %v4899 = vpop.f32.mrf.mxu0
    %4900 = vmatprep.mubr.bf16.mxu0 0
    %4901 = vmatmul.mubr.bf16.gmra.mxu0 %v3555
    %v4902 = vpop.f32.mrf.mxu0
    %v4903 = vadd.f32 %v4774, %v4902
    %v4904 = vpop.f32.mrf.mxu0
    %v4905 = vpop.f32.mrf.mxu0
    %v4906 = vadd.f32 %v4777, %v4905
    %v4907 = vpop.f32.mrf.mxu0
    %4908 = vmatprep.mubr.bf16.mxu0 0
    %4909 = vmatmul.mubr.bf16.gmra.mxu0 %v3644
    %v4910 = vpop.f32.mrf.mxu0
    %v4911 = vadd.f32 %v4782, %v4910
    %v4912 = vpop.f32.mrf.mxu0
    %v4913 = vpop.f32.mrf.mxu0
    %v4914 = vadd.f32 %v4785, %v4913
    %v4915 = vpop.f32.mrf.mxu0
    %4916 = vmatprep.mubr.bf16.mxu0 0
    %4917 = vmatmul.mubr.bf16.gmra.mxu0 %v3733
    %v4918 = vpop.f32.mrf.mxu0
    %v4919 = vadd.f32 %v4790, %v4918
    %v4920 = vpop.f32.mrf.mxu0
    %v4921 = vpop.f32.mrf.mxu0
    %v4922 = vadd.f32 %v4793, %v4921
    %v4923 = vpop.f32.mrf.mxu0
    %4924 = vdwg.mxu0
    %v4949 = vcombine.high %v4831, %v4831
    %v4950 = vcombine.high %v4834, %v4834
    %v4951 = vcombine.high %v4839, %v4839
    %v4952 = vcombine.high %v4842, %v4842
    %v4953 = vcombine.high %v4847, %v4847
    %v4954 = vcombine.high %v4850, %v4850
    %v4955 = vcombine.high %v4855, %v4855
    %v4956 = vcombine.high %v4858, %v4858
    %v4957 = vcombine.high %v4863, %v4863
    %v4958 = vcombine.high %v4866, %v4866
    %v4959 = vcombine.high %v4871, %v4871
    %v4960 = vcombine.high %v4874, %v4874
    %v4961 = vcombine.high %v4879, %v4879
    %v4962 = vcombine.high %v4882, %v4882
    %v4963 = vcombine.high %v4887, %v4887
    %v4964 = vcombine.high %v4890, %v4890
    %v4965 = vcombine.high %v4895, %v4895
    %v4966 = vcombine.high %v4898, %v4898
    %v4967 = vcombine.high %v4903, %v4903
    %v4968 = vcombine.high %v4906, %v4906
    %v4969 = vcombine.high %v4911, %v4911
    %v4970 = vcombine.high %v4914, %v4914
    %v4971 = vcombine.high %v4919, %v4919
    %v4972 = vcombine.high %v4922, %v4922
    %v4997 = vmax.f32 %v4831, 0.0
    %v4998 = vmax.f32 %v4949, 0.0
    %v4999 = vmax.f32 %v4834, 0.0
    %v5000 = vmax.f32 %v4950, 0.0
    %v5001 = vmax.f32 %v4839, 0.0
    %v5002 = vmax.f32 %v4951, 0.0
    %v5003 = vmax.f32 %v4842, 0.0
    %v5004 = vmax.f32 %v4952, 0.0
    %v5005 = vmax.f32 %v4847, 0.0
    %v5006 = vmax.f32 %v4953, 0.0
    %v5007 = vmax.f32 %v4850, 0.0
    %v5008 = vmax.f32 %v4954, 0.0
    %v5009 = vmax.f32 %v4855, 0.0
    %v5010 = vmax.f32 %v4955, 0.0
    %v5011 = vmax.f32 %v4858, 0.0
    %v5012 = vmax.f32 %v4956, 0.0
    %v5013 = vmax.f32 %v4863, 0.0
    %v5014 = vmax.f32 %v4957, 0.0
    %v5015 = vmax.f32 %v4866, 0.0
    %v5016 = vmax.f32 %v4958, 0.0
    %v5017 = vmax.f32 %v4871, 0.0
    %v5018 = vmax.f32 %v4959, 0.0
    %v5019 = vmax.f32 %v4874, 0.0
    %v5020 = vmax.f32 %v4960, 0.0
    %v5021 = vmax.f32 %v4879, 0.0
    %v5022 = vmax.f32 %v4961, 0.0
    %v5023 = vmax.f32 %v4882, 0.0
    %v5024 = vmax.f32 %v4962, 0.0
    %v5025 = vmax.f32 %v4887, 0.0
    %v5026 = vmax.f32 %v4963, 0.0
    %v5027 = vmax.f32 %v4890, 0.0
    %v5028 = vmax.f32 %v4964, 0.0
    %v5029 = vmax.f32 %v4895, 0.0
    %v5030 = vmax.f32 %v4965, 0.0
    %v5031 = vmax.f32 %v4898, 0.0
    %v5032 = vmax.f32 %v4966, 0.0
    %v5033 = vmax.f32 %v4903, 0.0
    %v5034 = vmax.f32 %v4967, 0.0
    %v5035 = vmax.f32 %v4906, 0.0
    %v5036 = vmax.f32 %v4968, 0.0
    %v5037 = vmax.f32 %v4911, 0.0
    %v5038 = vmax.f32 %v4969, 0.0
    %v5039 = vmax.f32 %v4914, 0.0
    %v5040 = vmax.f32 %v4970, 0.0
    %v5041 = vmax.f32 %v4919, 0.0
    %v5042 = vmax.f32 %v4971, 0.0
    %v5043 = vmax.f32 %v4922, 0.0
    %v5044 = vmax.f32 %v4972, 0.0
    %v5045 = vmax.f32 %v4997, %v5000
    %v5046 = vmax.f32 %v4998, %v5001
    %v5047 = vmax.f32 %v4999, %v5002
    %v5048 = vmax.f32 %v5003, %v5006
    %v5049 = vmax.f32 %v5004, %v5007
    %v5050 = vmax.f32 %v5005, %v5008
    %v5051 = vmax.f32 %v5009, %v5012
    %v5052 = vmax.f32 %v5010, %v5013
    %v5053 = vmax.f32 %v5011, %v5014
    %v5054 = vmax.f32 %v5015, %v5018
    %v5055 = vmax.f32 %v5016, %v5019
    %v5056 = vmax.f32 %v5017, %v5020
    %v5057 = vmax.f32 %v5021, %v5024
    %v5058 = vmax.f32 %v5022, %v5025
    %v5059 = vmax.f32 %v5023, %v5026
    %v5060 = vmax.f32 %v5027, %v5030
    %v5061 = vmax.f32 %v5028, %v5031
    %v5062 = vmax.f32 %v5029, %v5032
    %v5063 = vmax.f32 %v5033, %v5036
    %v5064 = vmax.f32 %v5034, %v5037
    %v5065 = vmax.f32 %v5035, %v5038
    %v5066 = vmax.f32 %v5039, %v5042
    %v5067 = vmax.f32 %v5040, %v5043
    %v5068 = vmax.f32 %v5041, %v5044
    %v5085 = vcombine.low %v5045, %v5046
    %v5086 = vcombine.low %v5048, %v5049
    %v5087 = vcombine.low %v5051, %v5052
    %v5088 = vcombine.low %v5054, %v5055
    %v5089 = vcombine.low %v5057, %v5058
    %v5090 = vcombine.low %v5060, %v5061
    %v5091 = vcombine.low %v5063, %v5064
    %v5092 = vcombine.low %v5066, %v5067
    %5101 = vst [vmem:[#allocation3] sm:$0xff] %v5085
    %5102 = vst [vmem:[#allocation3 + $0x8] sm:$0xf] %v5047
    %5103 = vst [vmem:[#allocation3 + $0x10] sm:$0xff] %v5086
    %5104 = vst [vmem:[#allocation3 + $0x18] sm:$0xf] %v5050
    %5105 = vst [vmem:[#allocation3 + $0x20] sm:$0xff] %v5087
    %5106 = vst [vmem:[#allocation3 + $0x28] sm:$0xf] %v5053
    %5107 = vst [vmem:[#allocation3 + $0x30] sm:$0xff] %v5088
    %5108 = vst [vmem:[#allocation3 + $0x38] sm:$0xf] %v5056
    %5109 = vst [vmem:[#allocation3 + $0x40] sm:$0xff] %v5089
    %5110 = vst [vmem:[#allocation3 + $0x48] sm:$0xf] %v5059
    %5111 = vst [vmem:[#allocation3 + $0x50] sm:$0xff] %v5090
    %5112 = vst [vmem:[#allocation3 + $0x58] sm:$0xf] %v5062
    %5113 = vst [vmem:[#allocation3 + $0x60] sm:$0xff] %v5091
    %5114 = vst [vmem:[#allocation3 + $0x68] sm:$0xf] %v5065
    %5115 = vst [vmem:[#allocation3 + $0x70] sm:$0xff] %v5092
    %5116 = vst [vmem:[#allocation3 + $0x78] sm:$0xf] %v5068
    %v5117 = vld [vmem:[#allocation3] ss:$2 sm:$0x3f]
    %s5118 = scalar_lea.vmem [#allocation3], 16
    %v5119 = vld [vmem:[%s5118] ss:$2 sm:$0x3f]
    %s5120 = scalar_lea.vmem [#allocation3], 32
    %v5121 = vld [vmem:[%s5120] ss:$2 sm:$0x3f]
    %s5122 = scalar_lea.vmem [#allocation3], 48
    %v5123 = vld [vmem:[%s5122] ss:$2 sm:$0x3f]
    %s5124 = scalar_lea.vmem [#allocation3], 64
    %v5125 = vld [vmem:[%s5124] ss:$2 sm:$0x3f]
    %s5126 = scalar_lea.vmem [#allocation3], 80
    %v5127 = vld [vmem:[%s5126] ss:$2 sm:$0x3f]
    %s5128 = scalar_lea.vmem [#allocation3], 96
    %v5129 = vld [vmem:[%s5128] ss:$2 sm:$0x3f]
    %s5130 = scalar_lea.vmem [#allocation3], 112
    %v5131 = vld [vmem:[%s5130] ss:$2 sm:$0x3f]
    %s5132 = scalar_lea.vmem [#allocation3], 1
    %v5133 = vld [vmem:[%s5132] ss:$2 sm:$0x3f]
    %s5134 = scalar_lea.vmem [#allocation3], 17
    %v5135 = vld [vmem:[%s5134] ss:$2 sm:$0x3f]
    %s5136 = scalar_lea.vmem [#allocation3], 33
    %v5137 = vld [vmem:[%s5136] ss:$2 sm:$0x3f]
    %s5138 = scalar_lea.vmem [#allocation3], 49
    %v5139 = vld [vmem:[%s5138] ss:$2 sm:$0x3f]
    %s5140 = scalar_lea.vmem [#allocation3], 65
    %v5141 = vld [vmem:[%s5140] ss:$2 sm:$0x3f]
    %s5142 = scalar_lea.vmem [#allocation3], 81
    %v5143 = vld [vmem:[%s5142] ss:$2 sm:$0x3f]
    %s5144 = scalar_lea.vmem [#allocation3], 97
    %v5145 = vld [vmem:[%s5144] ss:$2 sm:$0x3f]
    %s5146 = scalar_lea.vmem [#allocation3], 113
    %v5147 = vld [vmem:[%s5146] ss:$2 sm:$0x3f]
    %v5148 = vmax.f32 %v5117, %v5133
    %v5149 = vmax.f32 %v5119, %v5135
    %v5150 = vmax.f32 %v5121, %v5137
    %v5151 = vmax.f32 %v5123, %v5139
    %v5152 = vmax.f32 %v5125, %v5141
    %v5153 = vmax.f32 %v5127, %v5143
    %v5154 = vmax.f32 %v5129, %v5145
    %v5155 = vmax.f32 %v5131, %v5147
    %v5156 = vpack.c.bf16 %v5148, %v5148
    %v5157 = vpack.c.bf16 %v5149, %v5149
    %v5158 = vpack.c.bf16 %v5150, %v5150
    %v5159 = vpack.c.bf16 %v5151, %v5151
    %v5160 = vpack.c.bf16 %v5152, %v5152
    %v5161 = vpack.c.bf16 %v5153, %v5153
    %v5162 = vpack.c.bf16 %v5154, %v5154
    %v5163 = vpack.c.bf16 %v5155, %v5155
    %5164 = vst [vmem:[%s3] sm:$0x7] %v5156
    %5165 = vst [vmem:[%s3 + $0x4] sm:$0x7] %v5157
    %5166 = vst [vmem:[%s3 + $0x8] sm:$0x7] %v5158
    %5167 = vst [vmem:[%s3 + $0xc] sm:$0x7] %v5159
    %5168 = vst [vmem:[%s3 + $0x10] sm:$0x7] %v5160
    %5169 = vst [vmem:[%s3 + $0x14] sm:$0x7] %v5161
    %5170 = vst [vmem:[%s3 + $0x18] sm:$0x7] %v5162
    %5171 = vst [vmem:[%s3 + $0x1c] sm:$0x7] %v5163
    // Predicated region
    $region18: #{frozen_densenet_esc50_forward.2} parent=1 // pred_check
      _
    $region19: #{frozen_densenet_esc50_forward.2} parent=1 // pred_check_branch
      %5173 = sbr.rel (0) target = $region21
    $region20: #{frozen_densenet_esc50_forward.2} parent=1 // pred_region
      _
    $region21: #{frozen_densenet_esc50_forward.2} parent=1 // pred_fallthru
      _
    // Predicated region
    $region22: #{frozen_densenet_esc50_forward.2} parent=1 // pred_check
      _
    $region23: #{frozen_densenet_esc50_forward.2} parent=1 // pred_check_branch
      %5175 = sbr.rel (0) target = $region25
    $region24: #{frozen_densenet_esc50_forward.2} parent=1 // pred_region
      _
    $region25: #{frozen_densenet_esc50_forward.2} parent=1 // pred_fallthru
      _
    %5176 = vsyncpa [#allocation5], 1

</llo_original>
